<compile_context>
chip_gen: v7x
topology: tpu7x:2x2x1
jax: 0.10.0
libtpu: 0.0.40
codegen_flags: <defaults>
</compile_context>

<pallas_src>
import functools

import jax
import jax.numpy as jnp
from jax.experimental import pallas as pl
from jax.experimental.pallas import tpu as pltpu

F32 = jnp.float32
BF16 = jnp.bfloat16


# --------------------------------------------------------------------------
# Small helpers
# --------------------------------------------------------------------------
def _round_up(n, m):
    return ((n + m - 1) // m) * m


def _pick_tile(dim, target, align=128):
    """Largest multiple of `align` that divides `dim` and is <= max(target, align)."""
    t = max(align, min(target, dim))
    t -= t % align
    while dim % t:
        t -= align
    return t


def _pick_tile_mxu(dim, target):
    """Prefer multiples of 256 (one full 256x256 MXU pass on v6e/v7x)."""
    if dim % 256 == 0:
        t = _pick_tile(dim, max(target, 256), align=256)
        if t >= 256:
            return t
    return _pick_tile(dim, target, align=128)


def _device_kind():
    try:
        return jax.devices()[0].device_kind.lower()
    except Exception:
        return ""


_KIND = _device_kind()
if "v5" in _KIND:
    _VMEM_LIMIT = 64 * 1024 * 1024       # 128 MiB physical
elif "v6" in _KIND:
    _VMEM_LIMIT = 64 * 1024 * 1024       # 128 MiB physical
else:
    _VMEM_LIMIT = 32 * 1024 * 1024       # v7x: 64 MiB physical, stay lean

# If the (K, N) GEMM weight fits in this many bytes it stays VMEM-resident and
# the grid collapses to (M//tm,) -- activations read once, no acc scratch.
_RESIDENT_W_BYTES = 8 * 1024 * 1024
_TM_TARGET = 512


_GELU_C0 = 0.7978845608028654   # sqrt(2/pi)
_GELU_C1 = 0.044715


def _gelu(x):
    # tanh-approx GELU: the tanh runs on the EUP (its own VLIW slot).
    # TODO(synk): torch.nn.GELU() defaults to the exact erf formulation; the
    # tanh approximation differs by ~1e-3 absolute worst case.
    return 0.5 * x * (1.0 + jnp.tanh(_GELU_C0 * (x + _GELU_C1 * x * x * x)))


# --------------------------------------------------------------------------
# Kernel A: fused  (M,K)@(K,N) + bias + GELU + BatchNorm(affine)
# Weight-resident single-pass version (default) + tiled fallback.
# Used for the patch-embedding conv (via im2col).
# --------------------------------------------------------------------------
def _mm_resident_kernel(x_ref, w_ref, b_ref, scale_ref, shift_ref, o_ref):
    z = jnp.dot(x_ref[...], w_ref[...],
                preferred_element_type=jnp.float32) + b_ref[...]
    g = _gelu(z)
    o_ref[...] = (g * scale_ref[...] + shift_ref[...]).astype(o_ref.dtype)


def _mm_tiled_kernel(x_ref, w_ref, b_ref, scale_ref, shift_ref, o_ref, acc_ref):
    @pl.when(pl.program_id(2) == 0)
    def _init():
        acc_ref[...] = jnp.zeros_like(acc_ref)

    acc_ref[...] += jnp.dot(x_ref[...], w_ref[...],
                            preferred_element_type=jnp.float32)

    @pl.when(pl.program_id(2) == pl.num_programs(2) - 1)
    def _finalize():
        z = acc_ref[...] + b_ref[...]
        g = _gelu(z)
        o_ref[...] = (g * scale_ref[...] + shift_ref[...]).astype(o_ref.dtype)


def mm_gelu_bn(x, w, b, scale, shift, out_dtype=BF16):
    M, K = x.shape
    Kw, N = w.shape
    assert K == Kw and K % 128 == 0 and N % 128 == 0
    Mp = _round_up(M, 128)
    if Mp != M:
        # TODO(synk): a masked ragged last-M tile would avoid this padded copy.
        x = jnp.pad(x, ((0, Mp - M), (0, 0)))
    b2 = b.reshape(1, N).astype(F32)
    s2 = scale.reshape(1, N).astype(F32)
    t2 = shift.reshape(1, N).astype(F32)

    w_bytes = K * N * w.dtype.itemsize
    if w_bytes <= _RESIDENT_W_BYTES:
        # weight fully VMEM-resident: single pass over x, no reduction axis.
        tm = _pick_tile(Mp, _TM_TARGET)
        full = lambda i: (0, 0)
        out = pl.pallas_call(
            _mm_resident_kernel,
            out_shape=jax.ShapeDtypeStruct((Mp, N), out_dtype),
            grid_spec=pltpu.PrefetchScalarGridSpec(
                num_scalar_prefetch=0,
                grid=(Mp // tm,),
                in_specs=[
                    pl.BlockSpec((tm, K), lambda i: (i, 0)),
                    pl.BlockSpec((K, N), full),
                    pl.BlockSpec((1, N), full),
                    pl.BlockSpec((1, N), full),
                    pl.BlockSpec((1, N), full),
                ],
                out_specs=pl.BlockSpec((tm, N), lambda i: (i, 0)),
            ),
            compiler_params=pltpu.CompilerParams(
                dimension_semantics=("parallel",),
                vmem_limit_bytes=_VMEM_LIMIT),
        )(x, w, b2, s2, t2)
    else:
        # tiled fallback for very large weights (256-aligned tiles for the MXU)
        tm = _pick_tile_mxu(Mp, 512)
        tn = _pick_tile_mxu(N, 512)
        tk = _pick_tile_mxu(K, 1024)
        nmap = lambda i, j, k: (0, j)
        out = pl.pallas_call(
            _mm_tiled_kernel,
            out_shape=jax.ShapeDtypeStruct((Mp, N), out_dtype),
            grid_spec=pltpu.PrefetchScalarGridSpec(
                num_scalar_prefetch=0,
                grid=(Mp // tm, N // tn, K // tk),        # reduction axis last
                in_specs=[
                    pl.BlockSpec((tm, tk), lambda i, j, k: (i, k)),
                    pl.BlockSpec((tk, tn), lambda i, j, k: (k, j)),
                    pl.BlockSpec((1, tn), nmap),
                    pl.BlockSpec((1, tn), nmap),
                    pl.BlockSpec((1, tn), nmap),
                ],
                out_specs=pl.BlockSpec((tm, tn), lambda i, j, k: (i, j)),
                scratch_shapes=[pltpu.VMEM((tm, tn), jnp.float32)],
            ),
            compiler_params=pltpu.CompilerParams(
                dimension_semantics=("parallel", "parallel", "arbitrary"),
                vmem_limit_bytes=_VMEM_LIMIT),
        )(x, w, b2, s2, t2)
    return out[:M] if Mp != M else out


# --------------------------------------------------------------------------
# Kernel B: fused mixer block
#   depthwise KxK 'same' conv + GELU + BN + residual  --->  1x1 conv + GELU + BN
# One pallas_call per block; grid over batch only.  The depthwise result stays
# in VMEM and feeds the MXU directly (no HBM round-trip between the two convs).
# Halo scratch is bf16; only the halo strips are re-zeroed each step.
# --------------------------------------------------------------------------
def _block_kernel(x_ref, dww_ref, dwb_ref, dws_ref, dwt_ref,
                  pww_ref, pwb_ref, pws_ref, pwt_ref,
                  o_ref, xpad_ref, *, K, H, W, left):
    pad = K // 2
    _, HT, WT, C = xpad_ref.shape

    # --- zero only the halo strips (interior is fully overwritten below) ---
    if pad:
        zrow = jnp.zeros((1, pad, WT, C), xpad_ref.dtype)
        xpad_ref[:, 0:pad, :, :] = zrow
        xpad_ref[:, pad + H:pad + H + pad, :, :] = zrow
        zcol = jnp.zeros((1, HT, pad, C), xpad_ref.dtype)
        xpad_ref[:, :, left - pad:left, :] = zcol
        xpad_ref[:, :, left + W:left + W + pad, :] = zcol

    x = x_ref[...]                                        # (1, H, W, C) bf16
    xpad_ref[:, pl.ds(pad, H), pl.ds(left, W), :] = x
    xp = xpad_ref[...]                                    # bf16 halo block
    w = dww_ref[...]                                      # (K*K, C) f32

    # --- depthwise KxK conv, taps grouped per dx (one W relayout each) ---
    acc = None
    for dx in range(K):
        s = left - pad + dx
        xc = xp[:, :, s:s + W, :]
        col = None
        for dy in range(K):
            t = xc[:, dy:dy + H].astype(jnp.float32) * w[dy * K + dx, :]
            col = t if col is None else col + t
        acc = col if acc is None else acc + col

    z = acc + dwb_ref[0, :]
    y = _gelu(z) * dws_ref[0, :] + dwt_ref[0, :] + x.astype(jnp.float32)

    # --- fused 1x1 pointwise conv + bias + GELU + BN (weight VMEM-resident) ---
    y2 = y.reshape(H * W, C).astype(BF16)
    z2 = jnp.dot(y2, pww_ref[...],
                 preferred_element_type=jnp.float32) + pwb_ref[...]
    g2 = _gelu(z2)
    out = (g2 * pws_ref[...] + pwt_ref[...]).astype(o_ref.dtype)
    o_ref[...] = out.reshape(1, H, W, C)


def mixer_block(x, dw_w, dw_b, dw_s, dw_t, pw_w, pw_b, pw_s, pw_t, ksize):
    B, H, W, Cp = x.shape
    pad = ksize // 2
    left = _round_up(max(pad, 1), 8)                      # aligned interior store
    kernel = functools.partial(_block_kernel, K=ksize, H=H, W=W, left=left)
    full = lambda bb: (0, 0)
    bmap = lambda bb: (bb, 0, 0, 0)
    return pl.pallas_call(
        kernel,
        out_shape=jax.ShapeDtypeStruct((B, H, W, Cp), x.dtype),
        grid_spec=pltpu.PrefetchScalarGridSpec(
            num_scalar_prefetch=0,
            grid=(B,),
            in_specs=[
                pl.BlockSpec((1, H, W, Cp), bmap),
                pl.BlockSpec((ksize * ksize, Cp), full),
                pl.BlockSpec((1, Cp), full),
                pl.BlockSpec((1, Cp), full),
                pl.BlockSpec((1, Cp), full),
                pl.BlockSpec((Cp, Cp), full),
                pl.BlockSpec((1, Cp), full),
                pl.BlockSpec((1, Cp), full),
                pl.BlockSpec((1, Cp), full),
            ],
            out_specs=pl.BlockSpec((1, H, W, Cp), bmap),
            scratch_shapes=[
                pltpu.VMEM((1, H + 2 * pad, left + W + pad, Cp), BF16)],
        ),
        compiler_params=pltpu.CompilerParams(
            dimension_semantics=("parallel",),
            vmem_limit_bytes=_VMEM_LIMIT),
    )(x, dw_w,
      dw_b.reshape(1, Cp).astype(F32),
      dw_s.reshape(1, Cp).astype(F32),
      dw_t.reshape(1, Cp).astype(F32),
      pw_w,
      pw_b.reshape(1, Cp).astype(F32),
      pw_s.reshape(1, Cp).astype(F32),
      pw_t.reshape(1, Cp).astype(F32))


# --------------------------------------------------------------------------
# Kernel C: global average pool + Linear classifier, tiled over the sequence
# axis with a (B, Cp) f32 running-sum scratch (never needs the whole
# activation in VMEM).  Classes are padded to 128, sliced in the wrapper.
# --------------------------------------------------------------------------
def _head_kernel(x_ref, w_ref, b_ref, o_ref, sum_ref, *, inv_s):
    @pl.when(pl.program_id(0) == 0)
    def _init():
        sum_ref[...] = jnp.zeros_like(sum_ref)

    sum_ref[...] += jnp.sum(x_ref[...].astype(jnp.float32), axis=1)

    @pl.when(pl.program_id(0) == pl.num_programs(0) - 1)
    def _finalize():
        xm = (sum_ref[...] * inv_s).astype(BF16)
        o_ref[...] = jnp.dot(xm, w_ref[...],
                             preferred_element_type=jnp.float32) + b_ref[...]


def _pick_seq_tile(S, B, Cp, budget_bytes=2 << 20):
    row_bytes = max(1, B * Cp * 2)          # bf16 bytes per sequence position
    limit = max(8, budget_bytes // row_bytes)
    if S <= limit:
        return S
    best = 0
    for d in range(8, int(min(S, limit)) + 1, 8):
        if S % d == 0:
            best = d
    return best if best else S


def head(x, w, b):
    B, S, Cp = x.shape
    Ncp = w.shape[1]
    ts = _pick_seq_tile(S, B, Cp)
    kernel = functools.partial(_head_kernel, inv_s=1.0 / S)
    full = lambda si: (0, 0)
    return pl.pallas_call(
        kernel,
        out_shape=jax.ShapeDtypeStruct((B, Ncp), F32),
        grid_spec=pltpu.PrefetchScalarGridSpec(
            num_scalar_prefetch=0,
            grid=(S // ts,),
            in_specs=[
                pl.BlockSpec((B, ts, Cp), lambda si: (0, si, 0)),
                pl.BlockSpec((Cp, Ncp), full),
                pl.BlockSpec((1, Ncp), full),
            ],
            out_specs=pl.BlockSpec((B, Ncp), full),
            scratch_shapes=[pltpu.VMEM((B, Cp), jnp.float32)],
        ),
        compiler_params=pltpu.CompilerParams(
            dimension_semantics=("arbitrary",),
            vmem_limit_bytes=_VMEM_LIMIT),
    )(x, w, b.reshape(1, Ncp).astype(F32))


# --------------------------------------------------------------------------
# Full forward pass
# --------------------------------------------------------------------------
def conv_mixer_forward(x_nchw, params, *, patch_size, kernel_size, n_layers,
                       num_classes):
    B, Cin, H, W = x_nchw.shape
    p = patch_size
    Hp, Wp = H // p, W // p
    Kin, Cp = params["patch_w"].shape       # padded im2col-K / padded hidden

    # ---- patch embedding: Conv2d(k=p, stride=p) as im2col + fused GEMM ----
    x = jnp.transpose(x_nchw, (0, 2, 3, 1))                 # B,H,W,Cin
    x = x.reshape(B, Hp, p, Wp, p, Cin)
    x = jnp.transpose(x, (0, 1, 3, 2, 4, 5))                # B,Hp,Wp,p,p,Cin
    x = x.reshape(B * Hp * Wp, p * p * Cin)
    if x.shape[1] != Kin:                                   # pad contraction to 128
        x = jnp.pad(x, ((0, 0), (0, Kin - x.shape[1])))
    x = mm_gelu_bn(x.astype(BF16), params["patch_w"], params["patch_b"],
                   params["bn0_scale"], params["bn0_shift"])
    x = x.reshape(B, Hp, Wp, Cp)

    # ---- mixer blocks: depthwise + pointwise fused in a single kernel ----
    # (depthwise sublayer weights/BN shared across all blocks, as in PyTorch)
    for i in range(n_layers):
        x = mixer_block(x, params["dw_w"], params["dw_b"],
                        params["dw_bn_scale"], params["dw_bn_shift"],
                        params["pw_w"][i], params["pw_b"][i],
                        params["pw_bn_scale"][i], params["pw_bn_shift"][i],
                        kernel_size)

    # ---- global average pool + classifier ----
    logits = head(x.reshape(B, Hp * Wp, Cp), params["cls_w"], params["cls_b"])
    return logits[:, :num_classes]


# --------------------------------------------------------------------------
# Deterministic parameter initialisation (channel dims padded to 128)
# --------------------------------------------------------------------------
def _pad1(v, n):
    return jnp.pad(v, (0, n - v.shape[0]))


def _pad2(m, r, c):
    return jnp.pad(m, ((0, r - m.shape[0]), (0, c - m.shape[1])))


def _bn_affine(key, n, n_pad, eps=1e-5):
    kg, kb, km, kv = jax.random.split(key, 4)
    gamma = 1.0 + 0.1 * jax.random.normal(kg, (n,), F32)
    beta = 0.1 * jax.random.normal(kb, (n,), F32)
    mean = 0.1 * jax.random.normal(km, (n,), F32)
    var = 1.0 + 0.1 * jax.random.uniform(kv, (n,), F32)
    scale = gamma / jnp.sqrt(var + eps)
    shift = beta - mean * scale
    # padded channels get scale = shift = 0 so they stay exactly zero downstream
    return _pad1(scale, n_pad), _pad1(shift, n_pad)


def init_params(key, in_channels, hidden, n_layers, ksize, patch, num_classes):
    Cp = _round_up(hidden, 128)
    Kin = _round_up(patch * patch * in_channels, 128)
    Ncp = _round_up(num_classes, 128)
    keys = jax.random.split(key, 8 + 2 * n_layers)
    params = {}

    pw = 0.1 * jax.random.normal(keys[0],
                                 (patch * patch * in_channels, hidden), F32)
    params["patch_w"] = _pad2(pw, Kin, Cp).astype(BF16)
    params["patch_b"] = _pad1(0.1 * jax.random.normal(keys[1], (hidden,), F32), Cp)
    params["bn0_scale"], params["bn0_shift"] = _bn_affine(keys[2], hidden, Cp)

    # shared depthwise sublayer (single nn.Module instance in the PyTorch code)
    dw = 0.1 * jax.random.normal(keys[3], (ksize * ksize, hidden), F32)
    params["dw_w"] = _pad2(dw, ksize * ksize, Cp)                        # f32
    params["dw_b"] = _pad1(0.1 * jax.random.normal(keys[4], (hidden,), F32), Cp)
    params["dw_bn_scale"], params["dw_bn_shift"] = _bn_affine(keys[5], hidden, Cp)

    pw_w, pw_b, pw_s, pw_t = [], [], [], []
    for i in range(n_layers):
        kconv, kbn = keys[6 + 2 * i], keys[7 + 2 * i]
        kw, kb = jax.random.split(kconv, 2)
        w = 0.1 * jax.random.normal(kw, (hidden, hidden), F32)
        pw_w.append(_pad2(w, Cp, Cp).astype(BF16))
        pw_b.append(_pad1(0.1 * jax.random.normal(kb, (hidden,), F32), Cp))
        s, t = _bn_affine(kbn, hidden, Cp)
        pw_s.append(s)
        pw_t.append(t)
    # per-layer tuples (not stacked) so the wrapper never dynamic-slices weights
    params["pw_w"] = tuple(pw_w)
    params["pw_b"] = tuple(pw_b)
    params["pw_bn_scale"] = tuple(pw_s)
    params["pw_bn_shift"] = tuple(pw_t)

    kcw, kcb = jax.random.split(keys[6 + 2 * n_layers], 2)
    cw = 0.1 * jax.random.normal(kcw, (hidden, num_classes), F32)
    params["cls_w"] = _pad2(cw, Cp, Ncp).astype(BF16)
    params["cls_b"] = _pad1(0.1 * jax.random.normal(kcb, (num_classes,), F32), Ncp)
    return params


# --------------------------------------------------------------------------
if __name__ == "__main__":
    B, Cin, H, W = 2, 4, 16, 16
    hidden, n_layers = 32, 2
    ksize, patch, num_classes = 5, 2, 10

    key = jax.random.PRNGKey(0)
    kx, kp = jax.random.split(key)
    x = jax.random.normal(kx, (B, Cin, H, W), F32)          # NCHW like PyTorch
    params = init_params(kp, Cin, hidden, n_layers, ksize, patch, num_classes)

    fwd = jax.jit(functools.partial(conv_mixer_forward,
                                    patch_size=patch,
                                    kernel_size=ksize,
                                    n_layers=n_layers,
                                    num_classes=num_classes))
    out = fwd(x, params)
    jax.block_until_ready(out)
    assert out.shape == (B, num_classes), out.shape
    assert bool(jnp.all(jnp.isfinite(out))), "non-finite output"
    print("KERNEL_OK")
</pallas_src>

<mosaic_0001>
module attributes {stable_mosaic.version = 11 : i64} {
  func.func @_mm_resident_kernel(%arg0: i32, %arg1: memref<128x128xbf16, #tpu.memory_space<vmem>>, %arg2: memref<128x128xbf16, #tpu.memory_space<vmem>>, %arg3: memref<1x128xf32, #tpu.memory_space<vmem>>, %arg4: memref<1x128xf32, #tpu.memory_space<vmem>>, %arg5: memref<1x128xf32, #tpu.memory_space<vmem>>, %arg6: memref<128x128xbf16, #tpu.memory_space<vmem>>) attributes {dimension_semantics = [#tpu.dimension_semantics<parallel>], iteration_bounds = array<i64: 1>, scalar_prefetch = 0 : i64, scratch_operands = 0 : i64, tpu.core_type = #tpu.core_type<tc>, window_params = [{transform_indices = @transform_0, window_bounds = array<i64: 128, 128>}, {pipeline_mode = #tpu.pipeline_mode<synchronous>, transform_indices = @transform_1, window_bounds = array<i64: 128, 128>}, {pipeline_mode = #tpu.pipeline_mode<synchronous>, transform_indices = @transform_2, window_bounds = array<i64: 1, 128>}, {pipeline_mode = #tpu.pipeline_mode<synchronous>, transform_indices = @transform_3, window_bounds = array<i64: 1, 128>}, {pipeline_mode = #tpu.pipeline_mode<synchronous>, transform_indices = @transform_4, window_bounds = array<i64: 1, 128>}, {transform_indices = @transform_5, window_bounds = array<i64: 128, 128>}]} {
    %c0 = arith.constant 0 : index
    %c0_0 = arith.constant 0 : index
    %0 = vector.load %arg1[%c0, %c0_0] : memref<128x128xbf16, #tpu.memory_space<vmem>>, vector<128x128xbf16>
    %c0_1 = arith.constant 0 : index
    %c0_2 = arith.constant 0 : index
    %1 = vector.load %arg2[%c0_1, %c0_2] : memref<128x128xbf16, #tpu.memory_space<vmem>>, vector<128x128xbf16>
    %cst = arith.constant dense<0.000000e+00> : vector<128x128xf32>
    %2 = tpu.matmul %0, %1, %cst {dimension_numbers = #tpu.dot_dimension_numbers<[1], [0], [0], [1], [0, 0, 1, 1], [], []>} : vector<128x128xbf16>, vector<128x128xbf16>, vector<128x128xf32> -> vector<128x128xf32>
    %c0_3 = arith.constant 0 : index
    %c0_4 = arith.constant 0 : index
    %3 = vector.load %arg3[%c0_3, %c0_4] : memref<1x128xf32, #tpu.memory_space<vmem>>, vector<1x128xf32>
    %4 = vector.broadcast %3 : vector<1x128xf32> to vector<128x128xf32>
    %5 = arith.addf %2, %4 : vector<128x128xf32>
    %cst_5 = arith.constant 5.000000e-01 : f32
    %6 = vector.broadcast %cst_5 : f32 to vector<128x128xf32>
    %7 = arith.mulf %6, %5 : vector<128x128xf32>
    %cst_6 = arith.constant 4.471500e-02 : f32
    %8 = vector.broadcast %cst_6 : f32 to vector<128x128xf32>
    %9 = arith.mulf %8, %5 : vector<128x128xf32>
    %10 = arith.mulf %9, %5 : vector<128x128xf32>
    %11 = arith.mulf %10, %5 : vector<128x128xf32>
    %12 = arith.addf %5, %11 : vector<128x128xf32>
    %cst_7 = arith.constant 0.797884583 : f32
    %13 = vector.broadcast %cst_7 : f32 to vector<128x128xf32>
    %14 = arith.mulf %13, %12 : vector<128x128xf32>
    %15 = math.tanh %14 : vector<128x128xf32>
    %cst_8 = arith.constant 1.000000e+00 : f32
    %16 = vector.broadcast %cst_8 : f32 to vector<128x128xf32>
    %17 = arith.addf %16, %15 : vector<128x128xf32>
    %18 = arith.mulf %7, %17 : vector<128x128xf32>
    %c0_9 = arith.constant 0 : index
    %c0_10 = arith.constant 0 : index
    %19 = vector.load %arg4[%c0_9, %c0_10] : memref<1x128xf32, #tpu.memory_space<vmem>>, vector<1x128xf32>
    %20 = vector.broadcast %19 : vector<1x128xf32> to vector<128x128xf32>
    %21 = arith.mulf %18, %20 : vector<128x128xf32>
    %c0_11 = arith.constant 0 : index
    %c0_12 = arith.constant 0 : index
    %22 = vector.load %arg5[%c0_11, %c0_12] : memref<1x128xf32, #tpu.memory_space<vmem>>, vector<1x128xf32>
    %23 = vector.broadcast %22 : vector<1x128xf32> to vector<128x128xf32>
    %24 = arith.addf %21, %23 : vector<128x128xf32>
    %25 = arith.truncf %24 : vector<128x128xf32> to vector<128x128xbf16>
    %c0_13 = arith.constant 0 : index
    %c0_14 = arith.constant 0 : index
    %26 = vector.load %arg6[%c0_13, %c0_14] : memref<128x128xbf16, #tpu.memory_space<vmem>>, vector<128x128xbf16>
    tpu.vector_store %arg6[%c0_13, %c0_14], %25 {strides = array<i32>} : memref<128x128xbf16, #tpu.memory_space<vmem>>, vector<128x128xbf16>,
    return
  }
  func.func @transform_0(%arg0: i32) -> (i32, i32) {
    %c0_i32 = arith.constant 0 : i32
    %c0_i32_0 = arith.constant 0 : i32
    return %arg0, %c0_i32 : i32, i32
  }
  func.func @transform_1(%arg0: i32) -> (i32, i32) {
    %c0_i32 = arith.constant 0 : i32
    %c0_i32_0 = arith.constant 0 : i32
    %c0_i32_1 = arith.constant 0 : i32
    return %c0_i32, %c0_i32_0 : i32, i32
  }
  func.func @transform_2(%arg0: i32) -> (i32, i32) {
    %c0_i32 = arith.constant 0 : i32
    %c0_i32_0 = arith.constant 0 : i32
    %c0_i32_1 = arith.constant 0 : i32
    return %c0_i32, %c0_i32_0 : i32, i32
  }
  func.func @transform_3(%arg0: i32) -> (i32, i32) {
    %c0_i32 = arith.constant 0 : i32
    %c0_i32_0 = arith.constant 0 : i32
    %c0_i32_1 = arith.constant 0 : i32
    return %c0_i32, %c0_i32_0 : i32, i32
  }
  func.func @transform_4(%arg0: i32) -> (i32, i32) {
    %c0_i32 = arith.constant 0 : i32
    %c0_i32_0 = arith.constant 0 : i32
    %c0_i32_1 = arith.constant 0 : i32
    return %c0_i32, %c0_i32_0 : i32, i32
  }
  func.func @transform_5(%arg0: i32) -> (i32, i32) {
    %c0_i32 = arith.constant 0 : i32
    %c0_i32_0 = arith.constant 0 : i32
    return %arg0, %c0_i32 : i32, i32
  }
}

module attributes {stable_mosaic.version = 11 : i64} {
  func.func @_head_kernel(%arg0: i32, %arg1: memref<2x64x128xbf16, #tpu.memory_space<vmem>>, %arg2: memref<128x128xbf16, #tpu.memory_space<vmem>>, %arg3: memref<1x128xf32, #tpu.memory_space<vmem>>, %arg4: memref<2x128xf32, #tpu.memory_space<vmem>>, %arg5: memref<2x128xf32, #tpu.memory_space<vmem>>) attributes {dimension_semantics = [#tpu.dimension_semantics<arbitrary>], iteration_bounds = array<i64: 1>, scalar_prefetch = 0 : i64, scratch_operands = 1 : i64, tpu.core_type = #tpu.core_type<tc>, window_params = [{transform_indices = @transform_0, window_bounds = array<i64: 2, 64, 128>}, {pipeline_mode = #tpu.pipeline_mode<synchronous>, transform_indices = @transform_1, window_bounds = array<i64: 128, 128>}, {pipeline_mode = #tpu.pipeline_mode<synchronous>, transform_indices = @transform_2, window_bounds = array<i64: 1, 128>}, {pipeline_mode = #tpu.pipeline_mode<synchronous>, transform_indices = @transform_3, window_bounds = array<i64: 2, 128>}]} {
    %c0_i32 = arith.constant 0 : i32
    %0 = arith.cmpi eq, %arg0, %c0_i32 : i32
    %1 = arith.extui %0 : i1 to i32
    %c0_i32_0 = arith.constant 0 : i32
    %2 = arith.cmpi ne, %1, %c0_i32_0 : i32
    scf.if %2 {
      %cst_9 = arith.constant 0.000000e+00 : f32
      %12 = vector.broadcast %cst_9 : f32 to vector<2x128xf32>
      %c0_10 = arith.constant 0 : index
      %c0_11 = arith.constant 0 : index
      %13 = vector.load %arg5[%c0_10, %c0_11] : memref<2x128xf32, #tpu.memory_space<vmem>>, vector<2x128xf32>
      tpu.vector_store %arg5[%c0_10, %c0_11], %12 {strides = array<i32>} : memref<2x128xf32, #tpu.memory_space<vmem>>, vector<2x128xf32>,
    } else {
    }
    %c0 = arith.constant 0 : index
    %c0_1 = arith.constant 0 : index
    %3 = vector.load %arg5[%c0, %c0_1] : memref<2x128xf32, #tpu.memory_space<vmem>>, vector<2x128xf32>
    %c0_2 = arith.constant 0 : index
    %c0_3 = arith.constant 0 : index
    %c0_4 = arith.constant 0 : index
    %4 = vector.load %arg1[%c0_2, %c0_3, %c0_4] : memref<2x64x128xbf16, #tpu.memory_space<vmem>>, vector<2x64x128xbf16>
    %5 = arith.extf %4 : vector<2x64x128xbf16> to vector<2x64x128xf32>
    %cst = arith.constant dense<0.000000e+00> : vector<2x128xf32>
    %6 = vector.multi_reduction <add>, %5, %cst [1] : vector<2x64x128xf32> to vector<2x128xf32>
    %7 = arith.addf %3, %6 : vector<2x128xf32>
    %c0_5 = arith.constant 0 : index
    %c0_6 = arith.constant 0 : index
    %8 = vector.load %arg5[%c0_5, %c0_6] : memref<2x128xf32, #tpu.memory_space<vmem>>, vector<2x128xf32>
    tpu.vector_store %arg5[%c0_5, %c0_6], %7 {strides = array<i32>} : memref<2x128xf32, #tpu.memory_space<vmem>>, vector<2x128xf32>,
    %c0_i32_7 = arith.constant 0 : i32
    %9 = arith.cmpi eq, %arg0, %c0_i32_7 : i32
    %10 = arith.extui %9 : i1 to i32
    %c0_i32_8 = arith.constant 0 : i32
    %11 = arith.cmpi ne, %10, %c0_i32_8 : i32
    scf.if %11 {
      %c0_9 = arith.constant 0 : index
      %c0_10 = arith.constant 0 : index
      %12 = vector.load %arg5[%c0_9, %c0_10] : memref<2x128xf32, #tpu.memory_space<vmem>>, vector<2x128xf32>
      %cst_11 = arith.constant 1.562500e-02 : f32
      %13 = vector.broadcast %cst_11 : f32 to vector<2x128xf32>
      %14 = arith.mulf %12, %13 : vector<2x128xf32>
      %15 = arith.truncf %14 : vector<2x128xf32> to vector<2x128xbf16>
      %c0_12 = arith.constant 0 : index
      %c0_13 = arith.constant 0 : index
      %16 = vector.load %arg2[%c0_12, %c0_13] : memref<128x128xbf16, #tpu.memory_space<vmem>>, vector<128x128xbf16>
      %cst_14 = arith.constant dense<0.000000e+00> : vector<2x128xf32>
      %17 = tpu.matmul %15, %16, %cst_14 {dimension_numbers = #tpu.dot_dimension_numbers<[1], [0], [0], [1], [0, 0, 1, 1], [], []>} : vector<2x128xbf16>, vector<128x128xbf16>, vector<2x128xf32> -> vector<2x128xf32>
      %c0_15 = arith.constant 0 : index
      %c0_16 = arith.constant 0 : index
      %18 = vector.load %arg3[%c0_15, %c0_16] : memref<1x128xf32, #tpu.memory_space<vmem>>, vector<1x128xf32>
      %19 = vector.broadcast %18 : vector<1x128xf32> to vector<2x128xf32>
      %20 = arith.addf %17, %19 : vector<2x128xf32>
      %c0_17 = arith.constant 0 : index
      %c0_18 = arith.constant 0 : index
      %21 = vector.load %arg4[%c0_17, %c0_18] : memref<2x128xf32, #tpu.memory_space<vmem>>, vector<2x128xf32>
      tpu.vector_store %arg4[%c0_17, %c0_18], %20 {strides = array<i32>} : memref<2x128xf32, #tpu.memory_space<vmem>>, vector<2x128xf32>,
    } else {
    }
    return
  }
  func.func @transform_0(%arg0: i32) -> (i32, i32, i32) {
    %c0_i32 = arith.constant 0 : i32
    %c0_i32_0 = arith.constant 0 : i32
    %c0_i32_1 = arith.constant 0 : i32
    return %c0_i32, %arg0, %c0_i32_0 : i32, i32, i32
  }
  func.func @transform_1(%arg0: i32) -> (i32, i32) {
    %c0_i32 = arith.constant 0 : i32
    %c0_i32_0 = arith.constant 0 : i32
    %c0_i32_1 = arith.constant 0 : i32
    return %c0_i32, %c0_i32_0 : i32, i32
  }
  func.func @transform_2(%arg0: i32) -> (i32, i32) {
    %c0_i32 = arith.constant 0 : i32
    %c0_i32_0 = arith.constant 0 : i32
    %c0_i32_1 = arith.constant 0 : i32
    return %c0_i32, %c0_i32_0 : i32, i32
  }
  func.func @transform_3(%arg0: i32) -> (i32, i32) {
    %c0_i32 = arith.constant 0 : i32
    %c0_i32_0 = arith.constant 0 : i32
    %c0_i32_1 = arith.constant 0 : i32
    return %c0_i32, %c0_i32_0 : i32, i32
  }
}

module attributes {stable_mosaic.version = 11 : i64} {
  func.func @_block_kernel(%arg0: i32, %arg1: memref<1x8x8x128xbf16, #tpu.memory_space<vmem>>, %arg2: memref<25x128xf32, #tpu.memory_space<vmem>>, %arg3: memref<1x128xf32, #tpu.memory_space<vmem>>, %arg4: memref<1x128xf32, #tpu.memory_space<vmem>>, %arg5: memref<1x128xf32, #tpu.memory_space<vmem>>, %arg6: memref<128x128xbf16, #tpu.memory_space<vmem>>, %arg7: memref<1x128xf32, #tpu.memory_space<vmem>>, %arg8: memref<1x128xf32, #tpu.memory_space<vmem>>, %arg9: memref<1x128xf32, #tpu.memory_space<vmem>>, %arg10: memref<1x8x8x128xbf16, #tpu.memory_space<vmem>>, %arg11: memref<1x12x18x128xbf16, #tpu.memory_space<vmem>>) attributes {dimension_semantics = [#tpu.dimension_semantics<parallel>], iteration_bounds = array<i64: 2>, scalar_prefetch = 0 : i64, scratch_operands = 1 : i64, tpu.core_type = #tpu.core_type<tc>, window_params = [{transform_indices = @transform_0, window_bounds = array<i64: 1, 8, 8, 128>}, {pipeline_mode = #tpu.pipeline_mode<synchronous>, transform_indices = @transform_1, window_bounds = array<i64: 25, 128>}, {pipeline_mode = #tpu.pipeline_mode<synchronous>, transform_indices = @transform_2, window_bounds = array<i64: 1, 128>}, {pipeline_mode = #tpu.pipeline_mode<synchronous>, transform_indices = @transform_3, window_bounds = array<i64: 1, 128>}, {pipeline_mode = #tpu.pipeline_mode<synchronous>, transform_indices = @transform_4, window_bounds = array<i64: 1, 128>}, {pipeline_mode = #tpu.pipeline_mode<synchronous>, transform_indices = @transform_5, window_bounds = array<i64: 128, 128>}, {pipeline_mode = #tpu.pipeline_mode<synchronous>, transform_indices = @transform_6, window_bounds = array<i64: 1, 128>}, {pipeline_mode = #tpu.pipeline_mode<synchronous>, transform_indices = @transform_7, window_bounds = array<i64: 1, 128>}, {pipeline_mode = #tpu.pipeline_mode<synchronous>, transform_indices = @transform_8, window_bounds = array<i64: 1, 128>}, {transform_indices = @transform_9, window_bounds = array<i64: 1, 8, 8, 128>}]} {
    %cst = arith.constant 0.000000e+00 : bf16
    %0 = vector.broadcast %cst : bf16 to vector<1x2x18x128xbf16>
    %c0 = arith.constant 0 : index
    %c0_0 = arith.constant 0 : index
    %c0_1 = arith.constant 0 : index
    %c0_2 = arith.constant 0 : index
    %1 = vector.load %arg11[%c0, %c0_0, %c0_1, %c0_2] : memref<1x12x18x128xbf16, #tpu.memory_space<vmem>>, vector<1x2x18x128xbf16>
    tpu.vector_store %arg11[%c0, %c0_0, %c0_1, %c0_2], %0 {strides = array<i32>} : memref<1x12x18x128xbf16, #tpu.memory_space<vmem>>, vector<1x2x18x128xbf16>,
    %c0_3 = arith.constant 0 : index
    %c10 = arith.constant 10 : index
    %c0_4 = arith.constant 0 : index
    %c0_5 = arith.constant 0 : index
    %2 = vector.load %arg11[%c0_3, %c10, %c0_4, %c0_5] : memref<1x12x18x128xbf16, #tpu.memory_space<vmem>>, vector<1x2x18x128xbf16>
    tpu.vector_store %arg11[%c0_3, %c10, %c0_4, %c0_5], %0 {strides = array<i32>} : memref<1x12x18x128xbf16, #tpu.memory_space<vmem>>, vector<1x2x18x128xbf16>,
    %cst_6 = arith.constant 0.000000e+00 : bf16
    %3 = vector.broadcast %cst_6 : bf16 to vector<1x12x2x128xbf16>
    %c0_7 = arith.constant 0 : index
    %c0_8 = arith.constant 0 : index
    %c6 = arith.constant 6 : index
    %c0_9 = arith.constant 0 : index
    %4 = vector.load %arg11[%c0_7, %c0_8, %c6, %c0_9] : memref<1x12x18x128xbf16, #tpu.memory_space<vmem>>, vector<1x12x2x128xbf16>
    tpu.vector_store %arg11[%c0_7, %c0_8, %c6, %c0_9], %3 {strides = array<i32>} : memref<1x12x18x128xbf16, #tpu.memory_space<vmem>>, vector<1x12x2x128xbf16>,
    %c0_10 = arith.constant 0 : index
    %c0_11 = arith.constant 0 : index
    %c16 = arith.constant 16 : index
    %c0_12 = arith.constant 0 : index
    %5 = vector.load %arg11[%c0_10, %c0_11, %c16, %c0_12] : memref<1x12x18x128xbf16, #tpu.memory_space<vmem>>, vector<1x12x2x128xbf16>
    tpu.vector_store %arg11[%c0_10, %c0_11, %c16, %c0_12], %3 {strides = array<i32>} : memref<1x12x18x128xbf16, #tpu.memory_space<vmem>>, vector<1x12x2x128xbf16>,
    %c0_13 = arith.constant 0 : index
    %c0_14 = arith.constant 0 : index
    %c0_15 = arith.constant 0 : index
    %c0_16 = arith.constant 0 : index
    %6 = vector.load %arg1[%c0_13, %c0_14, %c0_15, %c0_16] : memref<1x8x8x128xbf16, #tpu.memory_space<vmem>>, vector<1x8x8x128xbf16>
    %c0_17 = arith.constant 0 : index
    %c2 = arith.constant 2 : index
    %c8 = arith.constant 8 : index
    %c0_18 = arith.constant 0 : index
    %7 = vector.load %arg11[%c0_17, %c2, %c8, %c0_18] : memref<1x12x18x128xbf16, #tpu.memory_space<vmem>>, vector<1x8x8x128xbf16>
    tpu.vector_store %arg11[%c0_17, %c2, %c8, %c0_18], %6 {strides = array<i32>} : memref<1x12x18x128xbf16, #tpu.memory_space<vmem>>, vector<1x8x8x128xbf16>,
    %c0_19 = arith.constant 0 : index
    %c0_20 = arith.constant 0 : index
    %c0_21 = arith.constant 0 : index
    %c0_22 = arith.constant 0 : index
    %8 = vector.load %arg11[%c0_19, %c0_20, %c0_21, %c0_22] : memref<1x12x18x128xbf16, #tpu.memory_space<vmem>>, vector<1x12x18x128xbf16>
    %c0_23 = arith.constant 0 : index
    %c0_24 = arith.constant 0 : index
    %9 = vector.load %arg2[%c0_23, %c0_24] : memref<25x128xf32, #tpu.memory_space<vmem>>, vector<25x128xf32>
    %10 = vector.extract_strided_slice %8 {offsets = [0, 0, 6, 0], sizes = [1, 12, 8, 128], strides = [1, 1, 1, 1]} : vector<1x12x18x128xbf16> to vector<1x12x8x128xbf16>
    %11 = vector.extract_strided_slice %10 {offsets = [0, 0, 0, 0], sizes = [1, 8, 8, 128], strides = [1, 1, 1, 1]} : vector<1x12x8x128xbf16> to vector<1x8x8x128xbf16>
    %12 = arith.extf %11 : vector<1x8x8x128xbf16> to vector<1x8x8x128xf32>
    %13 = vector.extract_strided_slice %9 {offsets = [0, 0], sizes = [1, 128], strides = [1, 1]} : vector<25x128xf32> to vector<1x128xf32>
    %14 = vector.shape_cast %13 : vector<1x128xf32> to vector<128xf32>
    %15 = vector.shape_cast %14 : vector<128xf32> to vector<1x1x1x128xf32>
    %16 = vector.broadcast %15 : vector<1x1x1x128xf32> to vector<1x8x8x128xf32>
    %17 = arith.mulf %12, %16 : vector<1x8x8x128xf32>
    %18 = vector.extract_strided_slice %10 {offsets = [0, 1, 0, 0], sizes = [1, 8, 8, 128], strides = [1, 1, 1, 1]} : vector<1x12x8x128xbf16> to vector<1x8x8x128xbf16>
    %19 = arith.extf %18 : vector<1x8x8x128xbf16> to vector<1x8x8x128xf32>
    %20 = vector.extract_strided_slice %9 {offsets = [5, 0], sizes = [1, 128], strides = [1, 1]} : vector<25x128xf32> to vector<1x128xf32>
    %21 = vector.shape_cast %20 : vector<1x128xf32> to vector<128xf32>
    %22 = vector.shape_cast %21 : vector<128xf32> to vector<1x1x1x128xf32>
    %23 = vector.broadcast %22 : vector<1x1x1x128xf32> to vector<1x8x8x128xf32>
    %24 = arith.mulf %19, %23 : vector<1x8x8x128xf32>
    %25 = arith.addf %17, %24 : vector<1x8x8x128xf32>
    %26 = vector.extract_strided_slice %10 {offsets = [0, 2, 0, 0], sizes = [1, 8, 8, 128], strides = [1, 1, 1, 1]} : vector<1x12x8x128xbf16> to vector<1x8x8x128xbf16>
    %27 = arith.extf %26 : vector<1x8x8x128xbf16> to vector<1x8x8x128xf32>
    %28 = vector.extract_strided_slice %9 {offsets = [10, 0], sizes = [1, 128], strides = [1, 1]} : vector<25x128xf32> to vector<1x128xf32>
    %29 = vector.shape_cast %28 : vector<1x128xf32> to vector<128xf32>
    %30 = vector.shape_cast %29 : vector<128xf32> to vector<1x1x1x128xf32>
    %31 = vector.broadcast %30 : vector<1x1x1x128xf32> to vector<1x8x8x128xf32>
    %32 = arith.mulf %27, %31 : vector<1x8x8x128xf32>
    %33 = arith.addf %25, %32 : vector<1x8x8x128xf32>
    %34 = vector.extract_strided_slice %10 {offsets = [0, 3, 0, 0], sizes = [1, 8, 8, 128], strides = [1, 1, 1, 1]} : vector<1x12x8x128xbf16> to vector<1x8x8x128xbf16>
    %35 = arith.extf %34 : vector<1x8x8x128xbf16> to vector<1x8x8x128xf32>
    %36 = vector.extract_strided_slice %9 {offsets = [15, 0], sizes = [1, 128], strides = [1, 1]} : vector<25x128xf32> to vector<1x128xf32>
    %37 = vector.shape_cast %36 : vector<1x128xf32> to vector<128xf32>
    %38 = vector.shape_cast %37 : vector<128xf32> to vector<1x1x1x128xf32>
    %39 = vector.broadcast %38 : vector<1x1x1x128xf32> to vector<1x8x8x128xf32>
    %40 = arith.mulf %35, %39 : vector<1x8x8x128xf32>
    %41 = arith.addf %33, %40 : vector<1x8x8x128xf32>
    %42 = vector.extract_strided_slice %10 {offsets = [0, 4, 0, 0], sizes = [1, 8, 8, 128], strides = [1, 1, 1, 1]} : vector<1x12x8x128xbf16> to vector<1x8x8x128xbf16>
    %43 = arith.extf %42 : vector<1x8x8x128xbf16> to vector<1x8x8x128xf32>
    %44 = vector.extract_strided_slice %9 {offsets = [20, 0], sizes = [1, 128], strides = [1, 1]} : vector<25x128xf32> to vector<1x128xf32>
    %45 = vector.shape_cast %44 : vector<1x128xf32> to vector<128xf32>
    %46 = vector.shape_cast %45 : vector<128xf32> to vector<1x1x1x128xf32>
    %47 = vector.broadcast %46 : vector<1x1x1x128xf32> to vector<1x8x8x128xf32>
    %48 = arith.mulf %43, %47 : vector<1x8x8x128xf32>
    %49 = arith.addf %41, %48 : vector<1x8x8x128xf32>
    %50 = vector.extract_strided_slice %8 {offsets = [0, 0, 7, 0], sizes = [1, 12, 8, 128], strides = [1, 1, 1, 1]} : vector<1x12x18x128xbf16> to vector<1x12x8x128xbf16>
    %51 = vector.extract_strided_slice %50 {offsets = [0, 0, 0, 0], sizes = [1, 8, 8, 128], strides = [1, 1, 1, 1]} : vector<1x12x8x128xbf16> to vector<1x8x8x128xbf16>
    %52 = arith.extf %51 : vector<1x8x8x128xbf16> to vector<1x8x8x128xf32>
    %53 = vector.extract_strided_slice %9 {offsets = [1, 0], sizes = [1, 128], strides = [1, 1]} : vector<25x128xf32> to vector<1x128xf32>
    %54 = vector.shape_cast %53 : vector<1x128xf32> to vector<128xf32>
    %55 = vector.shape_cast %54 : vector<128xf32> to vector<1x1x1x128xf32>
    %56 = vector.broadcast %55 : vector<1x1x1x128xf32> to vector<1x8x8x128xf32>
    %57 = arith.mulf %52, %56 : vector<1x8x8x128xf32>
    %58 = vector.extract_strided_slice %50 {offsets = [0, 1, 0, 0], sizes = [1, 8, 8, 128], strides = [1, 1, 1, 1]} : vector<1x12x8x128xbf16> to vector<1x8x8x128xbf16>
    %59 = arith.extf %58 : vector<1x8x8x128xbf16> to vector<1x8x8x128xf32>
    %60 = vector.extract_strided_slice %9 {offsets = [6, 0], sizes = [1, 128], strides = [1, 1]} : vector<25x128xf32> to vector<1x128xf32>
    %61 = vector.shape_cast %60 : vector<1x128xf32> to vector<128xf32>
    %62 = vector.shape_cast %61 : vector<128xf32> to vector<1x1x1x128xf32>
    %63 = vector.broadcast %62 : vector<1x1x1x128xf32> to vector<1x8x8x128xf32>
    %64 = arith.mulf %59, %63 : vector<1x8x8x128xf32>
    %65 = arith.addf %57, %64 : vector<1x8x8x128xf32>
    %66 = vector.extract_strided_slice %50 {offsets = [0, 2, 0, 0], sizes = [1, 8, 8, 128], strides = [1, 1, 1, 1]} : vector<1x12x8x128xbf16> to vector<1x8x8x128xbf16>
    %67 = arith.extf %66 : vector<1x8x8x128xbf16> to vector<1x8x8x128xf32>
    %68 = vector.extract_strided_slice %9 {offsets = [11, 0], sizes = [1, 128], strides = [1, 1]} : vector<25x128xf32> to vector<1x128xf32>
    %69 = vector.shape_cast %68 : vector<1x128xf32> to vector<128xf32>
    %70 = vector.shape_cast %69 : vector<128xf32> to vector<1x1x1x128xf32>
    %71 = vector.broadcast %70 : vector<1x1x1x128xf32> to vector<1x8x8x128xf32>
    %72 = arith.mulf %67, %71 : vector<1x8x8x128xf32>
    %73 = arith.addf %65, %72 : vector<1x8x8x128xf32>
    %74 = vector.extract_strided_slice %50 {offsets = [0, 3, 0, 0], sizes = [1, 8, 8, 128], strides = [1, 1, 1, 1]} : vector<1x12x8x128xbf16> to vector<1x8x8x128xbf16>
    %75 = arith.extf %74 : vector<1x8x8x128xbf16> to vector<1x8x8x128xf32>
    %76 = vector.extract_strided_slice %9 {offsets = [16, 0], sizes = [1, 128], strides = [1, 1]} : vector<25x128xf32> to vector<1x128xf32>
    %77 = vector.shape_cast %76 : vector<1x128xf32> to vector<128xf32>
    %78 = vector.shape_cast %77 : vector<128xf32> to vector<1x1x1x128xf32>
    %79 = vector.broadcast %78 : vector<1x1x1x128xf32> to vector<1x8x8x128xf32>
    %80 = arith.mulf %75, %79 : vector<1x8x8x128xf32>
    %81 = arith.addf %73, %80 : vector<1x8x8x128xf32>
    %82 = vector.extract_strided_slice %50 {offsets = [0, 4, 0, 0], sizes = [1, 8, 8, 128], strides = [1, 1, 1, 1]} : vector<1x12x8x128xbf16> to vector<1x8x8x128xbf16>
    %83 = arith.extf %82 : vector<1x8x8x128xbf16> to vector<1x8x8x128xf32>
    %84 = vector.extract_strided_slice %9 {offsets = [21, 0], sizes = [1, 128], strides = [1, 1]} : vector<25x128xf32> to vector<1x128xf32>
    %85 = vector.shape_cast %84 : vector<1x128xf32> to vector<128xf32>
    %86 = vector.shape_cast %85 : vector<128xf32> to vector<1x1x1x128xf32>
    %87 = vector.broadcast %86 : vector<1x1x1x128xf32> to vector<1x8x8x128xf32>
    %88 = arith.mulf %83, %87 : vector<1x8x8x128xf32>
    %89 = arith.addf %81, %88 : vector<1x8x8x128xf32>
    %90 = arith.addf %49, %89 : vector<1x8x8x128xf32>
    %91 = vector.extract_strided_slice %8 {offsets = [0, 0, 8, 0], sizes = [1, 12, 8, 128], strides = [1, 1, 1, 1]} : vector<1x12x18x128xbf16> to vector<1x12x8x128xbf16>
    %92 = vector.extract_strided_slice %91 {offsets = [0, 0, 0, 0], sizes = [1, 8, 8, 128], strides = [1, 1, 1, 1]} : vector<1x12x8x128xbf16> to vector<1x8x8x128xbf16>
    %93 = arith.extf %92 : vector<1x8x8x128xbf16> to vector<1x8x8x128xf32>
    %94 = vector.extract_strided_slice %9 {offsets = [2, 0], sizes = [1, 128], strides = [1, 1]} : vector<25x128xf32> to vector<1x128xf32>
    %95 = vector.shape_cast %94 : vector<1x128xf32> to vector<128xf32>
    %96 = vector.shape_cast %95 : vector<128xf32> to vector<1x1x1x128xf32>
    %97 = vector.broadcast %96 : vector<1x1x1x128xf32> to vector<1x8x8x128xf32>
    %98 = arith.mulf %93, %97 : vector<1x8x8x128xf32>
    %99 = vector.extract_strided_slice %91 {offsets = [0, 1, 0, 0], sizes = [1, 8, 8, 128], strides = [1, 1, 1, 1]} : vector<1x12x8x128xbf16> to vector<1x8x8x128xbf16>
    %100 = arith.extf %99 : vector<1x8x8x128xbf16> to vector<1x8x8x128xf32>
    %101 = vector.extract_strided_slice %9 {offsets = [7, 0], sizes = [1, 128], strides = [1, 1]} : vector<25x128xf32> to vector<1x128xf32>
    %102 = vector.shape_cast %101 : vector<1x128xf32> to vector<128xf32>
    %103 = vector.shape_cast %102 : vector<128xf32> to vector<1x1x1x128xf32>
    %104 = vector.broadcast %103 : vector<1x1x1x128xf32> to vector<1x8x8x128xf32>
    %105 = arith.mulf %100, %104 : vector<1x8x8x128xf32>
    %106 = arith.addf %98, %105 : vector<1x8x8x128xf32>
    %107 = vector.extract_strided_slice %91 {offsets = [0, 2, 0, 0], sizes = [1, 8, 8, 128], strides = [1, 1, 1, 1]} : vector<1x12x8x128xbf16> to vector<1x8x8x128xbf16>
    %108 = arith.extf %107 : vector<1x8x8x128xbf16> to vector<1x8x8x128xf32>
    %109 = vector.extract_strided_slice %9 {offsets = [12, 0], sizes = [1, 128], strides = [1, 1]} : vector<25x128xf32> to vector<1x128xf32>
    %110 = vector.shape_cast %109 : vector<1x128xf32> to vector<128xf32>
    %111 = vector.shape_cast %110 : vector<128xf32> to vector<1x1x1x128xf32>
    %112 = vector.broadcast %111 : vector<1x1x1x128xf32> to vector<1x8x8x128xf32>
    %113 = arith.mulf %108, %112 : vector<1x8x8x128xf32>
    %114 = arith.addf %106, %113 : vector<1x8x8x128xf32>
    %115 = vector.extract_strided_slice %91 {offsets = [0, 3, 0, 0], sizes = [1, 8, 8, 128], strides = [1, 1, 1, 1]} : vector<1x12x8x128xbf16> to vector<1x8x8x128xbf16>
    %116 = arith.extf %115 : vector<1x8x8x128xbf16> to vector<1x8x8x128xf32>
    %117 = vector.extract_strided_slice %9 {offsets = [17, 0], sizes = [1, 128], strides = [1, 1]} : vector<25x128xf32> to vector<1x128xf32>
    %118 = vector.shape_cast %117 : vector<1x128xf32> to vector<128xf32>
    %119 = vector.shape_cast %118 : vector<128xf32> to vector<1x1x1x128xf32>
    %120 = vector.broadcast %119 : vector<1x1x1x128xf32> to vector<1x8x8x128xf32>
    %121 = arith.mulf %116, %120 : vector<1x8x8x128xf32>
    %122 = arith.addf %114, %121 : vector<1x8x8x128xf32>
    %123 = vector.extract_strided_slice %91 {offsets = [0, 4, 0, 0], sizes = [1, 8, 8, 128], strides = [1, 1, 1, 1]} : vector<1x12x8x128xbf16> to vector<1x8x8x128xbf16>
    %124 = arith.extf %123 : vector<1x8x8x128xbf16> to vector<1x8x8x128xf32>
    %125 = vector.extract_strided_slice %9 {offsets = [22, 0], sizes = [1, 128], strides = [1, 1]} : vector<25x128xf32> to vector<1x128xf32>
    %126 = vector.shape_cast %125 : vector<1x128xf32> to vector<128xf32>
    %127 = vector.shape_cast %126 : vector<128xf32> to vector<1x1x1x128xf32>
    %128 = vector.broadcast %127 : vector<1x1x1x128xf32> to vector<1x8x8x128xf32>
    %129 = arith.mulf %124, %128 : vector<1x8x8x128xf32>
    %130 = arith.addf %122, %129 : vector<1x8x8x128xf32>
    %131 = arith.addf %90, %130 : vector<1x8x8x128xf32>
    %132 = vector.extract_strided_slice %8 {offsets = [0, 0, 9, 0], sizes = [1, 12, 8, 128], strides = [1, 1, 1, 1]} : vector<1x12x18x128xbf16> to vector<1x12x8x128xbf16>
    %133 = vector.extract_strided_slice %132 {offsets = [0, 0, 0, 0], sizes = [1, 8, 8, 128], strides = [1, 1, 1, 1]} : vector<1x12x8x128xbf16> to vector<1x8x8x128xbf16>
    %134 = arith.extf %133 : vector<1x8x8x128xbf16> to vector<1x8x8x128xf32>
    %135 = vector.extract_strided_slice %9 {offsets = [3, 0], sizes = [1, 128], strides = [1, 1]} : vector<25x128xf32> to vector<1x128xf32>
    %136 = vector.shape_cast %135 : vector<1x128xf32> to vector<128xf32>
    %137 = vector.shape_cast %136 : vector<128xf32> to vector<1x1x1x128xf32>
    %138 = vector.broadcast %137 : vector<1x1x1x128xf32> to vector<1x8x8x128xf32>
    %139 = arith.mulf %134, %138 : vector<1x8x8x128xf32>
    %140 = vector.extract_strided_slice %132 {offsets = [0, 1, 0, 0], sizes = [1, 8, 8, 128], strides = [1, 1, 1, 1]} : vector<1x12x8x128xbf16> to vector<1x8x8x128xbf16>
    %141 = arith.extf %140 : vector<1x8x8x128xbf16> to vector<1x8x8x128xf32>
    %142 = vector.extract_strided_slice %9 {offsets = [8, 0], sizes = [1, 128], strides = [1, 1]} : vector<25x128xf32> to vector<1x128xf32>
    %143 = vector.shape_cast %142 : vector<1x128xf32> to vector<128xf32>
    %144 = vector.shape_cast %143 : vector<128xf32> to vector<1x1x1x128xf32>
    %145 = vector.broadcast %144 : vector<1x1x1x128xf32> to vector<1x8x8x128xf32>
    %146 = arith.mulf %141, %145 : vector<1x8x8x128xf32>
    %147 = arith.addf %139, %146 : vector<1x8x8x128xf32>
    %148 = vector.extract_strided_slice %132 {offsets = [0, 2, 0, 0], sizes = [1, 8, 8, 128], strides = [1, 1, 1, 1]} : vector<1x12x8x128xbf16> to vector<1x8x8x128xbf16>
    %149 = arith.extf %148 : vector<1x8x8x128xbf16> to vector<1x8x8x128xf32>
    %150 = vector.extract_strided_slice %9 {offsets = [13, 0], sizes = [1, 128], strides = [1, 1]} : vector<25x128xf32> to vector<1x128xf32>
    %151 = vector.shape_cast %150 : vector<1x128xf32> to vector<128xf32>
    %152 = vector.shape_cast %151 : vector<128xf32> to vector<1x1x1x128xf32>
    %153 = vector.broadcast %152 : vector<1x1x1x128xf32> to vector<1x8x8x128xf32>
    %154 = arith.mulf %149, %153 : vector<1x8x8x128xf32>
    %155 = arith.addf %147, %154 : vector<1x8x8x128xf32>
    %156 = vector.extract_strided_slice %132 {offsets = [0, 3, 0, 0], sizes = [1, 8, 8, 128], strides = [1, 1, 1, 1]} : vector<1x12x8x128xbf16> to vector<1x8x8x128xbf16>
    %157 = arith.extf %156 : vector<1x8x8x128xbf16> to vector<1x8x8x128xf32>
    %158 = vector.extract_strided_slice %9 {offsets = [18, 0], sizes = [1, 128], strides = [1, 1]} : vector<25x128xf32> to vector<1x128xf32>
    %159 = vector.shape_cast %158 : vector<1x128xf32> to vector<128xf32>
    %160 = vector.shape_cast %159 : vector<128xf32> to vector<1x1x1x128xf32>
    %161 = vector.broadcast %160 : vector<1x1x1x128xf32> to vector<1x8x8x128xf32>
    %162 = arith.mulf %157, %161 : vector<1x8x8x128xf32>
    %163 = arith.addf %155, %162 : vector<1x8x8x128xf32>
    %164 = vector.extract_strided_slice %132 {offsets = [0, 4, 0, 0], sizes = [1, 8, 8, 128], strides = [1, 1, 1, 1]} : vector<1x12x8x128xbf16> to vector<1x8x8x128xbf16>
    %165 = arith.extf %164 : vector<1x8x8x128xbf16> to vector<1x8x8x128xf32>
    %166 = vector.extract_strided_slice %9 {offsets = [23, 0], sizes = [1, 128], strides = [1, 1]} : vector<25x128xf32> to vector<1x128xf32>
    %167 = vector.shape_cast %166 : vector<1x128xf32> to vector<128xf32>
    %168 = vector.shape_cast %167 : vector<128xf32> to vector<1x1x1x128xf32>
    %169 = vector.broadcast %168 : vector<1x1x1x128xf32> to vector<1x8x8x128xf32>
    %170 = arith.mulf %165, %169 : vector<1x8x8x128xf32>
    %171 = arith.addf %163, %170 : vector<1x8x8x128xf32>
    %172 = arith.addf %131, %171 : vector<1x8x8x128xf32>
    %173 = vector.extract_strided_slice %8 {offsets = [0, 0, 10, 0], sizes = [1, 12, 8, 128], strides = [1, 1, 1, 1]} : vector<1x12x18x128xbf16> to vector<1x12x8x128xbf16>
    %174 = vector.extract_strided_slice %173 {offsets = [0, 0, 0, 0], sizes = [1, 8, 8, 128], strides = [1, 1, 1, 1]} : vector<1x12x8x128xbf16> to vector<1x8x8x128xbf16>
    %175 = arith.extf %174 : vector<1x8x8x128xbf16> to vector<1x8x8x128xf32>
    %176 = vector.extract_strided_slice %9 {offsets = [4, 0], sizes = [1, 128], strides = [1, 1]} : vector<25x128xf32> to vector<1x128xf32>
    %177 = vector.shape_cast %176 : vector<1x128xf32> to vector<128xf32>
    %178 = vector.shape_cast %177 : vector<128xf32> to vector<1x1x1x128xf32>
    %179 = vector.broadcast %178 : vector<1x1x1x128xf32> to vector<1x8x8x128xf32>
    %180 = arith.mulf %175, %179 : vector<1x8x8x128xf32>
    %181 = vector.extract_strided_slice %173 {offsets = [0, 1, 0, 0], sizes = [1, 8, 8, 128], strides = [1, 1, 1, 1]} : vector<1x12x8x128xbf16> to vector<1x8x8x128xbf16>
    %182 = arith.extf %181 : vector<1x8x8x128xbf16> to vector<1x8x8x128xf32>
    %183 = vector.extract_strided_slice %9 {offsets = [9, 0], sizes = [1, 128], strides = [1, 1]} : vector<25x128xf32> to vector<1x128xf32>
    %184 = vector.shape_cast %183 : vector<1x128xf32> to vector<128xf32>
    %185 = vector.shape_cast %184 : vector<128xf32> to vector<1x1x1x128xf32>
    %186 = vector.broadcast %185 : vector<1x1x1x128xf32> to vector<1x8x8x128xf32>
    %187 = arith.mulf %182, %186 : vector<1x8x8x128xf32>
    %188 = arith.addf %180, %187 : vector<1x8x8x128xf32>
    %189 = vector.extract_strided_slice %173 {offsets = [0, 2, 0, 0], sizes = [1, 8, 8, 128], strides = [1, 1, 1, 1]} : vector<1x12x8x128xbf16> to vector<1x8x8x128xbf16>
    %190 = arith.extf %189 : vector<1x8x8x128xbf16> to vector<1x8x8x128xf32>
    %191 = vector.extract_strided_slice %9 {offsets = [14, 0], sizes = [1, 128], strides = [1, 1]} : vector<25x128xf32> to vector<1x128xf32>
    %192 = vector.shape_cast %191 : vector<1x128xf32> to vector<128xf32>
    %193 = vector.shape_cast %192 : vector<128xf32> to vector<1x1x1x128xf32>
    %194 = vector.broadcast %193 : vector<1x1x1x128xf32> to vector<1x8x8x128xf32>
    %195 = arith.mulf %190, %194 : vector<1x8x8x128xf32>
    %196 = arith.addf %188, %195 : vector<1x8x8x128xf32>
    %197 = vector.extract_strided_slice %173 {offsets = [0, 3, 0, 0], sizes = [1, 8, 8, 128], strides = [1, 1, 1, 1]} : vector<1x12x8x128xbf16> to vector<1x8x8x128xbf16>
    %198 = arith.extf %197 : vector<1x8x8x128xbf16> to vector<1x8x8x128xf32>
    %199 = vector.extract_strided_slice %9 {offsets = [19, 0], sizes = [1, 128], strides = [1, 1]} : vector<25x128xf32> to vector<1x128xf32>
    %200 = vector.shape_cast %199 : vector<1x128xf32> to vector<128xf32>
    %201 = vector.shape_cast %200 : vector<128xf32> to vector<1x1x1x128xf32>
    %202 = vector.broadcast %201 : vector<1x1x1x128xf32> to vector<1x8x8x128xf32>
    %203 = arith.mulf %198, %202 : vector<1x8x8x128xf32>
    %204 = arith.addf %196, %203 : vector<1x8x8x128xf32>
    %205 = vector.extract_strided_slice %173 {offsets = [0, 4, 0, 0], sizes = [1, 8, 8, 128], strides = [1, 1, 1, 1]} : vector<1x12x8x128xbf16> to vector<1x8x8x128xbf16>
    %206 = arith.extf %205 : vector<1x8x8x128xbf16> to vector<1x8x8x128xf32>
    %207 = vector.extract_strided_slice %9 {offsets = [24, 0], sizes = [1, 128], strides = [1, 1]} : vector<25x128xf32> to vector<1x128xf32>
    %208 = vector.shape_cast %207 : vector<1x128xf32> to vector<128xf32>
    %209 = vector.shape_cast %208 : vector<128xf32> to vector<1x1x1x128xf32>
    %210 = vector.broadcast %209 : vector<1x1x1x128xf32> to vector<1x8x8x128xf32>
    %211 = arith.mulf %206, %210 : vector<1x8x8x128xf32>
    %212 = arith.addf %204, %211 : vector<1x8x8x128xf32>
    %213 = arith.addf %172, %212 : vector<1x8x8x128xf32>
    %c0_25 = arith.constant 0 : index
    %c0_26 = arith.constant 0 : index
    %214 = vector.load %arg3[%c0_25, %c0_26] : memref<1x128xf32, #tpu.memory_space<vmem>>, vector<1x128xf32>
    %215 = vector.shape_cast %214 : vector<1x128xf32> to vector<128xf32>
    %216 = vector.shape_cast %215 : vector<128xf32> to vector<1x1x1x128xf32>
    %217 = vector.broadcast %216 : vector<1x1x1x128xf32> to vector<1x8x8x128xf32>
    %218 = arith.addf %213, %217 : vector<1x8x8x128xf32>
    %cst_27 = arith.constant 5.000000e-01 : f32
    %219 = vector.broadcast %cst_27 : f32 to vector<1x8x8x128xf32>
    %220 = arith.mulf %219, %218 : vector<1x8x8x128xf32>
    %cst_28 = arith.constant 4.471500e-02 : f32
    %221 = vector.broadcast %cst_28 : f32 to vector<1x8x8x128xf32>
    %222 = arith.mulf %221, %218 : vector<1x8x8x128xf32>
    %223 = arith.mulf %222, %218 : vector<1x8x8x128xf32>
    %224 = arith.mulf %223, %218 : vector<1x8x8x128xf32>
    %225 = arith.addf %218, %224 : vector<1x8x8x128xf32>
    %cst_29 = arith.constant 0.797884583 : f32
    %226 = vector.broadcast %cst_29 : f32 to vector<1x8x8x128xf32>
    %227 = arith.mulf %226, %225 : vector<1x8x8x128xf32>
    %228 = math.tanh %227 : vector<1x8x8x128xf32>
    %cst_30 = arith.constant 1.000000e+00 : f32
    %229 = vector.broadcast %cst_30 : f32 to vector<1x8x8x128xf32>
    %230 = arith.addf %229, %228 : vector<1x8x8x128xf32>
    %231 = arith.mulf %220, %230 : vector<1x8x8x128xf32>
    %c0_31 = arith.constant 0 : index
    %c0_32 = arith.constant 0 : index
    %232 = vector.load %arg4[%c0_31, %c0_32] : memref<1x128xf32, #tpu.memory_space<vmem>>, vector<1x128xf32>
    %233 = vector.shape_cast %232 : vector<1x128xf32> to vector<128xf32>
    %234 = vector.shape_cast %233 : vector<128xf32> to vector<1x1x1x128xf32>
    %235 = vector.broadcast %234 : vector<1x1x1x128xf32> to vector<1x8x8x128xf32>
    %236 = arith.mulf %231, %235 : vector<1x8x8x128xf32>
    %c0_33 = arith.constant 0 : index
    %c0_34 = arith.constant 0 : index
    %237 = vector.load %arg5[%c0_33, %c0_34] : memref<1x128xf32, #tpu.memory_space<vmem>>, vector<1x128xf32>
    %238 = vector.shape_cast %237 : vector<1x128xf32> to vector<128xf32>
    %239 = vector.shape_cast %238 : vector<128xf32> to vector<1x1x1x128xf32>
    %240 = vector.broadcast %239 : vector<1x1x1x128xf32> to vector<1x8x8x128xf32>
    %241 = arith.addf %236, %240 : vector<1x8x8x128xf32>
    %242 = arith.extf %6 : vector<1x8x8x128xbf16> to vector<1x8x8x128xf32>
    %243 = arith.addf %241, %242 : vector<1x8x8x128xf32>
    %244 = vector.shape_cast %243 : vector<1x8x8x128xf32> to vector<64x128xf32>
    %245 = arith.truncf %244 : vector<64x128xf32> to vector<64x128xbf16>
    %c0_35 = arith.constant 0 : index
    %c0_36 = arith.constant 0 : index
    %246 = vector.load %arg6[%c0_35, %c0_36] : memref<128x128xbf16, #tpu.memory_space<vmem>>, vector<128x128xbf16>
    %cst_37 = arith.constant dense<0.000000e+00> : vector<64x128xf32>
    %247 = tpu.matmul %245, %246, %cst_37 {dimension_numbers = #tpu.dot_dimension_numbers<[1], [0], [0], [1], [0, 0, 1, 1], [], []>} : vector<64x128xbf16>, vector<128x128xbf16>, vector<64x128xf32> -> vector<64x128xf32>
    %c0_38 = arith.constant 0 : index
    %c0_39 = arith.constant 0 : index
    %248 = vector.load %arg7[%c0_38, %c0_39] : memref<1x128xf32, #tpu.memory_space<vmem>>, vector<1x128xf32>
    %249 = vector.broadcast %248 : vector<1x128xf32> to vector<64x128xf32>
    %250 = arith.addf %247, %249 : vector<64x128xf32>
    %cst_40 = arith.constant 5.000000e-01 : f32
    %251 = vector.broadcast %cst_40 : f32 to vector<64x128xf32>
    %252 = arith.mulf %251, %250 : vector<64x128xf32>
    %cst_41 = arith.constant 4.471500e-02 : f32
    %253 = vector.broadcast %cst_41 : f32 to vector<64x128xf32>
    %254 = arith.mulf %253, %250 : vector<64x128xf32>
    %255 = arith.mulf %254, %250 : vector<64x128xf32>
    %256 = arith.mulf %255, %250 : vector<64x128xf32>
    %257 = arith.addf %250, %256 : vector<64x128xf32>
    %cst_42 = arith.constant 0.797884583 : f32
    %258 = vector.broadcast %cst_42 : f32 to vector<64x128xf32>
    %259 = arith.mulf %258, %257 : vector<64x128xf32>
    %260 = math.tanh %259 : vector<64x128xf32>
    %cst_43 = arith.constant 1.000000e+00 : f32
    %261 = vector.broadcast %cst_43 : f32 to vector<64x128xf32>
    %262 = arith.addf %261, %260 : vector<64x128xf32>
    %263 = arith.mulf %252, %262 : vector<64x128xf32>
    %c0_44 = arith.constant 0 : index
    %c0_45 = arith.constant 0 : index
    %264 = vector.load %arg8[%c0_44, %c0_45] : memref<1x128xf32, #tpu.memory_space<vmem>>, vector<1x128xf32>
    %265 = vector.broadcast %264 : vector<1x128xf32> to vector<64x128xf32>
    %266 = arith.mulf %263, %265 : vector<64x128xf32>
    %c0_46 = arith.constant 0 : index
    %c0_47 = arith.constant 0 : index
    %267 = vector.load %arg9[%c0_46, %c0_47] : memref<1x128xf32, #tpu.memory_space<vmem>>, vector<1x128xf32>
    %268 = vector.broadcast %267 : vector<1x128xf32> to vector<64x128xf32>
    %269 = arith.addf %266, %268 : vector<64x128xf32>
    %270 = arith.truncf %269 : vector<64x128xf32> to vector<64x128xbf16>
    %271 = vector.shape_cast %270 : vector<64x128xbf16> to vector<1x8x8x128xbf16>
    %c0_48 = arith.constant 0 : index
    %c0_49 = arith.constant 0 : index
    %c0_50 = arith.constant 0 : index
    %c0_51 = arith.constant 0 : index
    %272 = vector.load %arg10[%c0_48, %c0_49, %c0_50, %c0_51] : memref<1x8x8x128xbf16, #tpu.memory_space<vmem>>, vector<1x8x8x128xbf16>
    tpu.vector_store %arg10[%c0_48, %c0_49, %c0_50, %c0_51], %271 {strides = array<i32>} : memref<1x8x8x128xbf16, #tpu.memory_space<vmem>>, vector<1x8x8x128xbf16>,
    return
  }
  func.func @transform_0(%arg0: i32) -> (i32, i32, i32, i32) {
    %c0_i32 = arith.constant 0 : i32
    %c0_i32_0 = arith.constant 0 : i32
    %c0_i32_1 = arith.constant 0 : i32
    %c0_i32_2 = arith.constant 0 : i32
    return %arg0, %c0_i32, %c0_i32_0, %c0_i32_1 : i32, i32, i32, i32
  }
  func.func @transform_1(%arg0: i32) -> (i32, i32) {
    %c0_i32 = arith.constant 0 : i32
    %c0_i32_0 = arith.constant 0 : i32
    %c0_i32_1 = arith.constant 0 : i32
    return %c0_i32, %c0_i32_0 : i32, i32
  }
  func.func @transform_2(%arg0: i32) -> (i32, i32) {
    %c0_i32 = arith.constant 0 : i32
    %c0_i32_0 = arith.constant 0 : i32
    %c0_i32_1 = arith.constant 0 : i32
    return %c0_i32, %c0_i32_0 : i32, i32
  }
  func.func @transform_3(%arg0: i32) -> (i32, i32) {
    %c0_i32 = arith.constant 0 : i32
    %c0_i32_0 = arith.constant 0 : i32
    %c0_i32_1 = arith.constant 0 : i32
    return %c0_i32, %c0_i32_0 : i32, i32
  }
  func.func @transform_4(%arg0: i32) -> (i32, i32) {
    %c0_i32 = arith.constant 0 : i32
    %c0_i32_0 = arith.constant 0 : i32
    %c0_i32_1 = arith.constant 0 : i32
    return %c0_i32, %c0_i32_0 : i32, i32
  }
  func.func @transform_5(%arg0: i32) -> (i32, i32) {
    %c0_i32 = arith.constant 0 : i32
    %c0_i32_0 = arith.constant 0 : i32
    %c0_i32_1 = arith.constant 0 : i32
    return %c0_i32, %c0_i32_0 : i32, i32
  }
  func.func @transform_6(%arg0: i32) -> (i32, i32) {
    %c0_i32 = arith.constant 0 : i32
    %c0_i32_0 = arith.constant 0 : i32
    %c0_i32_1 = arith.constant 0 : i32
    return %c0_i32, %c0_i32_0 : i32, i32
  }
  func.func @transform_7(%arg0: i32) -> (i32, i32) {
    %c0_i32 = arith.constant 0 : i32
    %c0_i32_0 = arith.constant 0 : i32
    %c0_i32_1 = arith.constant 0 : i32
    return %c0_i32, %c0_i32_0 : i32, i32
  }
  func.func @transform_8(%arg0: i32) -> (i32, i32) {
    %c0_i32 = arith.constant 0 : i32
    %c0_i32_0 = arith.constant 0 : i32
    %c0_i32_1 = arith.constant 0 : i32
    return %c0_i32, %c0_i32_0 : i32, i32
  }
  func.func @transform_9(%arg0: i32) -> (i32, i32, i32, i32) {
    %c0_i32 = arith.constant 0 : i32
    %c0_i32_0 = arith.constant 0 : i32
    %c0_i32_1 = arith.constant 0 : i32
    %c0_i32_2 = arith.constant 0 : i32
    return %arg0, %c0_i32, %c0_i32_0, %c0_i32_1 : i32, i32, i32, i32
  }
}

</mosaic_0001>

<llo_original>
// kernel: conv_mixer_forward.7
$region0: #{conv_mixer_forward.7}
  #allocation0 [shape = 'u32[]', space=smem, size = 0x4, offset = 0x4, fixed_abs, tag = 'smem constant byte address 0x4 - core index']
  #allocation1 [shape = 'u32[144,128]{1,0:T(1,128)}', space=vmem, size = 0x12000, scoped, tag = 'internal scratch']
  #allocation2 [shape = 'f32[2,128]{1,0:T(2,128)}', space=vmem, size = 0x400, scoped, tag = 'scratch operand']
  %s0 = inlined_call_operand.vmem [shape: bf16[2,64,128], index: 0, kind: input, shape index: {}]
  %s1 = inlined_call_operand.vmem [shape: bf16[128,128], index: 1, kind: input, shape index: {}]
  %s2 = inlined_call_operand.vmem [shape: f32[1,128], index: 2, kind: input, shape index: {}]
  %s3 = inlined_call_operand.hbm [shape: f32[2,128], index: 3, kind: output, shape index: {}]
  %s4 = sld [smem:[#allocation0]]
  $region30: #{conv_mixer_forward.7} parent=0
    _
  %s6 = ssub.s32 1, %s4
  %s7 = scalar_select 0, %s6, %s4
  $region1: #{conv_mixer_forward.7} parent=0
    #allocation3 [shape = 'u8[1024]{0}', space=vmem, size = 0x400, scoped, tag = 'output window, operand 0, single buffered']
    #allocation4 [shape = 's32[1]{0}', space=sflag, size = 0x4, scoped, tag = 'scoped memory for conv_mixer_forward.7']
    %8 = vsyncpa [#allocation4], 0
    // Predicated region
    $region2: #{conv_mixer_forward.7} parent=1 // pred_check
      _
    $region3: #{conv_mixer_forward.7} parent=1 // pred_check_branch
      %10 = sbr.rel (0) target = $region5
    $region4: #{conv_mixer_forward.7} parent=1 // pred_region
      _
    $region5: #{conv_mixer_forward.7} parent=1 // pred_fallthru
      _
    // Predicated region
    $region6: #{conv_mixer_forward.7} parent=1 // pred_check
      _
    $region7: #{conv_mixer_forward.7} parent=1 // pred_check_branch
      %12 = sbr.rel (0) target = $region9
    $region8: #{conv_mixer_forward.7} parent=1 // pred_region
      _
    $region9: #{conv_mixer_forward.7} parent=1 // pred_fallthru
      _
    // Predicated region
    $region10: #{conv_mixer_forward.7} parent=1 // pred_check
      _
    $region11: #{conv_mixer_forward.7} parent=1 // pred_check_branch
      %14 = sbr.rel (0) target = $region13
    $region12: #{conv_mixer_forward.7} parent=1 // pred_region
      _
    $region13: #{conv_mixer_forward.7} parent=1 // pred_fallthru
      _
    %p16 = scmp.eq.s32.totalorder 0, 0
    // Predicated region
    $region14: #{conv_mixer_forward.7} parent=1 // pred_check
      %p17 = pneg %p16
    $region15: #{conv_mixer_forward.7} parent=1 // pred_check_branch
      %19 = sbr.rel (%p17) target = $region17
    $region16: #{conv_mixer_forward.7} parent=1 // pred_region
      %20 = vst [vmem:[#allocation2] sm:$0x3] 0.0
    $region17: #{conv_mixer_forward.7} parent=1 // pred_fallthru
      _
    %v21 = vld [vmem:[#allocation2] sm:$0x3]
    %v22 = vld [vmem:[%s0] sm:$0xf]
    %v23 = vld [vmem:[%s0 + $0x4] sm:$0xf]
    %v24 = vld [vmem:[%s0 + $0x8] sm:$0xf]
    %v25 = vld [vmem:[%s0 + $0xc] sm:$0xf]
    %v26 = vld [vmem:[%s0 + $0x10] sm:$0xf]
    %v27 = vld [vmem:[%s0 + $0x14] sm:$0xf]
    %v28 = vld [vmem:[%s0 + $0x18] sm:$0xf]
    %v29 = vld [vmem:[%s0 + $0x1c] sm:$0xf]
    %v30 = vld [vmem:[%s0 + $0x20] sm:$0xf]
    %v31 = vld [vmem:[%s0 + $0x24] sm:$0xf]
    %v32 = vld [vmem:[%s0 + $0x28] sm:$0xf]
    %v33 = vld [vmem:[%s0 + $0x2c] sm:$0xf]
    %v34 = vld [vmem:[%s0 + $0x30] sm:$0xf]
    %v35 = vld [vmem:[%s0 + $0x34] sm:$0xf]
    %v36 = vld [vmem:[%s0 + $0x38] sm:$0xf]
    %v37 = vld [vmem:[%s0 + $0x3c] sm:$0xf]
    %v38 = vunpack.c.l.bf16 %v22
    %v39 = vunpack.c.l.bf16 %v23
    %v40 = vunpack.c.l.bf16 %v24
    %v41 = vunpack.c.l.bf16 %v25
    %v42 = vunpack.c.l.bf16 %v26
    %v43 = vunpack.c.l.bf16 %v27
    %v44 = vunpack.c.l.bf16 %v28
    %v45 = vunpack.c.l.bf16 %v29
    %v46 = vunpack.c.l.bf16 %v30
    %v47 = vunpack.c.l.bf16 %v31
    %v48 = vunpack.c.l.bf16 %v32
    %v49 = vunpack.c.l.bf16 %v33
    %v50 = vunpack.c.l.bf16 %v34
    %v51 = vunpack.c.l.bf16 %v35
    %v52 = vunpack.c.l.bf16 %v36
    %v53 = vunpack.c.l.bf16 %v37
    %v54 = vadd.f32 %v38, %v39
    %v55 = vadd.f32 %v54, %v40
    %v56 = vadd.f32 %v55, %v41
    %v57 = vadd.f32 %v56, %v42
    %v58 = vadd.f32 %v57, %v43
    %v59 = vadd.f32 %v58, %v44
    %v60 = vadd.f32 %v59, %v45
    %v61 = vrot.slane %v60, 4
    %v62 = vadd.f32 %v60, %v61
    %v63 = vrot.slane %v62, 2
    %v64 = vadd.f32 %v62, %v63
    %v65 = vrot.slane %v64, 1
    %v66 = vadd.f32 %v64, %v65
    %v67 = vadd.f32 %v46, %v47
    %v68 = vadd.f32 %v67, %v48
    %v69 = vadd.f32 %v68, %v49
    %v70 = vadd.f32 %v69, %v50
    %v71 = vadd.f32 %v70, %v51
    %v72 = vadd.f32 %v71, %v52
    %v73 = vadd.f32 %v72, %v53
    %v74 = vrot.slane %v73, 4
    %v75 = vadd.f32 %v73, %v74
    %v76 = vrot.slane %v75, 2
    %v77 = vadd.f32 %v75, %v76
    %v78 = vrot.slane %v77, 1
    %v79 = vadd.f32 %v77, %v78
    %vm82 = vcmask 1041409
    %v83 = vsel %vm82, %v79, %v66
    %v85 = vadd.f32 %v21, %v83
    %86 = vst [vmem:[#allocation2] sm:$0x3] %v85
    // Predicated region
    $region18: #{conv_mixer_forward.7} parent=1 // pred_check
      %p87 = pneg %p16
    $region19: #{conv_mixer_forward.7} parent=1 // pred_check_branch
      %89 = sbr.rel (%p87) target = $region21
    $region20: #{conv_mixer_forward.7} parent=1 // pred_region
      %v90 = vld [vmem:[#allocation2] sm:$0x3]
      %v91 = vmul.f32 %v90, 0.015625
      %v92 = vpack.c.bf16 %v91, %v91
      %v93 = vld [vmem:[%s1] sm:$0xf]
      %v94 = vld [vmem:[%s1 + $0x4] sm:$0xf]
      %v95 = vld [vmem:[%s1 + $0x8] sm:$0xf]
      %v96 = vld [vmem:[%s1 + $0xc] sm:$0xf]
      %v97 = vld [vmem:[%s1 + $0x10] sm:$0xf]
      %v98 = vld [vmem:[%s1 + $0x14] sm:$0xf]
      %v99 = vld [vmem:[%s1 + $0x18] sm:$0xf]
      %v100 = vld [vmem:[%s1 + $0x1c] sm:$0xf]
      %v101 = vld [vmem:[%s1 + $0x20] sm:$0xf]
      %v102 = vld [vmem:[%s1 + $0x24] sm:$0xf]
      %v103 = vld [vmem:[%s1 + $0x28] sm:$0xf]
      %v104 = vld [vmem:[%s1 + $0x2c] sm:$0xf]
      %v105 = vld [vmem:[%s1 + $0x30] sm:$0xf]
      %v106 = vld [vmem:[%s1 + $0x34] sm:$0xf]
      %v107 = vld [vmem:[%s1 + $0x38] sm:$0xf]
      %v108 = vld [vmem:[%s1 + $0x3c] sm:$0xf]
      %v109 = vld [vmem:[%s2] sm:$0x1]
      %v111 = vlaneseq
      %v112 = vshrl.u32 %v111, 7
      %v113 = vsub.s32 0, %v112
      %v114 = vrot.slane %v109, %v113
      %v132 = vunpack.c.l.b16 %v93
      %v133 = vunpack.c.l.b16 %v94
      %v134 = vunpack.c.l.b16 %v95
      %v135 = vunpack.c.l.b16 %v96
      %v136 = vunpack.c.l.b16 %v97
      %v137 = vunpack.c.l.b16 %v98
      %v138 = vunpack.c.l.b16 %v99
      %v139 = vunpack.c.l.b16 %v100
      %v140 = vunpack.c.l.b16 %v101
      %v141 = vunpack.c.l.b16 %v102
      %v142 = vunpack.c.l.b16 %v103
      %v143 = vunpack.c.l.b16 %v104
      %v144 = vunpack.c.l.b16 %v105
      %v145 = vunpack.c.l.b16 %v106
      %v146 = vunpack.c.l.b16 %v107
      %v147 = vunpack.c.l.b16 %v108
      %v148 = vpack.c.b16 %v133, %v132
      %v149 = vpack.c.b16 %v135, %v134
      %v150 = vpack.c.b16 %v137, %v136
      %v151 = vpack.c.b16 %v139, %v138
      %v152 = vpack.c.b16 %v141, %v140
      %v153 = vpack.c.b16 %v143, %v142
      %v154 = vpack.c.b16 %v145, %v144
      %v155 = vpack.c.b16 %v147, %v146
      %164 = vmatprep.subr.bf16.mxu0 0
      %165 = vmatpush1.bf16.msra.mxu0 %v148
      %166 = vmatprep.subr.bf16.mxu0 0
      %167 = vmatpush1.bf16.msra.mxu0 %v149
      %168 = vmatprep.subr.bf16.mxu0 0
      %169 = vmatpush1.bf16.msra.mxu0 %v150
      %170 = vmatprep.subr.bf16.mxu0 0
      %171 = vmatpush1.bf16.msra.mxu0 %v151
      %172 = vmatprep.subr.bf16.mxu0 0
      %173 = vmatpush1.bf16.msra.mxu0 %v152
      %174 = vmatprep.subr.bf16.mxu0 0
      %175 = vmatpush1.bf16.msra.mxu0 %v153
      %176 = vmatprep.subr.bf16.mxu0 0
      %177 = vmatpush1.bf16.msra.mxu0 %v154
      %178 = vmatprep.subr.bf16.mxu0 0
      %179 = vmatpush1.bf16.msra.mxu0 %v155
      %180 = vmatprep.subr.bf16.mxu0 0
      %181 = vmatpush1.bf16.msra.mxu0 0
      %182 = vmatprep.subr.bf16.mxu0 0
      %183 = vmatpush1.bf16.msra.mxu0 0
      %184 = vmatprep.subr.bf16.mxu0 0
      %185 = vmatpush1.bf16.msra.mxu0 0
      %186 = vmatprep.subr.bf16.mxu0 0
      %187 = vmatpush1.bf16.msra.mxu0 0
      %188 = vmatprep.subr.bf16.mxu0 0
      %189 = vmatpush1.bf16.msra.mxu0 0
      %190 = vmatprep.subr.bf16.mxu0 0
      %191 = vmatpush1.bf16.msra.mxu0 0
      %192 = vmatprep.subr.bf16.mxu0 0
      %193 = vmatpush1.bf16.msra.mxu0 0
      %194 = vmatprep.subr.bf16.mxu0 0
      %195 = vmatpush1.bf16.msra.mxu0 0
      %196 = vmatprep.mubr.bf16.mxu0 0
      %197 = vmatmul.mubr.bf16.gmra.mrb[0].mxu0 %v92
      %v198 = vpop.f32.mrb[0].mxu0
      %v199 = vadd.f32 %v114, %v198
      %v200 = vpop.f32.mrb[0].mxu0
      %v201 = vpop.f32.mrb[0].mxu0
      %v202 = vpop.f32.mrb[0].mxu0
      %203 = vdwg.mxu0
      %204 = vst [vmem:[#allocation3] sm:$0x3] %v199
    $region21: #{conv_mixer_forward.7} parent=1 // pred_fallthru
      _
    // Predicated region
    $region22: #{conv_mixer_forward.7} parent=1 // pred_check
      _
    $region23: #{conv_mixer_forward.7} parent=1 // pred_check_branch
      %206 = sbr.rel (0) target = $region25
    $region24: #{conv_mixer_forward.7} parent=1 // pred_region
      %s208 = ssub.s32 32, 32
      %209 = vsyncadd [#allocation4], %s208
      %s211 = sshll.u32 [#allocation3], 4
      %s212 = int_to_ptr.vmem [resolvable:$true] %s211
      %214 = dma.vmem_to_hbm [thread:$0]  %s212, 32, %s3, [#allocation4]
    $region25: #{conv_mixer_forward.7} parent=1 // pred_fallthru
      _
    // Predicated region
    $region26: #{conv_mixer_forward.7} parent=1 // pred_check
      _
    $region27: #{conv_mixer_forward.7} parent=1 // pred_check_branch
      %216 = sbr.rel (0) target = $region29
    $region28: #{conv_mixer_forward.7} parent=1 // pred_region
      %217 = dma.done [#allocation4], 32
    $region29: #{conv_mixer_forward.7} parent=1 // pred_fallthru
      _
    %218 = vsyncpa [#allocation4], 1

// kernel: conv_mixer_forward.4
$region0: #{conv_mixer_forward.4}
  #allocation0 [shape = 'u32[]', space=smem, size = 0x4, offset = 0x4, fixed_abs, tag = 'smem constant byte address 0x4 - core index']
  #allocation1 [shape = 'u32[144,128]{1,0:T(1,128)}', space=vmem, size = 0x12000, scoped, tag = 'internal scratch']
  %s0 = inlined_call_operand.vmem [shape: bf16[128,128], index: 0, kind: input, shape index: {}]
  %s1 = inlined_call_operand.vmem [shape: bf16[128,128], index: 1, kind: input, shape index: {}]
  %s2 = inlined_call_operand.vmem [shape: f32[1,128], index: 2, kind: input, shape index: {}]
  %s3 = inlined_call_operand.vmem [shape: f32[1,128], index: 3, kind: input, shape index: {}]
  %s4 = inlined_call_operand.vmem [shape: f32[1,128], index: 4, kind: input, shape index: {}]
  %s5 = inlined_call_operand.vmem [shape: bf16[128,128], index: 5, kind: output, shape index: {}]
  %s6 = sld [smem:[#allocation0]]
  $region30: #{conv_mixer_forward.4} parent=0
    _
  %s8 = ssub.s32 1, %s6
  %s9 = scalar_select 0, %s8, %s6
  // Predicated region
  $region2: #{conv_mixer_forward.4} parent=0 // pred_check
    _
  $region3: #{conv_mixer_forward.4} parent=0 // pred_check_branch
    %11 = sbr.rel (0) target = $region5
  $region4: #{conv_mixer_forward.4} parent=0 // pred_region
    _
  $region5: #{conv_mixer_forward.4} parent=0 // pred_fallthru
    _
  // Predicated region
  $region6: #{conv_mixer_forward.4} parent=0 // pred_check
    _
  $region7: #{conv_mixer_forward.4} parent=0 // pred_check_branch
    %13 = sbr.rel (0) target = $region9
  $region8: #{conv_mixer_forward.4} parent=0 // pred_region
    _
  $region9: #{conv_mixer_forward.4} parent=0 // pred_fallthru
    _
  // Predicated region
  $region10: #{conv_mixer_forward.4} parent=0 // pred_check
    _
  $region11: #{conv_mixer_forward.4} parent=0 // pred_check_branch
    %15 = sbr.rel (0) target = $region13
  $region12: #{conv_mixer_forward.4} parent=0 // pred_region
    _
  $region13: #{conv_mixer_forward.4} parent=0 // pred_fallthru
    _
  // Predicated region
  $region14: #{conv_mixer_forward.4} parent=0 // pred_check
    _
  $region15: #{conv_mixer_forward.4} parent=0 // pred_check_branch
    %17 = sbr.rel (0) target = $region17
  $region16: #{conv_mixer_forward.4} parent=0 // pred_region
    _
  $region17: #{conv_mixer_forward.4} parent=0 // pred_fallthru
    _
  // Predicated region
  $region18: #{conv_mixer_forward.4} parent=0 // pred_check
    _
  $region19: #{conv_mixer_forward.4} parent=0 // pred_check_branch
    %19 = sbr.rel (0) target = $region21
  $region20: #{conv_mixer_forward.4} parent=0 // pred_region
    _
  $region21: #{conv_mixer_forward.4} parent=0 // pred_fallthru
    _
  %v21 = vld [vmem:[%s0] sm:$0xf]
  %v22 = vld [vmem:[%s0 + $0x4] sm:$0xf]
  %v23 = vld [vmem:[%s0 + $0x8] sm:$0xf]
  %v24 = vld [vmem:[%s0 + $0xc] sm:$0xf]
  %v25 = vld [vmem:[%s0 + $0x10] sm:$0xf]
  %v26 = vld [vmem:[%s0 + $0x14] sm:$0xf]
  %v27 = vld [vmem:[%s0 + $0x18] sm:$0xf]
  %v28 = vld [vmem:[%s0 + $0x1c] sm:$0xf]
  %v29 = vld [vmem:[%s0 + $0x20] sm:$0xf]
  %v30 = vld [vmem:[%s0 + $0x24] sm:$0xf]
  %v31 = vld [vmem:[%s0 + $0x28] sm:$0xf]
  %v32 = vld [vmem:[%s0 + $0x2c] sm:$0xf]
  %v33 = vld [vmem:[%s0 + $0x30] sm:$0xf]
  %v34 = vld [vmem:[%s0 + $0x34] sm:$0xf]
  %v35 = vld [vmem:[%s0 + $0x38] sm:$0xf]
  %v36 = vld [vmem:[%s0 + $0x3c] sm:$0xf]
  %v37 = vld [vmem:[%s1] sm:$0xf]
  %v38 = vld [vmem:[%s1 + $0x4] sm:$0xf]
  %v39 = vld [vmem:[%s1 + $0x8] sm:$0xf]
  %v40 = vld [vmem:[%s1 + $0xc] sm:$0xf]
  %v41 = vld [vmem:[%s1 + $0x10] sm:$0xf]
  %v42 = vld [vmem:[%s1 + $0x14] sm:$0xf]
  %v43 = vld [vmem:[%s1 + $0x18] sm:$0xf]
  %v44 = vld [vmem:[%s1 + $0x1c] sm:$0xf]
  %v45 = vld [vmem:[%s1 + $0x20] sm:$0xf]
  %v46 = vld [vmem:[%s1 + $0x24] sm:$0xf]
  %v47 = vld [vmem:[%s1 + $0x28] sm:$0xf]
  %v48 = vld [vmem:[%s1 + $0x2c] sm:$0xf]
  %v49 = vld [vmem:[%s1 + $0x30] sm:$0xf]
  %v50 = vld [vmem:[%s1 + $0x34] sm:$0xf]
  %v51 = vld [vmem:[%s1 + $0x38] sm:$0xf]
  %v52 = vld [vmem:[%s1 + $0x3c] sm:$0xf]
  %v53 = vld [vmem:[%s2] sm:$0x1]
  %v55 = vlaneseq
  %v56 = vshrl.u32 %v55, 7
  %v57 = vsub.s32 0, %v56
  %v58 = vrot.slane %v53, %v57
  %v76 = vunpack.c.l.b16 %v21
  %v77 = vunpack.c.l.b16 %v22
  %v78 = vunpack.c.l.b16 %v23
  %v79 = vunpack.c.l.b16 %v24
  %v80 = vunpack.c.l.b16 %v25
  %v81 = vunpack.c.l.b16 %v26
  %v82 = vunpack.c.l.b16 %v27
  %v83 = vunpack.c.l.b16 %v28
  %v84 = vunpack.c.l.b16 %v29
  %v85 = vunpack.c.l.b16 %v30
  %v86 = vunpack.c.l.b16 %v31
  %v87 = vunpack.c.l.b16 %v32
  %v88 = vunpack.c.l.b16 %v33
  %v89 = vunpack.c.l.b16 %v34
  %v90 = vunpack.c.l.b16 %v35
  %v91 = vunpack.c.l.b16 %v36
  %v92 = vpack.c.b16 %v77, %v76
  %v93 = vpack.c.b16 %v79, %v78
  %v94 = vpack.c.b16 %v81, %v80
  %v95 = vpack.c.b16 %v83, %v82
  %v96 = vpack.c.b16 %v85, %v84
  %v97 = vpack.c.b16 %v87, %v86
  %v98 = vpack.c.b16 %v89, %v88
  %v99 = vpack.c.b16 %v91, %v90
  %v124 = vunpack.c.l.b16 %v37
  %v125 = vunpack.c.l.b16 %v38
  %v126 = vunpack.c.l.b16 %v39
  %v127 = vunpack.c.l.b16 %v40
  %v128 = vunpack.c.l.b16 %v41
  %v129 = vunpack.c.l.b16 %v42
  %v130 = vunpack.c.l.b16 %v43
  %v131 = vunpack.c.l.b16 %v44
  %v132 = vunpack.c.l.b16 %v45
  %v133 = vunpack.c.l.b16 %v46
  %v134 = vunpack.c.l.b16 %v47
  %v135 = vunpack.c.l.b16 %v48
  %v136 = vunpack.c.l.b16 %v49
  %v137 = vunpack.c.l.b16 %v50
  %v138 = vunpack.c.l.b16 %v51
  %v139 = vunpack.c.l.b16 %v52
  %v140 = vpack.c.b16 %v125, %v124
  %v141 = vpack.c.b16 %v127, %v126
  %v142 = vpack.c.b16 %v129, %v128
  %v143 = vpack.c.b16 %v131, %v130
  %v144 = vpack.c.b16 %v133, %v132
  %v145 = vpack.c.b16 %v135, %v134
  %v146 = vpack.c.b16 %v137, %v136
  %v147 = vpack.c.b16 %v139, %v138
  %156 = vmatprep.subr.bf16.mxu0 0
  %157 = vmatpush1.bf16.msra.mxu0 %v140
  %158 = vmatprep.subr.bf16.mxu0 0
  %159 = vmatpush1.bf16.msra.mxu0 %v141
  %160 = vmatprep.subr.bf16.mxu0 0
  %161 = vmatpush1.bf16.msra.mxu0 %v142
  %162 = vmatprep.subr.bf16.mxu0 0
  %163 = vmatpush1.bf16.msra.mxu0 %v143
  %164 = vmatprep.subr.bf16.mxu0 0
  %165 = vmatpush1.bf16.msra.mxu0 %v144
  %166 = vmatprep.subr.bf16.mxu0 0
  %167 = vmatpush1.bf16.msra.mxu0 %v145
  %168 = vmatprep.subr.bf16.mxu0 0
  %169 = vmatpush1.bf16.msra.mxu0 %v146
  %170 = vmatprep.subr.bf16.mxu0 0
  %171 = vmatpush1.bf16.msra.mxu0 %v147
  %172 = vmatprep.subr.bf16.mxu0 0
  %173 = vmatpush1.bf16.msra.mxu0 0
  %174 = vmatprep.subr.bf16.mxu0 0
  %175 = vmatpush1.bf16.msra.mxu0 0
  %176 = vmatprep.subr.bf16.mxu0 0
  %177 = vmatpush1.bf16.msra.mxu0 0
  %178 = vmatprep.subr.bf16.mxu0 0
  %179 = vmatpush1.bf16.msra.mxu0 0
  %180 = vmatprep.subr.bf16.mxu0 0
  %181 = vmatpush1.bf16.msra.mxu0 0
  %182 = vmatprep.subr.bf16.mxu0 0
  %183 = vmatpush1.bf16.msra.mxu0 0
  %184 = vmatprep.subr.bf16.mxu0 0
  %185 = vmatpush1.bf16.msra.mxu0 0
  %186 = vmatprep.subr.bf16.mxu0 0
  %187 = vmatpush1.bf16.msra.mxu0 0
  %188 = vmatprep.mubr.bf16.mxu0 0
  %189 = vmatmul.mubr.bf16.gmra.mrb[0].mxu0 %v92
  %v190 = vpop.f32.mrb[0].mxu0
  %v191 = vadd.f32 %v58, %v190
  %v192 = vpop.f32.mrb[0].mxu0
  %v193 = vpop.f32.mrb[0].mxu0
  %v194 = vadd.f32 %v58, %v193
  %v195 = vpop.f32.mrb[0].mxu0
  %196 = vmatprep.mubr.bf16.mxu0 0
  %197 = vmatmul.mubr.bf16.gmra.mrb[0].mxu0 %v93
  %v198 = vpop.f32.mrb[0].mxu0
  %v199 = vadd.f32 %v58, %v198
  %v200 = vpop.f32.mrb[0].mxu0
  %v201 = vpop.f32.mrb[0].mxu0
  %v202 = vadd.f32 %v58, %v201
  %v203 = vpop.f32.mrb[0].mxu0
  %204 = vmatprep.mubr.bf16.mxu0 0
  %205 = vmatmul.mubr.bf16.gmra.mrb[0].mxu0 %v94
  %v206 = vpop.f32.mrb[0].mxu0
  %v207 = vadd.f32 %v58, %v206
  %v208 = vpop.f32.mrb[0].mxu0
  %v209 = vpop.f32.mrb[0].mxu0
  %v210 = vadd.f32 %v58, %v209
  %v211 = vpop.f32.mrb[0].mxu0
  %212 = vmatprep.mubr.bf16.mxu0 0
  %213 = vmatmul.mubr.bf16.gmra.mrb[0].mxu0 %v95
  %v214 = vpop.f32.mrb[0].mxu0
  %v215 = vadd.f32 %v58, %v214
  %v216 = vpop.f32.mrb[0].mxu0
  %v217 = vpop.f32.mrb[0].mxu0
  %v218 = vadd.f32 %v58, %v217
  %v219 = vpop.f32.mrb[0].mxu0
  %220 = vmatprep.mubr.bf16.mxu0 0
  %221 = vmatmul.mubr.bf16.gmra.mrb[0].mxu0 %v96
  %v222 = vpop.f32.mrb[0].mxu0
  %v223 = vadd.f32 %v58, %v222
  %v224 = vpop.f32.mrb[0].mxu0
  %v225 = vpop.f32.mrb[0].mxu0
  %v226 = vadd.f32 %v58, %v225
  %v227 = vpop.f32.mrb[0].mxu0
  %228 = vmatprep.mubr.bf16.mxu0 0
  %229 = vmatmul.mubr.bf16.gmra.mrb[0].mxu0 %v97
  %v230 = vpop.f32.mrb[0].mxu0
  %v231 = vadd.f32 %v58, %v230
  %v232 = vpop.f32.mrb[0].mxu0
  %v233 = vpop.f32.mrb[0].mxu0
  %v234 = vadd.f32 %v58, %v233
  %v235 = vpop.f32.mrb[0].mxu0
  %236 = vmatprep.mubr.bf16.mxu0 0
  %237 = vmatmul.mubr.bf16.gmra.mrb[0].mxu0 %v98
  %v238 = vpop.f32.mrb[0].mxu0
  %v239 = vadd.f32 %v58, %v238
  %v240 = vpop.f32.mrb[0].mxu0
  %v241 = vpop.f32.mrb[0].mxu0
  %v242 = vadd.f32 %v58, %v241
  %v243 = vpop.f32.mrb[0].mxu0
  %244 = vmatprep.mubr.bf16.mxu0 0
  %245 = vmatmul.mubr.bf16.gmra.mrb[0].mxu0 %v99
  %v246 = vpop.f32.mrb[0].mxu0
  %v247 = vadd.f32 %v58, %v246
  %v248 = vpop.f32.mrb[0].mxu0
  %v249 = vpop.f32.mrb[0].mxu0
  %v250 = vadd.f32 %v58, %v249
  %v251 = vpop.f32.mrb[0].mxu0
  %252 = vdwg.mxu0
  %v253 = vmul.f32 %v191, 0.5
  %v254 = vmul.f32 %v194, 0.5
  %v255 = vmul.f32 %v199, 0.5
  %v256 = vmul.f32 %v202, 0.5
  %v257 = vmul.f32 %v207, 0.5
  %v258 = vmul.f32 %v210, 0.5
  %v259 = vmul.f32 %v215, 0.5
  %v260 = vmul.f32 %v218, 0.5
  %v261 = vmul.f32 %v223, 0.5
  %v262 = vmul.f32 %v226, 0.5
  %v263 = vmul.f32 %v231, 0.5
  %v264 = vmul.f32 %v234, 0.5
  %v265 = vmul.f32 %v239, 0.5
  %v266 = vmul.f32 %v242, 0.5
  %v267 = vmul.f32 %v247, 0.5
  %v268 = vmul.f32 %v250, 0.5
  %v269 = vmul.f32 %v191, 0.044715
  %v270 = vmul.f32 %v194, 0.044715
  %v271 = vmul.f32 %v199, 0.044715
  %v272 = vmul.f32 %v202, 0.044715
  %v273 = vmul.f32 %v207, 0.044715
  %v274 = vmul.f32 %v210, 0.044715
  %v275 = vmul.f32 %v215, 0.044715
  %v276 = vmul.f32 %v218, 0.044715
  %v277 = vmul.f32 %v223, 0.044715
  %v278 = vmul.f32 %v226, 0.044715
  %v279 = vmul.f32 %v231, 0.044715
  %v280 = vmul.f32 %v234, 0.044715
  %v281 = vmul.f32 %v239, 0.044715
  %v282 = vmul.f32 %v242, 0.044715
  %v283 = vmul.f32 %v247, 0.044715
  %v284 = vmul.f32 %v250, 0.044715
  %v285 = vmul.f32 %v269, %v191
  %v286 = vmul.f32 %v270, %v194
  %v287 = vmul.f32 %v271, %v199
  %v288 = vmul.f32 %v272, %v202
  %v289 = vmul.f32 %v273, %v207
  %v290 = vmul.f32 %v274, %v210
  %v291 = vmul.f32 %v275, %v215
  %v292 = vmul.f32 %v276, %v218
  %v293 = vmul.f32 %v277, %v223
  %v294 = vmul.f32 %v278, %v226
  %v295 = vmul.f32 %v279, %v231
  %v296 = vmul.f32 %v280, %v234
  %v297 = vmul.f32 %v281, %v239
  %v298 = vmul.f32 %v282, %v242
  %v299 = vmul.f32 %v283, %v247
  %v300 = vmul.f32 %v284, %v250
  %v301 = vmul.f32 %v285, %v191
  %v302 = vmul.f32 %v286, %v194
  %v303 = vmul.f32 %v287, %v199
  %v304 = vmul.f32 %v288, %v202
  %v305 = vmul.f32 %v289, %v207
  %v306 = vmul.f32 %v290, %v210
  %v307 = vmul.f32 %v291, %v215
  %v308 = vmul.f32 %v292, %v218
  %v309 = vmul.f32 %v293, %v223
  %v310 = vmul.f32 %v294, %v226
  %v311 = vmul.f32 %v295, %v231
  %v312 = vmul.f32 %v296, %v234
  %v313 = vmul.f32 %v297, %v239
  %v314 = vmul.f32 %v298, %v242
  %v315 = vmul.f32 %v299, %v247
  %v316 = vmul.f32 %v300, %v250
  %v317 = vadd.f32 %v191, %v301
  %v318 = vadd.f32 %v194, %v302
  %v319 = vadd.f32 %v199, %v303
  %v320 = vadd.f32 %v202, %v304
  %v321 = vadd.f32 %v207, %v305
  %v322 = vadd.f32 %v210, %v306
  %v323 = vadd.f32 %v215, %v307
  %v324 = vadd.f32 %v218, %v308
  %v325 = vadd.f32 %v223, %v309
  %v326 = vadd.f32 %v226, %v310
  %v327 = vadd.f32 %v231, %v311
  %v328 = vadd.f32 %v234, %v312
  %v329 = vadd.f32 %v239, %v313
  %v330 = vadd.f32 %v242, %v314
  %v331 = vadd.f32 %v247, %v315
  %v332 = vadd.f32 %v250, %v316
  %v333 = vmul.f32 %v317, 0.7978846
  %v334 = vmul.f32 %v318, 0.7978846
  %v335 = vmul.f32 %v319, 0.7978846
  %v336 = vmul.f32 %v320, 0.7978846
  %v337 = vmul.f32 %v321, 0.7978846
  %v338 = vmul.f32 %v322, 0.7978846
  %v339 = vmul.f32 %v323, 0.7978846
  %v340 = vmul.f32 %v324, 0.7978846
  %v341 = vmul.f32 %v325, 0.7978846
  %v342 = vmul.f32 %v326, 0.7978846
  %v343 = vmul.f32 %v327, 0.7978846
  %v344 = vmul.f32 %v328, 0.7978846
  %v345 = vmul.f32 %v329, 0.7978846
  %v346 = vmul.f32 %v330, 0.7978846
  %v347 = vmul.f32 %v331, 0.7978846
  %v348 = vmul.f32 %v332, 0.7978846
  %v349 = vtanh.pop %v333
  %v350 = vtanh.pop %v334
  %v351 = vtanh.pop %v335
  %v352 = vtanh.pop %v336
  %v353 = vtanh.pop %v337
  %v354 = vtanh.pop %v338
  %v355 = vtanh.pop %v339
  %v356 = vtanh.pop %v340
  %v357 = vtanh.pop %v341
  %v358 = vtanh.pop %v342
  %v359 = vtanh.pop %v343
  %v360 = vtanh.pop %v344
  %v361 = vtanh.pop %v345
  %v362 = vtanh.pop %v346
  %v363 = vtanh.pop %v347
  %v364 = vtanh.pop %v348
  %v365 = vadd.f32 %v349, 1.0
  %v366 = vadd.f32 %v350, 1.0
  %v367 = vadd.f32 %v351, 1.0
  %v368 = vadd.f32 %v352, 1.0
  %v369 = vadd.f32 %v353, 1.0
  %v370 = vadd.f32 %v354, 1.0
  %v371 = vadd.f32 %v355, 1.0
  %v372 = vadd.f32 %v356, 1.0
  %v373 = vadd.f32 %v357, 1.0
  %v374 = vadd.f32 %v358, 1.0
  %v375 = vadd.f32 %v359, 1.0
  %v376 = vadd.f32 %v360, 1.0
  %v377 = vadd.f32 %v361, 1.0
  %v378 = vadd.f32 %v362, 1.0
  %v379 = vadd.f32 %v363, 1.0
  %v380 = vadd.f32 %v364, 1.0
  %v381 = vmul.f32 %v253, %v365
  %v382 = vmul.f32 %v254, %v366
  %v383 = vmul.f32 %v255, %v367
  %v384 = vmul.f32 %v256, %v368
  %v385 = vmul.f32 %v257, %v369
  %v386 = vmul.f32 %v258, %v370
  %v387 = vmul.f32 %v259, %v371
  %v388 = vmul.f32 %v260, %v372
  %v389 = vmul.f32 %v261, %v373
  %v390 = vmul.f32 %v262, %v374
  %v391 = vmul.f32 %v263, %v375
  %v392 = vmul.f32 %v264, %v376
  %v393 = vmul.f32 %v265, %v377
  %v394 = vmul.f32 %v266, %v378
  %v395 = vmul.f32 %v267, %v379
  %v396 = vmul.f32 %v268, %v380
  %v397 = vld [vmem:[%s3] sm:$0x1]
  %v399 = vlaneseq
  %v400 = vshrl.u32 %v399, 7
  %v401 = vsub.s32 0, %v400
  %v402 = vrot.slane %v397, %v401
  %v404 = vmul.f32 %v381, %v402
  %v405 = vmul.f32 %v382, %v402
  %v406 = vmul.f32 %v383, %v402
  %v407 = vmul.f32 %v384, %v402
  %v408 = vmul.f32 %v385, %v402
  %v409 = vmul.f32 %v386, %v402
  %v410 = vmul.f32 %v387, %v402
  %v411 = vmul.f32 %v388, %v402
  %v412 = vmul.f32 %v389, %v402
  %v413 = vmul.f32 %v390, %v402
  %v414 = vmul.f32 %v391, %v402
  %v415 = vmul.f32 %v392, %v402
  %v416 = vmul.f32 %v393, %v402
  %v417 = vmul.f32 %v394, %v402
  %v418 = vmul.f32 %v395, %v402
  %v419 = vmul.f32 %v396, %v402
  %v420 = vld [vmem:[%s4] sm:$0x1]
  %v422 = vlaneseq
  %v423 = vshrl.u32 %v422, 7
  %v424 = vsub.s32 0, %v423
  %v425 = vrot.slane %v420, %v424
  %v427 = vadd.f32 %v404, %v425
  %v428 = vadd.f32 %v405, %v425
  %v429 = vadd.f32 %v406, %v425
  %v430 = vadd.f32 %v407, %v425
  %v431 = vadd.f32 %v408, %v425
  %v432 = vadd.f32 %v409, %v425
  %v433 = vadd.f32 %v410, %v425
  %v434 = vadd.f32 %v411, %v425
  %v435 = vadd.f32 %v412, %v425
  %v436 = vadd.f32 %v413, %v425
  %v437 = vadd.f32 %v414, %v425
  %v438 = vadd.f32 %v415, %v425
  %v439 = vadd.f32 %v416, %v425
  %v440 = vadd.f32 %v417, %v425
  %v441 = vadd.f32 %v418, %v425
  %v442 = vadd.f32 %v419, %v425
  %v443 = vpack.c.bf16 %v428, %v427
  %v444 = vpack.c.bf16 %v430, %v429
  %v445 = vpack.c.bf16 %v432, %v431
  %v446 = vpack.c.bf16 %v434, %v433
  %v447 = vpack.c.bf16 %v436, %v435
  %v448 = vpack.c.bf16 %v438, %v437
  %v449 = vpack.c.bf16 %v440, %v439
  %v450 = vpack.c.bf16 %v442, %v441
  %v459 = vunpack.c.l.b16 %v443
  %v460 = vunpack.c.h.b16 %v443
  %v461 = vunpack.c.l.b16 %v444
  %v462 = vunpack.c.h.b16 %v444
  %v463 = vunpack.c.l.b16 %v445
  %v464 = vunpack.c.h.b16 %v445
  %v465 = vunpack.c.l.b16 %v446
  %v466 = vunpack.c.h.b16 %v446
  %v467 = vunpack.c.l.b16 %v447
  %v468 = vunpack.c.h.b16 %v447
  %v469 = vunpack.c.l.b16 %v448
  %v470 = vunpack.c.h.b16 %v448
  %v471 = vunpack.c.l.b16 %v449
  %v472 = vunpack.c.h.b16 %v449
  %v473 = vunpack.c.l.b16 %v450
  %v474 = vunpack.c.h.b16 %v450
  %v475 = vpack.c.b16 %v459, %v459
  %v476 = vpack.c.b16 %v460, %v460
  %v477 = vpack.c.b16 %v461, %v461
  %v478 = vpack.c.b16 %v462, %v462
  %v479 = vpack.c.b16 %v463, %v463
  %v480 = vpack.c.b16 %v464, %v464
  %v481 = vpack.c.b16 %v465, %v465
  %v482 = vpack.c.b16 %v466, %v466
  %v483 = vpack.c.b16 %v467, %v467
  %v484 = vpack.c.b16 %v468, %v468
  %v485 = vpack.c.b16 %v469, %v469
  %v486 = vpack.c.b16 %v470, %v470
  %v487 = vpack.c.b16 %v471, %v471
  %v488 = vpack.c.b16 %v472, %v472
  %v489 = vpack.c.b16 %v473, %v473
  %v490 = vpack.c.b16 %v474, %v474
  %507 = vst [vmem:[%s5] sm:$0xf] %v475
  %508 = vst [vmem:[%s5 + $0x4] sm:$0xf] %v476
  %509 = vst [vmem:[%s5 + $0x8] sm:$0xf] %v477
  %510 = vst [vmem:[%s5 + $0xc] sm:$0xf] %v478
  %511 = vst [vmem:[%s5 + $0x10] sm:$0xf] %v479
  %512 = vst [vmem:[%s5 + $0x14] sm:$0xf] %v480
  %513 = vst [vmem:[%s5 + $0x18] sm:$0xf] %v481
  %514 = vst [vmem:[%s5 + $0x1c] sm:$0xf] %v482
  %515 = vst [vmem:[%s5 + $0x20] sm:$0xf] %v483
  %516 = vst [vmem:[%s5 + $0x24] sm:$0xf] %v484
  %517 = vst [vmem:[%s5 + $0x28] sm:$0xf] %v485
  %518 = vst [vmem:[%s5 + $0x2c] sm:$0xf] %v486
  %519 = vst [vmem:[%s5 + $0x30] sm:$0xf] %v487
  %520 = vst [vmem:[%s5 + $0x34] sm:$0xf] %v488
  %521 = vst [vmem:[%s5 + $0x38] sm:$0xf] %v489
  %522 = vst [vmem:[%s5 + $0x3c] sm:$0xf] %v490
  // Predicated region
  $region22: #{conv_mixer_forward.4} parent=0 // pred_check
    _
  $region23: #{conv_mixer_forward.4} parent=0 // pred_check_branch
    %524 = sbr.rel (0) target = $region25
  $region24: #{conv_mixer_forward.4} parent=0 // pred_region
    _
  $region25: #{conv_mixer_forward.4} parent=0 // pred_fallthru
    _
  // Predicated region
  $region26: #{conv_mixer_forward.4} parent=0 // pred_check
    _
  $region27: #{conv_mixer_forward.4} parent=0 // pred_check_branch
    %526 = sbr.rel (0) target = $region29
  $region28: #{conv_mixer_forward.4} parent=0 // pred_region
    _
  $region29: #{conv_mixer_forward.4} parent=0 // pred_fallthru
    _

// kernel: conv_mixer_forward.5
$region0: #{conv_mixer_forward.5}
  #allocation0 [shape = 'u32[]', space=smem, size = 0x4, offset = 0x4, fixed_abs, tag = 'smem constant byte address 0x4 - core index']
  #allocation1 [shape = 'u32[144,128]{1,0:T(1,128)}', space=vmem, size = 0x12000, scoped, tag = 'internal scratch']
  #allocation2 [shape = 'bf16[1,12,18,128]{3,2,1,0:T(8,128)(2,1)}', space=vmem, size = 0x12000, scoped, tag = 'scratch operand']
  %s0 = inlined_call_operand.vmem [shape: bf16[2,8,8,128], index: 0, kind: input, shape index: {}]
  %s1 = inlined_call_operand.vmem [shape: f32[25,128], index: 1, kind: input, shape index: {}]
  %s2 = inlined_call_operand.vmem [shape: f32[1,128], index: 2, kind: input, shape index: {}]
  %s3 = inlined_call_operand.vmem [shape: f32[1,128], index: 3, kind: input, shape index: {}]
  %s4 = inlined_call_operand.vmem [shape: f32[1,128], index: 4, kind: input, shape index: {}]
  %s5 = inlined_call_operand.vmem [shape: bf16[128,128], index: 5, kind: input, shape index: {}]
  %s6 = inlined_call_operand.vmem [shape: f32[1,128], index: 6, kind: input, shape index: {}]
  %s7 = inlined_call_operand.vmem [shape: f32[1,128], index: 7, kind: input, shape index: {}]
  %s8 = inlined_call_operand.vmem [shape: f32[1,128], index: 8, kind: input, shape index: {}]
  %s9 = inlined_call_operand.vmem [shape: bf16[2,8,8,128], index: 9, kind: output, shape index: {}]
  %s10 = sld [smem:[#allocation0]]
  $region69: #{conv_mixer_forward.5} parent=0
    _
  %s12 = ssub.s32 1, %s10
  %s13 = scalar_select 0, %s12, %s10
  loop: start=0, step=1, limit=4
  $region2: #{conv_mixer_forward.5} parent=0 // loop_pre_header
    _
  $region3: #{conv_mixer_forward.5} parent=0 // loop_header
    %s15 = sphi 0, %s19
    %p16 = scmp.ge.s32.totalorder %s15, 4
    %s25 = sphi 0, %s27
    %s28 = sphi 0, %s25
    %s29 = sphi 0, %s28
    %s45 = sphi 0, %s29
    %s49 = sphi 0, %s49
    %s51 = sphi 0, %s49
    %s52 = sphi 0, %s51
    %s66 = sphi 0, %s52
    %s70 = sphi 0, %s70
    %s72 = sphi 0, %s70
    %s73 = sphi 0, %s72
    %s87 = sphi 0, %s73
    %s91 = sphi 0, %s91
    %s93 = sphi 0, %s91
    %s94 = sphi 0, %s93
    %s108 = sphi 0, %s94
    %s112 = sphi 0, %s112
    %s114 = sphi 0, %s112
    %s115 = sphi 0, %s114
    %s129 = sphi 0, %s115
    %s133 = sphi 0, %s133
    %s135 = sphi 0, %s133
    %s136 = sphi 0, %s135
    %s150 = sphi 0, %s136
    %s154 = sphi 0, %s154
    %s156 = sphi 0, %s154
    %s157 = sphi 0, %s156
    %s171 = sphi 0, %s157
    %s175 = sphi 0, %s175
    %s177 = sphi 0, %s175
    %s178 = sphi 0, %s177
    %s192 = sphi 0, %s178
    %s196 = sphi 0, %s196
    %s198 = sphi 0, %s196
    %s199 = sphi 0, %s198
    %s213 = sphi 0, %s199
    %s219 = sphi 0, %s221
    %s222 = sphi 0, %s219
    %s223 = sphi 0, %s222
    %s239 = sphi 0, %s223
  $region4: #{conv_mixer_forward.5} parent=0 // loop_header_branch
    %18 = sbr.rel (%p16) target = $region8
  $region5: #{conv_mixer_forward.5} parent=0 // loop_body
    %s20 = ssub.s32 %s15, 1
    %s21 = ssub.s32 %s15, 2
    %s22 = sadd.s32 %s15, 1
    %s23 = ssub.s32 %s15, %s22
    %p24 = scmp.eq.s32.totalorder %s23, 0
    %s26 = sadd.s32 %s25, 1
    %s27 = scalar_select %p24, %s25, %s26
    %p30 = pneg %p24
    %p31 = scmp.eq.s32.totalorder %s15, 1
    %p32 = por %p30, %p31
    %p33 = scmp.ne.s32.totalorder %s25, %s28
    %p34 = scmp.eq.s32.totalorder %s15, 0
    %p35 = por %p33, %p34
    %p36 = scmp.ne.s32.totalorder %s25, %s28
    %p37 = scmp.eq.s32.totalorder %s20, 1
    %p38 = por %p36, %p37
    %p39 = scmp.ne.s32.totalorder %s28, %s29
    %p40 = scmp.eq.s32.totalorder %s20, 0
    %p41 = por %p39, %p40
    %p42 = scmp.ne.s32.totalorder %s28, %s29
    %p43 = scmp.eq.s32.totalorder %s21, 1
    %p44 = por %p42, %p43
    %p46 = scmp.ne.s32.totalorder %s29, %s45
    %p47 = scmp.eq.s32.totalorder %s21, 0
    %p48 = por %p46, %p47
    %s50 = sadd.s32 %s49, 1
    %p53 = scmp.eq.s32.totalorder %s15, 1
    %p54 = scmp.ne.s32.totalorder %s49, %s51
    %p55 = scmp.eq.s32.totalorder %s15, 0
    %p56 = por %p54, %p55
    %p57 = scmp.ne.s32.totalorder %s49, %s51
    %p58 = scmp.eq.s32.totalorder %s20, 1
    %p59 = por %p57, %p58
    %p60 = scmp.ne.s32.totalorder %s51, %s52
    %p61 = scmp.eq.s32.totalorder %s20, 0
    %p62 = por %p60, %p61
    %p63 = scmp.ne.s32.totalorder %s51, %s52
    %p64 = scmp.eq.s32.totalorder %s21, 1
    %p65 = por %p63, %p64
    %p67 = scmp.ne.s32.totalorder %s52, %s66
    %p68 = scmp.eq.s32.totalorder %s21, 0
    %p69 = por %p67, %p68
    %s71 = sadd.s32 %s70, 1
    %p74 = scmp.eq.s32.totalorder %s15, 1
    %p75 = scmp.ne.s32.totalorder %s70, %s72
    %p76 = scmp.eq.s32.totalorder %s15, 0
    %p77 = por %p75, %p76
    %p78 = scmp.ne.s32.totalorder %s70, %s72
    %p79 = scmp.eq.s32.totalorder %s20, 1
    %p80 = por %p78, %p79
    %p81 = scmp.ne.s32.totalorder %s72, %s73
    %p82 = scmp.eq.s32.totalorder %s20, 0
    %p83 = por %p81, %p82
    %p84 = scmp.ne.s32.totalorder %s72, %s73
    %p85 = scmp.eq.s32.totalorder %s21, 1
    %p86 = por %p84, %p85
    %p88 = scmp.ne.s32.totalorder %s73, %s87
    %p89 = scmp.eq.s32.totalorder %s21, 0
    %p90 = por %p88, %p89
    %s92 = sadd.s32 %s91, 1
    %p95 = scmp.eq.s32.totalorder %s15, 1
    %p96 = scmp.ne.s32.totalorder %s91, %s93
    %p97 = scmp.eq.s32.totalorder %s15, 0
    %p98 = por %p96, %p97
    %p99 = scmp.ne.s32.totalorder %s91, %s93
    %p100 = scmp.eq.s32.totalorder %s20, 1
    %p101 = por %p99, %p100
    %p102 = scmp.ne.s32.totalorder %s93, %s94
    %p103 = scmp.eq.s32.totalorder %s20, 0
    %p104 = por %p102, %p103
    %p105 = scmp.ne.s32.totalorder %s93, %s94
    %p106 = scmp.eq.s32.totalorder %s21, 1
    %p107 = por %p105, %p106
    %p109 = scmp.ne.s32.totalorder %s94, %s108
    %p110 = scmp.eq.s32.totalorder %s21, 0
    %p111 = por %p109, %p110
    %s113 = sadd.s32 %s112, 1
    %p116 = scmp.eq.s32.totalorder %s15, 1
    %p117 = scmp.ne.s32.totalorder %s112, %s114
    %p118 = scmp.eq.s32.totalorder %s15, 0
    %p119 = por %p117, %p118
    %p120 = scmp.ne.s32.totalorder %s112, %s114
    %p121 = scmp.eq.s32.totalorder %s20, 1
    %p122 = por %p120, %p121
    %p123 = scmp.ne.s32.totalorder %s114, %s115
    %p124 = scmp.eq.s32.totalorder %s20, 0
    %p125 = por %p123, %p124
    %p126 = scmp.ne.s32.totalorder %s114, %s115
    %p127 = scmp.eq.s32.totalorder %s21, 1
    %p128 = por %p126, %p127
    %p130 = scmp.ne.s32.totalorder %s115, %s129
    %p131 = scmp.eq.s32.totalorder %s21, 0
    %p132 = por %p130, %p131
    %s134 = sadd.s32 %s133, 1
    %p137 = scmp.eq.s32.totalorder %s15, 1
    %p138 = scmp.ne.s32.totalorder %s133, %s135
    %p139 = scmp.eq.s32.totalorder %s15, 0
    %p140 = por %p138, %p139
    %p141 = scmp.ne.s32.totalorder %s133, %s135
    %p142 = scmp.eq.s32.totalorder %s20, 1
    %p143 = por %p141, %p142
    %p144 = scmp.ne.s32.totalorder %s135, %s136
    %p145 = scmp.eq.s32.totalorder %s20, 0
    %p146 = por %p144, %p145
    %p147 = scmp.ne.s32.totalorder %s135, %s136
    %p148 = scmp.eq.s32.totalorder %s21, 1
    %p149 = por %p147, %p148
    %p151 = scmp.ne.s32.totalorder %s136, %s150
    %p152 = scmp.eq.s32.totalorder %s21, 0
    %p153 = por %p151, %p152
    %s155 = sadd.s32 %s154, 1
    %p158 = scmp.eq.s32.totalorder %s15, 1
    %p159 = scmp.ne.s32.totalorder %s154, %s156
    %p160 = scmp.eq.s32.totalorder %s15, 0
    %p161 = por %p159, %p160
    %p162 = scmp.ne.s32.totalorder %s154, %s156
    %p163 = scmp.eq.s32.totalorder %s20, 1
    %p164 = por %p162, %p163
    %p165 = scmp.ne.s32.totalorder %s156, %s157
    %p166 = scmp.eq.s32.totalorder %s20, 0
    %p167 = por %p165, %p166
    %p168 = scmp.ne.s32.totalorder %s156, %s157
    %p169 = scmp.eq.s32.totalorder %s21, 1
    %p170 = por %p168, %p169
    %p172 = scmp.ne.s32.totalorder %s157, %s171
    %p173 = scmp.eq.s32.totalorder %s21, 0
    %p174 = por %p172, %p173
    %s176 = sadd.s32 %s175, 1
    %p179 = scmp.eq.s32.totalorder %s15, 1
    %p180 = scmp.ne.s32.totalorder %s175, %s177
    %p181 = scmp.eq.s32.totalorder %s15, 0
    %p182 = por %p180, %p181
    %p183 = scmp.ne.s32.totalorder %s175, %s177
    %p184 = scmp.eq.s32.totalorder %s20, 1
    %p185 = por %p183, %p184
    %p186 = scmp.ne.s32.totalorder %s177, %s178
    %p187 = scmp.eq.s32.totalorder %s20, 0
    %p188 = por %p186, %p187
    %p189 = scmp.ne.s32.totalorder %s177, %s178
    %p190 = scmp.eq.s32.totalorder %s21, 1
    %p191 = por %p189, %p190
    %p193 = scmp.ne.s32.totalorder %s178, %s192
    %p194 = scmp.eq.s32.totalorder %s21, 0
    %p195 = por %p193, %p194
    %s197 = sadd.s32 %s196, 1
    %p200 = scmp.eq.s32.totalorder %s15, 1
    %p201 = scmp.ne.s32.totalorder %s196, %s198
    %p202 = scmp.eq.s32.totalorder %s15, 0
    %p203 = por %p201, %p202
    %p204 = scmp.ne.s32.totalorder %s196, %s198
    %p205 = scmp.eq.s32.totalorder %s20, 1
    %p206 = por %p204, %p205
    %p207 = scmp.ne.s32.totalorder %s198, %s199
    %p208 = scmp.eq.s32.totalorder %s20, 0
    %p209 = por %p207, %p208
    %p210 = scmp.ne.s32.totalorder %s198, %s199
    %p211 = scmp.eq.s32.totalorder %s21, 1
    %p212 = por %p210, %p211
    %p214 = scmp.ne.s32.totalorder %s199, %s213
    %p215 = scmp.eq.s32.totalorder %s21, 0
    %p216 = por %p214, %p215
    %s217 = ssub.s32 %s15, %s22
    %p218 = scmp.eq.s32.totalorder %s217, 0
    %s220 = sadd.s32 %s219, 1
    %s221 = scalar_select %p218, %s219, %s220
    %p224 = pneg %p218
    %p225 = scmp.eq.s32.totalorder %s15, 1
    %p226 = por %p224, %p225
    %p227 = scmp.ne.s32.totalorder %s219, %s222
    %p228 = scmp.eq.s32.totalorder %s15, 0
    %p229 = por %p227, %p228
    %p230 = scmp.ne.s32.totalorder %s219, %s222
    %p231 = scmp.eq.s32.totalorder %s20, 1
    %p232 = por %p230, %p231
    %p233 = scmp.ne.s32.totalorder %s222, %s223
    %p234 = scmp.eq.s32.totalorder %s20, 0
    %p235 = por %p233, %p234
    %p236 = scmp.ne.s32.totalorder %s222, %s223
    %p237 = scmp.eq.s32.totalorder %s21, 1
    %p238 = por %p236, %p237
    %p240 = scmp.ne.s32.totalorder %s223, %s239
    %p241 = scmp.eq.s32.totalorder %s21, 0
    %p242 = por %p240, %p241
    %p243 = scmp.le.s32.totalorder 1, %s15
    %p244 = scmp.lt.s32.totalorder %s15, 3
    %p245 = pnand %p243, %p244
    %p246 = pneg %p245
    // Predicated region
    $region9: #{conv_mixer_forward.5} parent=5 // pred_check
      _
    $region10: #{conv_mixer_forward.5} parent=5 // pred_check_branch
      %248 = sbr.rel (%p245) target = $region12
    $region11: #{conv_mixer_forward.5} parent=5 // pred_region
      %s249 = ssub.s32 %s15, 1
      // Predicated region
      $region13: #{conv_mixer_forward.5} parent=11 // pred_check
        %p250 = pneg %p62
      $region14: #{conv_mixer_forward.5} parent=11 // pred_check_branch
        %252 = sbr.rel (%p250) target = $region16
      $region15: #{conv_mixer_forward.5} parent=11 // pred_region
        _
      $region16: #{conv_mixer_forward.5} parent=11 // pred_fallthru
        _
      // Predicated region
      $region17: #{conv_mixer_forward.5} parent=11 // pred_check
        %p253 = pneg %p83
      $region18: #{conv_mixer_forward.5} parent=11 // pred_check_branch
        %255 = sbr.rel (%p253) target = $region20
      $region19: #{conv_mixer_forward.5} parent=11 // pred_region
        _
      $region20: #{conv_mixer_forward.5} parent=11 // pred_fallthru
        _
      // Predicated region
      $region21: #{conv_mixer_forward.5} parent=11 // pred_check
        %p256 = pneg %p104
      $region22: #{conv_mixer_forward.5} parent=11 // pred_check_branch
        %258 = sbr.rel (%p256) target = $region24
      $region23: #{conv_mixer_forward.5} parent=11 // pred_region
        _
      $region24: #{conv_mixer_forward.5} parent=11 // pred_fallthru
        _
      // Predicated region
      $region25: #{conv_mixer_forward.5} parent=11 // pred_check
        %p259 = pneg %p125
      $region26: #{conv_mixer_forward.5} parent=11 // pred_check_branch
        %261 = sbr.rel (%p259) target = $region28
      $region27: #{conv_mixer_forward.5} parent=11 // pred_region
        _
      $region28: #{conv_mixer_forward.5} parent=11 // pred_fallthru
        _
      // Predicated region
      $region29: #{conv_mixer_forward.5} parent=11 // pred_check
        %p262 = pneg %p146
      $region30: #{conv_mixer_forward.5} parent=11 // pred_check_branch
        %264 = sbr.rel (%p262) target = $region32
      $region31: #{conv_mixer_forward.5} parent=11 // pred_region
        _
      $region32: #{conv_mixer_forward.5} parent=11 // pred_fallthru
        _
      // Predicated region
      $region33: #{conv_mixer_forward.5} parent=11 // pred_check
        %p265 = pneg %p167
      $region34: #{conv_mixer_forward.5} parent=11 // pred_check_branch
        %267 = sbr.rel (%p265) target = $region36
      $region35: #{conv_mixer_forward.5} parent=11 // pred_region
        _
      $region36: #{conv_mixer_forward.5} parent=11 // pred_fallthru
        _
      // Predicated region
      $region37: #{conv_mixer_forward.5} parent=11 // pred_check
        %p268 = pneg %p188
      $region38: #{conv_mixer_forward.5} parent=11 // pred_check_branch
        %270 = sbr.rel (%p268) target = $region40
      $region39: #{conv_mixer_forward.5} parent=11 // pred_region
        _
      $region40: #{conv_mixer_forward.5} parent=11 // pred_fallthru
        _
      // Predicated region
      $region41: #{conv_mixer_forward.5} parent=11 // pred_check
        %p271 = pneg %p209
      $region42: #{conv_mixer_forward.5} parent=11 // pred_check_branch
        %273 = sbr.rel (%p271) target = $region44
      $region43: #{conv_mixer_forward.5} parent=11 // pred_region
        _
      $region44: #{conv_mixer_forward.5} parent=11 // pred_fallthru
        _
    $region12: #{conv_mixer_forward.5} parent=5 // pred_fallthru
      _
    %p274 = scmp.lt.s32.totalorder %s15, 2
    // Predicated region
    $region45: #{conv_mixer_forward.5} parent=5 // pred_check
      %p275 = pneg %p274
    $region46: #{conv_mixer_forward.5} parent=5 // pred_check_branch
      %277 = sbr.rel (%p275) target = $region48
    $region47: #{conv_mixer_forward.5} parent=5 // pred_region
      // Predicated region
      $region49: #{conv_mixer_forward.5} parent=47 // pred_check
        %p278 = pneg %p35
      $region50: #{conv_mixer_forward.5} parent=47 // pred_check_branch
        %280 = sbr.rel (%p278) target = $region52
      $region51: #{conv_mixer_forward.5} parent=47 // pred_region
        %p281 = scmp.lt.s32.totalorder %s15, 1
        %s282 = scalar_select %p281, %s15, 1
        %s283 = smul.addr %s282, 8
        %s284 = smul.addr %s283, 4
        %s285 = scalar_lea.vmem %s0, %s284
      $region52: #{conv_mixer_forward.5} parent=47 // pred_fallthru
        _
    $region48: #{conv_mixer_forward.5} parent=5 // pred_fallthru
      _
    %p286 = scmp.le.s32.totalorder 1, %s15
    %p287 = scmp.lt.s32.totalorder %s15, 3
    %p288 = pnand %p286, %p287
    %p289 = pneg %p288
    // Predicated region
    $region53: #{conv_mixer_forward.5} parent=5 // pred_check
      _
    $region54: #{conv_mixer_forward.5} parent=5 // pred_check_branch
      %291 = sbr.rel (%p288) target = $region56
    $region55: #{conv_mixer_forward.5} parent=5 // pred_region
      %s292 = ssub.s32 %s15, 1
      %p293 = scmp.lt.s32.totalorder %s20, 1
      %s294 = scalar_select %p293, %s20, 1
      %s295 = smul.addr %s294, 8
      %s296 = smul.addr %s295, 4
      %s297 = scalar_lea.vmem %s0, %s296
      %p298 = pneg %p41
      %p299 = pneg %p38
      %p300 = pneg %p62
      %p301 = pneg %p59
      %p302 = pneg %p83
      %p303 = pneg %p80
      %p304 = pneg %p104
      %p305 = pneg %p101
      %p306 = pneg %p125
      %p307 = pneg %p122
      %p308 = pneg %p146
      %p309 = pneg %p143
      %p310 = pneg %p167
      %p311 = pneg %p164
      %p312 = pneg %p188
      %p313 = pneg %p185
      %p314 = pneg %p209
      %p315 = pneg %p206
      %p316 = pneg %p235
      %p317 = pneg %p232
      %p318 = scmp.lt.s32.totalorder %s20, 1
      %s319 = scalar_select %p318, %s20, 1
      %s320 = smul.addr %s319, 8
      %s321 = smul.addr %s320, 4
      %s322 = scalar_lea.vmem %s9, %s321
      %p323 = scmp.lt.s32.totalorder %s20, 1
      %s324 = scalar_select %p323, %s20, 1
      %s325 = smul.addr %s324, 8
      %s326 = smul.addr %s325, 4
      %s327 = scalar_lea.vmem %s0, %s326
      %p328 = scmp.lt.s32.totalorder %s20, 1
      %s329 = scalar_select %p328, %s20, 1
      %s330 = smul.addr %s329, 8
      %s331 = smul.addr %s330, 4
      %s332 = scalar_lea.vmem %s9, %s331
      %334 = vst [vmem:[#allocation2] sm:$0xf] 0
      %335 = vst [vmem:[#allocation2 + $0x4] sm:$0xf] 0
      %336 = vst [vmem:[#allocation2 + $0x8] sm:$0x1] 0
      %337 = vst [vmem:[#allocation2 + $0xc] sm:$0xf] 0
      %338 = vst [vmem:[#allocation2 + $0x10] sm:$0xf] 0
      %339 = vst [vmem:[#allocation2 + $0x14] sm:$0x1] 0
      %s340 = scalar_lea.vmem [#allocation2], 120
      %341 = vst [vmem:[%s340] sm:$0xf] 0
      %342 = vst [vmem:[%s340 + $0x4] sm:$0xf] 0
      %343 = vst [vmem:[%s340 + $0x8] sm:$0x1] 0
      %344 = vst [vmem:[%s340 + $0xc] sm:$0xf] 0
      %345 = vst [vmem:[%s340 + $0x10] sm:$0xf] 0
      %346 = vst [vmem:[%s340 + $0x14] sm:$0x1] 0
      %347 = vst [vmem:[#allocation2] sm:$0x8] 0
      %348 = vst [vmem:[#allocation2 + $0xc] sm:$0x8] 0
      %349 = vst [vmem:[#allocation2 + $0x18] sm:$0x8] 0
      %350 = vst [vmem:[#allocation2 + $0x24] sm:$0x8] 0
      %351 = vst [vmem:[#allocation2 + $0x30] sm:$0x8] 0
      %352 = vst [vmem:[#allocation2 + $0x3c] sm:$0x8] 0
      %353 = vst [vmem:[#allocation2 + $0x48] sm:$0x8] 0
      %354 = vst [vmem:[#allocation2 + $0x54] sm:$0x8] 0
      %355 = vst [vmem:[#allocation2 + $0x60] sm:$0x8] 0
      %356 = vst [vmem:[#allocation2 + $0x6c] sm:$0x8] 0
      %357 = vst [vmem:[#allocation2 + $0x78] sm:$0x8] 0
      %358 = vst [vmem:[#allocation2 + $0x84] sm:$0x8] 0
      %359 = vst [vmem:[#allocation2 + $0x8] sm:$0x1] 0
      %360 = vst [vmem:[#allocation2 + $0x14] sm:$0x1] 0
      %361 = vst [vmem:[#allocation2 + $0x20] sm:$0x1] 0
      %362 = vst [vmem:[#allocation2 + $0x2c] sm:$0x1] 0
      %363 = vst [vmem:[#allocation2 + $0x38] sm:$0x1] 0
      %364 = vst [vmem:[#allocation2 + $0x44] sm:$0x1] 0
      %365 = vst [vmem:[#allocation2 + $0x50] sm:$0x1] 0
      %366 = vst [vmem:[#allocation2 + $0x5c] sm:$0x1] 0
      %367 = vst [vmem:[#allocation2 + $0x68] sm:$0x1] 0
      %368 = vst [vmem:[#allocation2 + $0x74] sm:$0x1] 0
      %369 = vst [vmem:[#allocation2 + $0x80] sm:$0x1] 0
      %370 = vst [vmem:[#allocation2 + $0x8c] sm:$0x1] 0
      %v371 = vld [vmem:[%s327] sm:$0xf]
      %v372 = vld [vmem:[%s327 + $0x4] sm:$0xf]
      %v373 = vld [vmem:[%s327 + $0x8] sm:$0xf]
      %v374 = vld [vmem:[%s327 + $0xc] sm:$0xf]
      %v375 = vld [vmem:[%s327 + $0x10] sm:$0xf]
      %v376 = vld [vmem:[%s327 + $0x14] sm:$0xf]
      %v377 = vld [vmem:[%s327 + $0x18] sm:$0xf]
      %v378 = vld [vmem:[%s327 + $0x1c] sm:$0xf]
      %s379 = scalar_lea.vmem [#allocation2], 24
      %380 = vst [vmem:[%s379 + $0x4] sm:$0xf] %v371
      %381 = vst [vmem:[%s379 + $0x10] sm:$0xf] %v372
      %382 = vst [vmem:[%s379 + $0x1c] sm:$0xf] %v373
      %383 = vst [vmem:[%s379 + $0x28] sm:$0xf] %v374
      %384 = vst [vmem:[%s379 + $0x34] sm:$0xf] %v375
      %385 = vst [vmem:[%s379 + $0x40] sm:$0xf] %v376
      %386 = vst [vmem:[%s379 + $0x4c] sm:$0xf] %v377
      %387 = vst [vmem:[%s379 + $0x58] sm:$0xf] %v378
      %v388 = vld [vmem:[#allocation2] sm:$0xf]
      %v389 = vld [vmem:[#allocation2 + $0x4] sm:$0xf]
      %v390 = vld [vmem:[#allocation2 + $0x8] sm:$0x1]
      %v391 = vld [vmem:[#allocation2 + $0xc] sm:$0xf]
      %v392 = vld [vmem:[#allocation2 + $0x10] sm:$0xf]
      %v393 = vld [vmem:[#allocation2 + $0x14] sm:$0x1]
      %v394 = vld [vmem:[#allocation2 + $0x18] sm:$0xf]
      %v395 = vld [vmem:[#allocation2 + $0x1c] sm:$0xf]
      %v396 = vld [vmem:[#allocation2 + $0x20] sm:$0x1]
      %v397 = vld [vmem:[#allocation2 + $0x24] sm:$0xf]
      %v398 = vld [vmem:[#allocation2 + $0x28] sm:$0xf]
      %v399 = vld [vmem:[#allocation2 + $0x2c] sm:$0x1]
      %v400 = vld [vmem:[#allocation2 + $0x30] sm:$0xf]
      %v401 = vld [vmem:[#allocation2 + $0x34] sm:$0xf]
      %v402 = vld [vmem:[#allocation2 + $0x38] sm:$0x1]
      %v403 = vld [vmem:[#allocation2 + $0x3c] sm:$0xf]
      %v404 = vld [vmem:[#allocation2 + $0x40] sm:$0xf]
      %v405 = vld [vmem:[#allocation2 + $0x44] sm:$0x1]
      %v406 = vld [vmem:[#allocation2 + $0x48] sm:$0xf]
      %v407 = vld [vmem:[#allocation2 + $0x4c] sm:$0xf]
      %v408 = vld [vmem:[#allocation2 + $0x50] sm:$0x1]
      %v409 = vld [vmem:[#allocation2 + $0x54] sm:$0xf]
      %v410 = vld [vmem:[#allocation2 + $0x58] sm:$0xf]
      %v411 = vld [vmem:[#allocation2 + $0x5c] sm:$0x1]
      %v412 = vld [vmem:[#allocation2 + $0x60] sm:$0xf]
      %v413 = vld [vmem:[#allocation2 + $0x64] sm:$0xf]
      %v414 = vld [vmem:[#allocation2 + $0x68] sm:$0x1]
      %v415 = vld [vmem:[#allocation2 + $0x6c] sm:$0xf]
      %v416 = vld [vmem:[#allocation2 + $0x70] sm:$0xf]
      %v417 = vld [vmem:[#allocation2 + $0x74] sm:$0x1]
      %v418 = vld [vmem:[#allocation2 + $0x78] sm:$0xf]
      %v419 = vld [vmem:[#allocation2 + $0x7c] sm:$0xf]
      %v420 = vld [vmem:[#allocation2 + $0x80] sm:$0x1]
      %v421 = vld [vmem:[#allocation2 + $0x84] sm:$0xf]
      %v422 = vld [vmem:[#allocation2 + $0x88] sm:$0xf]
      %v423 = vld [vmem:[#allocation2 + $0x8c] sm:$0x1]
      %v424 = vld [vmem:[%s1] sm:$0xff]
      %v425 = vld [vmem:[%s1 + $0x8] sm:$0xff]
      %v426 = vld [vmem:[%s1 + $0x10] sm:$0xff]
      %v427 = vld [vmem:[%s1 + $0x18] sm:$0x1]
      %v428 = vunpack.c.l.bf16 %v388
      %v429 = vunpack.c.l.bf16 %v389
      %v430 = vunpack.c.l.bf16 %v391
      %v431 = vunpack.c.l.bf16 %v392
      %v432 = vunpack.c.l.bf16 %v394
      %v433 = vunpack.c.l.bf16 %v395
      %v434 = vunpack.c.l.bf16 %v397
      %v435 = vunpack.c.l.bf16 %v398
      %v436 = vunpack.c.l.bf16 %v400
      %v437 = vunpack.c.l.bf16 %v401
      %v438 = vunpack.c.l.bf16 %v403
      %v439 = vunpack.c.l.bf16 %v404
      %v440 = vunpack.c.l.bf16 %v406
      %v441 = vunpack.c.l.bf16 %v407
      %v442 = vunpack.c.l.bf16 %v409
      %v443 = vunpack.c.l.bf16 %v410
      %v444 = vlaneseq
      %v445 = vshrl.u32 %v444, 7
      %v446 = vsub.s32 0, %v445
      %v447 = vrot.slane %v424, %v446
      %v448 = vmul.f32 %v428, %v447
      %v449 = vmul.f32 %v429, %v447
      %v450 = vmul.f32 %v430, %v447
      %v451 = vmul.f32 %v431, %v447
      %v452 = vmul.f32 %v432, %v447
      %v453 = vmul.f32 %v433, %v447
      %v454 = vmul.f32 %v434, %v447
      %v455 = vmul.f32 %v435, %v447
      %v456 = vmul.f32 %v436, %v447
      %v457 = vmul.f32 %v437, %v447
      %v458 = vmul.f32 %v438, %v447
      %v459 = vmul.f32 %v439, %v447
      %v460 = vmul.f32 %v440, %v447
      %v461 = vmul.f32 %v441, %v447
      %v462 = vmul.f32 %v442, %v447
      %v463 = vmul.f32 %v443, %v447
      %v464 = vunpack.c.l.bf16 %v412
      %v465 = vunpack.c.l.bf16 %v413
      %v466 = vlaneseq
      %v467 = vshrl.u32 %v466, 7
      %v468 = vsub.s32 5, %v467
      %v469 = vrot.slane %v424, %v468
      %v470 = vmul.f32 %v430, %v469
      %v471 = vmul.f32 %v431, %v469
      %v472 = vmul.f32 %v432, %v469
      %v473 = vmul.f32 %v433, %v469
      %v474 = vmul.f32 %v434, %v469
      %v475 = vmul.f32 %v435, %v469
      %v476 = vmul.f32 %v436, %v469
      %v477 = vmul.f32 %v437, %v469
      %v478 = vmul.f32 %v438, %v469
      %v479 = vmul.f32 %v439, %v469
      %v480 = vmul.f32 %v440, %v469
      %v481 = vmul.f32 %v441, %v469
      %v482 = vmul.f32 %v442, %v469
      %v483 = vmul.f32 %v443, %v469
      %v484 = vmul.f32 %v464, %v469
      %v485 = vmul.f32 %v465, %v469
      %v486 = vadd.f32 %v448, %v470
      %v487 = vadd.f32 %v449, %v471
      %v488 = vadd.f32 %v450, %v472
      %v489 = vadd.f32 %v451, %v473
      %v490 = vadd.f32 %v452, %v474
      %v491 = vadd.f32 %v453, %v475
      %v492 = vadd.f32 %v454, %v476
      %v493 = vadd.f32 %v455, %v477
      %v494 = vadd.f32 %v456, %v478
      %v495 = vadd.f32 %v457, %v479
      %v496 = vadd.f32 %v458, %v480
      %v497 = vadd.f32 %v459, %v481
      %v498 = vadd.f32 %v460, %v482
      %v499 = vadd.f32 %v461, %v483
      %v500 = vadd.f32 %v462, %v484
      %v501 = vadd.f32 %v463, %v485
      %v502 = vunpack.c.l.bf16 %v415
      %v503 = vunpack.c.l.bf16 %v416
      %v504 = vlaneseq
      %v505 = vshrl.u32 %v504, 7
      %v506 = vsub.s32 2, %v505
      %v507 = vrot.slane %v425, %v506
      %v508 = vmul.f32 %v432, %v507
      %v509 = vmul.f32 %v433, %v507
      %v510 = vmul.f32 %v434, %v507
      %v511 = vmul.f32 %v435, %v507
      %v512 = vmul.f32 %v436, %v507
      %v513 = vmul.f32 %v437, %v507
      %v514 = vmul.f32 %v438, %v507
      %v515 = vmul.f32 %v439, %v507
      %v516 = vmul.f32 %v440, %v507
      %v517 = vmul.f32 %v441, %v507
      %v518 = vmul.f32 %v442, %v507
      %v519 = vmul.f32 %v443, %v507
      %v520 = vmul.f32 %v464, %v507
      %v521 = vmul.f32 %v465, %v507
      %v522 = vmul.f32 %v502, %v507
      %v523 = vmul.f32 %v503, %v507
      %v524 = vadd.f32 %v486, %v508
      %v525 = vadd.f32 %v487, %v509
      %v526 = vadd.f32 %v488, %v510
      %v527 = vadd.f32 %v489, %v511
      %v528 = vadd.f32 %v490, %v512
      %v529 = vadd.f32 %v491, %v513
      %v530 = vadd.f32 %v492, %v514
      %v531 = vadd.f32 %v493, %v515
      %v532 = vadd.f32 %v494, %v516
      %v533 = vadd.f32 %v495, %v517
      %v534 = vadd.f32 %v496, %v518
      %v535 = vadd.f32 %v497, %v519
      %v536 = vadd.f32 %v498, %v520
      %v537 = vadd.f32 %v499, %v521
      %v538 = vadd.f32 %v500, %v522
      %v539 = vadd.f32 %v501, %v523
      %v540 = vunpack.c.l.bf16 %v418
      %v541 = vunpack.c.l.bf16 %v419
      %v542 = vlaneseq
      %v543 = vshrl.u32 %v542, 7
      %v544 = vsub.s32 7, %v543
      %v545 = vrot.slane %v425, %v544
      %v546 = vmul.f32 %v434, %v545
      %v547 = vmul.f32 %v435, %v545
      %v548 = vmul.f32 %v436, %v545
      %v549 = vmul.f32 %v437, %v545
      %v550 = vmul.f32 %v438, %v545
      %v551 = vmul.f32 %v439, %v545
      %v552 = vmul.f32 %v440, %v545
      %v553 = vmul.f32 %v441, %v545
      %v554 = vmul.f32 %v442, %v545
      %v555 = vmul.f32 %v443, %v545
      %v556 = vmul.f32 %v464, %v545
      %v557 = vmul.f32 %v465, %v545
      %v558 = vmul.f32 %v502, %v545
      %v559 = vmul.f32 %v503, %v545
      %v560 = vmul.f32 %v540, %v545
      %v561 = vmul.f32 %v541, %v545
      %v562 = vadd.f32 %v524, %v546
      %v563 = vadd.f32 %v525, %v547
      %v564 = vadd.f32 %v526, %v548
      %v565 = vadd.f32 %v527, %v549
      %v566 = vadd.f32 %v528, %v550
      %v567 = vadd.f32 %v529, %v551
      %v568 = vadd.f32 %v530, %v552
      %v569 = vadd.f32 %v531, %v553
      %v570 = vadd.f32 %v532, %v554
      %v571 = vadd.f32 %v533, %v555
      %v572 = vadd.f32 %v534, %v556
      %v573 = vadd.f32 %v535, %v557
      %v574 = vadd.f32 %v536, %v558
      %v575 = vadd.f32 %v537, %v559
      %v576 = vadd.f32 %v538, %v560
      %v577 = vadd.f32 %v539, %v561
      %v578 = vunpack.c.l.bf16 %v421
      %v579 = vunpack.c.l.bf16 %v422
      %v580 = vlaneseq
      %v581 = vshrl.u32 %v580, 7
      %v582 = vsub.s32 4, %v581
      %v583 = vrot.slane %v426, %v582
      %v584 = vmul.f32 %v436, %v583
      %v585 = vmul.f32 %v437, %v583
      %v586 = vmul.f32 %v438, %v583
      %v587 = vmul.f32 %v439, %v583
      %v588 = vmul.f32 %v440, %v583
      %v589 = vmul.f32 %v441, %v583
      %v590 = vmul.f32 %v442, %v583
      %v591 = vmul.f32 %v443, %v583
      %v592 = vmul.f32 %v464, %v583
      %v593 = vmul.f32 %v465, %v583
      %v594 = vmul.f32 %v502, %v583
      %v595 = vmul.f32 %v503, %v583
      %v596 = vmul.f32 %v540, %v583
      %v597 = vmul.f32 %v541, %v583
      %v598 = vmul.f32 %v578, %v583
      %v599 = vmul.f32 %v579, %v583
      %v600 = vadd.f32 %v562, %v584
      %v601 = vadd.f32 %v563, %v585
      %v602 = vadd.f32 %v564, %v586
      %v603 = vadd.f32 %v565, %v587
      %v604 = vadd.f32 %v566, %v588
      %v605 = vadd.f32 %v567, %v589
      %v606 = vadd.f32 %v568, %v590
      %v607 = vadd.f32 %v569, %v591
      %v608 = vadd.f32 %v570, %v592
      %v609 = vadd.f32 %v571, %v593
      %v610 = vadd.f32 %v572, %v594
      %v611 = vadd.f32 %v573, %v595
      %v612 = vadd.f32 %v574, %v596
      %v613 = vadd.f32 %v575, %v597
      %v614 = vadd.f32 %v576, %v598
      %v615 = vadd.f32 %v577, %v599
      %v616 = vlaneseq
      %v617 = vshrl.u32 %v616, 7
      %v618 = vsub.s32 1, %v617
      %v619 = vrot.slane %v424, %v618
      %v620 = vmul.f32 %v428, %v619
      %v621 = vmul.f32 %v429, %v619
      %v622 = vmul.f32 %v430, %v619
      %v623 = vmul.f32 %v431, %v619
      %v624 = vmul.f32 %v432, %v619
      %v625 = vmul.f32 %v433, %v619
      %v626 = vmul.f32 %v434, %v619
      %v627 = vmul.f32 %v435, %v619
      %v628 = vmul.f32 %v436, %v619
      %v629 = vmul.f32 %v437, %v619
      %v630 = vmul.f32 %v438, %v619
      %v631 = vmul.f32 %v439, %v619
      %v632 = vmul.f32 %v440, %v619
      %v633 = vmul.f32 %v441, %v619
      %v634 = vmul.f32 %v442, %v619
      %v635 = vmul.f32 %v443, %v619
      %v636 = vlaneseq
      %v637 = vshrl.u32 %v636, 7
      %v638 = vsub.s32 6, %v637
      %v639 = vrot.slane %v424, %v638
      %v640 = vmul.f32 %v430, %v639
      %v641 = vmul.f32 %v431, %v639
      %v642 = vmul.f32 %v432, %v639
      %v643 = vmul.f32 %v433, %v639
      %v644 = vmul.f32 %v434, %v639
      %v645 = vmul.f32 %v435, %v639
      %v646 = vmul.f32 %v436, %v639
      %v647 = vmul.f32 %v437, %v639
      %v648 = vmul.f32 %v438, %v639
      %v649 = vmul.f32 %v439, %v639
      %v650 = vmul.f32 %v440, %v639
      %v651 = vmul.f32 %v441, %v639
      %v652 = vmul.f32 %v442, %v639
      %v653 = vmul.f32 %v443, %v639
      %v654 = vmul.f32 %v464, %v639
      %v655 = vmul.f32 %v465, %v639
      %v656 = vadd.f32 %v620, %v640
      %v657 = vadd.f32 %v621, %v641
      %v658 = vadd.f32 %v622, %v642
      %v659 = vadd.f32 %v623, %v643
      %v660 = vadd.f32 %v624, %v644
      %v661 = vadd.f32 %v625, %v645
      %v662 = vadd.f32 %v626, %v646
      %v663 = vadd.f32 %v627, %v647
      %v664 = vadd.f32 %v628, %v648
      %v665 = vadd.f32 %v629, %v649
      %v666 = vadd.f32 %v630, %v650
      %v667 = vadd.f32 %v631, %v651
      %v668 = vadd.f32 %v632, %v652
      %v669 = vadd.f32 %v633, %v653
      %v670 = vadd.f32 %v634, %v654
      %v671 = vadd.f32 %v635, %v655
      %v672 = vlaneseq
      %v673 = vshrl.u32 %v672, 7
      %v674 = vsub.s32 3, %v673
      %v675 = vrot.slane %v425, %v674
      %v676 = vmul.f32 %v432, %v675
      %v677 = vmul.f32 %v433, %v675
      %v678 = vmul.f32 %v434, %v675
      %v679 = vmul.f32 %v435, %v675
      %v680 = vmul.f32 %v436, %v675
      %v681 = vmul.f32 %v437, %v675
      %v682 = vmul.f32 %v438, %v675
      %v683 = vmul.f32 %v439, %v675
      %v684 = vmul.f32 %v440, %v675
      %v685 = vmul.f32 %v441, %v675
      %v686 = vmul.f32 %v442, %v675
      %v687 = vmul.f32 %v443, %v675
      %v688 = vmul.f32 %v464, %v675
      %v689 = vmul.f32 %v465, %v675
      %v690 = vmul.f32 %v502, %v675
      %v691 = vmul.f32 %v503, %v675
      %v692 = vadd.f32 %v656, %v676
      %v693 = vadd.f32 %v657, %v677
      %v694 = vadd.f32 %v658, %v678
      %v695 = vadd.f32 %v659, %v679
      %v696 = vadd.f32 %v660, %v680
      %v697 = vadd.f32 %v661, %v681
      %v698 = vadd.f32 %v662, %v682
      %v699 = vadd.f32 %v663, %v683
      %v700 = vadd.f32 %v664, %v684
      %v701 = vadd.f32 %v665, %v685
      %v702 = vadd.f32 %v666, %v686
      %v703 = vadd.f32 %v667, %v687
      %v704 = vadd.f32 %v668, %v688
      %v705 = vadd.f32 %v669, %v689
      %v706 = vadd.f32 %v670, %v690
      %v707 = vadd.f32 %v671, %v691
      %v708 = vlaneseq
      %v709 = vshrl.u32 %v708, 7
      %v710 = vsub.s32 0, %v709
      %v711 = vrot.slane %v426, %v710
      %v712 = vmul.f32 %v434, %v711
      %v713 = vmul.f32 %v435, %v711
      %v714 = vmul.f32 %v436, %v711
      %v715 = vmul.f32 %v437, %v711
      %v716 = vmul.f32 %v438, %v711
      %v717 = vmul.f32 %v439, %v711
      %v718 = vmul.f32 %v440, %v711
      %v719 = vmul.f32 %v441, %v711
      %v720 = vmul.f32 %v442, %v711
      %v721 = vmul.f32 %v443, %v711
      %v722 = vmul.f32 %v464, %v711
      %v723 = vmul.f32 %v465, %v711
      %v724 = vmul.f32 %v502, %v711
      %v725 = vmul.f32 %v503, %v711
      %v726 = vmul.f32 %v540, %v711
      %v727 = vmul.f32 %v541, %v711
      %v728 = vadd.f32 %v692, %v712
      %v729 = vadd.f32 %v693, %v713
      %v730 = vadd.f32 %v694, %v714
      %v731 = vadd.f32 %v695, %v715
      %v732 = vadd.f32 %v696, %v716
      %v733 = vadd.f32 %v697, %v717
      %v734 = vadd.f32 %v698, %v718
      %v735 = vadd.f32 %v699, %v719
      %v736 = vadd.f32 %v700, %v720
      %v737 = vadd.f32 %v701, %v721
      %v738 = vadd.f32 %v702, %v722
      %v739 = vadd.f32 %v703, %v723
      %v740 = vadd.f32 %v704, %v724
      %v741 = vadd.f32 %v705, %v725
      %v742 = vadd.f32 %v706, %v726
      %v743 = vadd.f32 %v707, %v727
      %v744 = vlaneseq
      %v745 = vshrl.u32 %v744, 7
      %v746 = vsub.s32 5, %v745
      %v747 = vrot.slane %v426, %v746
      %v748 = vmul.f32 %v436, %v747
      %v749 = vmul.f32 %v437, %v747
      %v750 = vmul.f32 %v438, %v747
      %v751 = vmul.f32 %v439, %v747
      %v752 = vmul.f32 %v440, %v747
      %v753 = vmul.f32 %v441, %v747
      %v754 = vmul.f32 %v442, %v747
      %v755 = vmul.f32 %v443, %v747
      %v756 = vmul.f32 %v464, %v747
      %v757 = vmul.f32 %v465, %v747
      %v758 = vmul.f32 %v502, %v747
      %v759 = vmul.f32 %v503, %v747
      %v760 = vmul.f32 %v540, %v747
      %v761 = vmul.f32 %v541, %v747
      %v762 = vmul.f32 %v578, %v747
      %v763 = vmul.f32 %v579, %v747
      %v764 = vadd.f32 %v728, %v748
      %v765 = vadd.f32 %v729, %v749
      %v766 = vadd.f32 %v730, %v750
      %v767 = vadd.f32 %v731, %v751
      %v768 = vadd.f32 %v732, %v752
      %v769 = vadd.f32 %v733, %v753
      %v770 = vadd.f32 %v734, %v754
      %v771 = vadd.f32 %v735, %v755
      %v772 = vadd.f32 %v736, %v756
      %v773 = vadd.f32 %v737, %v757
      %v774 = vadd.f32 %v738, %v758
      %v775 = vadd.f32 %v739, %v759
      %v776 = vadd.f32 %v740, %v760
      %v777 = vadd.f32 %v741, %v761
      %v778 = vadd.f32 %v742, %v762
      %v779 = vadd.f32 %v743, %v763
      %vm796 = vcmask 1046528
      %v797 = vrot.slane %v764, 1
      %v798 = vrot.slane %v765, 1
      %v799 = vsel %vm796, %v797, %v798
      %v800 = vrot.slane %v766, 1
      %v801 = vrot.slane %v767, 1
      %v802 = vsel %vm796, %v800, %v801
      %v803 = vrot.slane %v768, 1
      %v804 = vrot.slane %v769, 1
      %v805 = vsel %vm796, %v803, %v804
      %v806 = vrot.slane %v770, 1
      %v807 = vrot.slane %v771, 1
      %v808 = vsel %vm796, %v806, %v807
      %v809 = vrot.slane %v772, 1
      %v810 = vrot.slane %v773, 1
      %v811 = vsel %vm796, %v809, %v810
      %v812 = vrot.slane %v774, 1
      %v813 = vrot.slane %v775, 1
      %v814 = vsel %vm796, %v812, %v813
      %v815 = vrot.slane %v776, 1
      %v816 = vrot.slane %v777, 1
      %v817 = vsel %vm796, %v815, %v816
      %v818 = vrot.slane %v778, 1
      %v819 = vrot.slane %v779, 1
      %v820 = vsel %vm796, %v818, %v819
      %v837 = vadd.f32 %v600, %v799
      %v838 = vadd.f32 %v601, %v798
      %v839 = vadd.f32 %v602, %v802
      %v840 = vadd.f32 %v603, %v801
      %v841 = vadd.f32 %v604, %v805
      %v842 = vadd.f32 %v605, %v804
      %v843 = vadd.f32 %v606, %v808
      %v844 = vadd.f32 %v607, %v807
      %v845 = vadd.f32 %v608, %v811
      %v846 = vadd.f32 %v609, %v810
      %v847 = vadd.f32 %v610, %v814
      %v848 = vadd.f32 %v611, %v813
      %v849 = vadd.f32 %v612, %v817
      %v850 = vadd.f32 %v613, %v816
      %v851 = vadd.f32 %v614, %v820
      %v852 = vadd.f32 %v615, %v819
      %v853 = vlaneseq
      %v854 = vshrl.u32 %v853, 7
      %v855 = vsub.s32 2, %v854
      %v856 = vrot.slane %v424, %v855
      %v857 = vmul.f32 %v429, %v856
      %v858 = vmul.f32 %v431, %v856
      %v859 = vmul.f32 %v433, %v856
      %v860 = vmul.f32 %v435, %v856
      %v861 = vmul.f32 %v437, %v856
      %v862 = vmul.f32 %v439, %v856
      %v863 = vmul.f32 %v441, %v856
      %v864 = vmul.f32 %v443, %v856
      %v865 = vlaneseq
      %v866 = vshrl.u32 %v865, 7
      %v867 = vsub.s32 7, %v866
      %v868 = vrot.slane %v424, %v867
      %v869 = vmul.f32 %v431, %v868
      %v870 = vmul.f32 %v433, %v868
      %v871 = vmul.f32 %v435, %v868
      %v872 = vmul.f32 %v437, %v868
      %v873 = vmul.f32 %v439, %v868
      %v874 = vmul.f32 %v441, %v868
      %v875 = vmul.f32 %v443, %v868
      %v876 = vmul.f32 %v465, %v868
      %v877 = vadd.f32 %v857, %v869
      %v878 = vadd.f32 %v858, %v870
      %v879 = vadd.f32 %v859, %v871
      %v880 = vadd.f32 %v860, %v872
      %v881 = vadd.f32 %v861, %v873
      %v882 = vadd.f32 %v862, %v874
      %v883 = vadd.f32 %v863, %v875
      %v884 = vadd.f32 %v864, %v876
      %v885 = vlaneseq
      %v886 = vshrl.u32 %v885, 7
      %v887 = vsub.s32 4, %v886
      %v888 = vrot.slane %v425, %v887
      %v889 = vmul.f32 %v433, %v888
      %v890 = vmul.f32 %v435, %v888
      %v891 = vmul.f32 %v437, %v888
      %v892 = vmul.f32 %v439, %v888
      %v893 = vmul.f32 %v441, %v888
      %v894 = vmul.f32 %v443, %v888
      %v895 = vmul.f32 %v465, %v888
      %v896 = vmul.f32 %v503, %v888
      %v897 = vadd.f32 %v877, %v889
      %v898 = vadd.f32 %v878, %v890
      %v899 = vadd.f32 %v879, %v891
      %v900 = vadd.f32 %v880, %v892
      %v901 = vadd.f32 %v881, %v893
      %v902 = vadd.f32 %v882, %v894
      %v903 = vadd.f32 %v883, %v895
      %v904 = vadd.f32 %v884, %v896
      %v905 = vlaneseq
      %v906 = vshrl.u32 %v905, 7
      %v907 = vsub.s32 1, %v906
      %v908 = vrot.slane %v426, %v907
      %v909 = vmul.f32 %v435, %v908
      %v910 = vmul.f32 %v437, %v908
      %v911 = vmul.f32 %v439, %v908
      %v912 = vmul.f32 %v441, %v908
      %v913 = vmul.f32 %v443, %v908
      %v914 = vmul.f32 %v465, %v908
      %v915 = vmul.f32 %v503, %v908
      %v916 = vmul.f32 %v541, %v908
      %v917 = vadd.f32 %v897, %v909
      %v918 = vadd.f32 %v898, %v910
      %v919 = vadd.f32 %v899, %v911
      %v920 = vadd.f32 %v900, %v912
      %v921 = vadd.f32 %v901, %v913
      %v922 = vadd.f32 %v902, %v914
      %v923 = vadd.f32 %v903, %v915
      %v924 = vadd.f32 %v904, %v916
      %v925 = vlaneseq
      %v926 = vshrl.u32 %v925, 7
      %v927 = vsub.s32 6, %v926
      %v928 = vrot.slane %v426, %v927
      %v929 = vmul.f32 %v437, %v928
      %v930 = vmul.f32 %v439, %v928
      %v931 = vmul.f32 %v441, %v928
      %v932 = vmul.f32 %v443, %v928
      %v933 = vmul.f32 %v465, %v928
      %v934 = vmul.f32 %v503, %v928
      %v935 = vmul.f32 %v541, %v928
      %v936 = vmul.f32 %v579, %v928
      %v937 = vadd.f32 %v917, %v929
      %v938 = vadd.f32 %v918, %v930
      %v939 = vadd.f32 %v919, %v931
      %v940 = vadd.f32 %v920, %v932
      %v941 = vadd.f32 %v921, %v933
      %v942 = vadd.f32 %v922, %v934
      %v943 = vadd.f32 %v923, %v935
      %v944 = vadd.f32 %v924, %v936
      %v953 = vrot.slane %v937, 2
      %v954 = vrot.slane %v938, 2
      %v955 = vrot.slane %v939, 2
      %v956 = vrot.slane %v940, 2
      %v957 = vrot.slane %v941, 2
      %v958 = vrot.slane %v942, 2
      %v959 = vrot.slane %v943, 2
      %v960 = vrot.slane %v944, 2
      %v969 = vadd.f32 %v837, %v953
      %v970 = vadd.f32 %v838, %v953
      %v971 = vadd.f32 %v839, %v954
      %v972 = vadd.f32 %v840, %v954
      %v973 = vadd.f32 %v841, %v955
      %v974 = vadd.f32 %v842, %v955
      %v975 = vadd.f32 %v843, %v956
      %v976 = vadd.f32 %v844, %v956
      %v977 = vadd.f32 %v845, %v957
      %v978 = vadd.f32 %v846, %v957
      %v979 = vadd.f32 %v847, %v958
      %v980 = vadd.f32 %v848, %v958
      %v981 = vadd.f32 %v849, %v959
      %v982 = vadd.f32 %v850, %v959
      %v983 = vadd.f32 %v851, %v960
      %v984 = vadd.f32 %v852, %v960
      %v985 = vunpack.c.l.bf16 %v390
      %v986 = vunpack.c.l.bf16 %v393
      %v987 = vunpack.c.l.bf16 %v396
      %v988 = vunpack.c.l.bf16 %v399
      %v989 = vunpack.c.l.bf16 %v402
      %v990 = vunpack.c.l.bf16 %v405
      %v991 = vunpack.c.l.bf16 %v408
      %v992 = vunpack.c.l.bf16 %v411
      %v993 = vlaneseq
      %v994 = vshrl.u32 %v993, 7
      %v995 = vsub.s32 3, %v994
      %v996 = vrot.slane %v424, %v995
      %v997 = vmul.f32 %v429, %v996
      %v998 = vmul.f32 %v985, %v996
      %v999 = vmul.f32 %v431, %v996
      %v1000 = vmul.f32 %v986, %v996
      %v1001 = vmul.f32 %v433, %v996
      %v1002 = vmul.f32 %v987, %v996
      %v1003 = vmul.f32 %v435, %v996
      %v1004 = vmul.f32 %v988, %v996
      %v1005 = vmul.f32 %v437, %v996
      %v1006 = vmul.f32 %v989, %v996
      %v1007 = vmul.f32 %v439, %v996
      %v1008 = vmul.f32 %v990, %v996
      %v1009 = vmul.f32 %v441, %v996
      %v1010 = vmul.f32 %v991, %v996
      %v1011 = vmul.f32 %v443, %v996
      %v1012 = vmul.f32 %v992, %v996
      %v1013 = vunpack.c.l.bf16 %v414
      %v1014 = vlaneseq
      %v1015 = vshrl.u32 %v1014, 7
      %v1016 = vsub.s32 0, %v1015
      %v1017 = vrot.slane %v425, %v1016
      %v1018 = vmul.f32 %v431, %v1017
      %v1019 = vmul.f32 %v986, %v1017
      %v1020 = vmul.f32 %v433, %v1017
      %v1021 = vmul.f32 %v987, %v1017
      %v1022 = vmul.f32 %v435, %v1017
      %v1023 = vmul.f32 %v988, %v1017
      %v1024 = vmul.f32 %v437, %v1017
      %v1025 = vmul.f32 %v989, %v1017
      %v1026 = vmul.f32 %v439, %v1017
      %v1027 = vmul.f32 %v990, %v1017
      %v1028 = vmul.f32 %v441, %v1017
      %v1029 = vmul.f32 %v991, %v1017
      %v1030 = vmul.f32 %v443, %v1017
      %v1031 = vmul.f32 %v992, %v1017
      %v1032 = vmul.f32 %v465, %v1017
      %v1033 = vmul.f32 %v1013, %v1017
      %v1034 = vadd.f32 %v997, %v1018
      %v1035 = vadd.f32 %v998, %v1019
      %v1036 = vadd.f32 %v999, %v1020
      %v1037 = vadd.f32 %v1000, %v1021
      %v1038 = vadd.f32 %v1001, %v1022
      %v1039 = vadd.f32 %v1002, %v1023
      %v1040 = vadd.f32 %v1003, %v1024
      %v1041 = vadd.f32 %v1004, %v1025
      %v1042 = vadd.f32 %v1005, %v1026
      %v1043 = vadd.f32 %v1006, %v1027
      %v1044 = vadd.f32 %v1007, %v1028
      %v1045 = vadd.f32 %v1008, %v1029
      %v1046 = vadd.f32 %v1009, %v1030
      %v1047 = vadd.f32 %v1010, %v1031
      %v1048 = vadd.f32 %v1011, %v1032
      %v1049 = vadd.f32 %v1012, %v1033
      %v1050 = vunpack.c.l.bf16 %v417
      %v1051 = vlaneseq
      %v1052 = vshrl.u32 %v1051, 7
      %v1053 = vsub.s32 5, %v1052
      %v1054 = vrot.slane %v425, %v1053
      %v1055 = vmul.f32 %v433, %v1054
      %v1056 = vmul.f32 %v987, %v1054
      %v1057 = vmul.f32 %v435, %v1054
      %v1058 = vmul.f32 %v988, %v1054
      %v1059 = vmul.f32 %v437, %v1054
      %v1060 = vmul.f32 %v989, %v1054
      %v1061 = vmul.f32 %v439, %v1054
      %v1062 = vmul.f32 %v990, %v1054
      %v1063 = vmul.f32 %v441, %v1054
      %v1064 = vmul.f32 %v991, %v1054
      %v1065 = vmul.f32 %v443, %v1054
      %v1066 = vmul.f32 %v992, %v1054
      %v1067 = vmul.f32 %v465, %v1054
      %v1068 = vmul.f32 %v1013, %v1054
      %v1069 = vmul.f32 %v503, %v1054
      %v1070 = vmul.f32 %v1050, %v1054
      %v1071 = vadd.f32 %v1034, %v1055
      %v1072 = vadd.f32 %v1035, %v1056
      %v1073 = vadd.f32 %v1036, %v1057
      %v1074 = vadd.f32 %v1037, %v1058
      %v1075 = vadd.f32 %v1038, %v1059
      %v1076 = vadd.f32 %v1039, %v1060
      %v1077 = vadd.f32 %v1040, %v1061
      %v1078 = vadd.f32 %v1041, %v1062
      %v1079 = vadd.f32 %v1042, %v1063
      %v1080 = vadd.f32 %v1043, %v1064
      %v1081 = vadd.f32 %v1044, %v1065
      %v1082 = vadd.f32 %v1045, %v1066
      %v1083 = vadd.f32 %v1046, %v1067
      %v1084 = vadd.f32 %v1047, %v1068
      %v1085 = vadd.f32 %v1048, %v1069
      %v1086 = vadd.f32 %v1049, %v1070
      %v1087 = vunpack.c.l.bf16 %v420
      %v1088 = vlaneseq
      %v1089 = vshrl.u32 %v1088, 7
      %v1090 = vsub.s32 2, %v1089
      %v1091 = vrot.slane %v426, %v1090
      %v1092 = vmul.f32 %v435, %v1091
      %v1093 = vmul.f32 %v988, %v1091
      %v1094 = vmul.f32 %v437, %v1091
      %v1095 = vmul.f32 %v989, %v1091
      %v1096 = vmul.f32 %v439, %v1091
      %v1097 = vmul.f32 %v990, %v1091
      %v1098 = vmul.f32 %v441, %v1091
      %v1099 = vmul.f32 %v991, %v1091
      %v1100 = vmul.f32 %v443, %v1091
      %v1101 = vmul.f32 %v992, %v1091
      %v1102 = vmul.f32 %v465, %v1091
      %v1103 = vmul.f32 %v1013, %v1091
      %v1104 = vmul.f32 %v503, %v1091
      %v1105 = vmul.f32 %v1050, %v1091
      %v1106 = vmul.f32 %v541, %v1091
      %v1107 = vmul.f32 %v1087, %v1091
      %v1108 = vadd.f32 %v1071, %v1092
      %v1109 = vadd.f32 %v1072, %v1093
      %v1110 = vadd.f32 %v1073, %v1094
      %v1111 = vadd.f32 %v1074, %v1095
      %v1112 = vadd.f32 %v1075, %v1096
      %v1113 = vadd.f32 %v1076, %v1097
      %v1114 = vadd.f32 %v1077, %v1098
      %v1115 = vadd.f32 %v1078, %v1099
      %v1116 = vadd.f32 %v1079, %v1100
      %v1117 = vadd.f32 %v1080, %v1101
      %v1118 = vadd.f32 %v1081, %v1102
      %v1119 = vadd.f32 %v1082, %v1103
      %v1120 = vadd.f32 %v1083, %v1104
      %v1121 = vadd.f32 %v1084, %v1105
      %v1122 = vadd.f32 %v1085, %v1106
      %v1123 = vadd.f32 %v1086, %v1107
      %v1124 = vunpack.c.l.bf16 %v423
      %v1125 = vlaneseq
      %v1126 = vshrl.u32 %v1125, 7
      %v1127 = vsub.s32 7, %v1126
      %v1128 = vrot.slane %v426, %v1127
      %v1129 = vmul.f32 %v437, %v1128
      %v1130 = vmul.f32 %v989, %v1128
      %v1131 = vmul.f32 %v439, %v1128
      %v1132 = vmul.f32 %v990, %v1128
      %v1133 = vmul.f32 %v441, %v1128
      %v1134 = vmul.f32 %v991, %v1128
      %v1135 = vmul.f32 %v443, %v1128
      %v1136 = vmul.f32 %v992, %v1128
      %v1137 = vmul.f32 %v465, %v1128
      %v1138 = vmul.f32 %v1013, %v1128
      %v1139 = vmul.f32 %v503, %v1128
      %v1140 = vmul.f32 %v1050, %v1128
      %v1141 = vmul.f32 %v541, %v1128
      %v1142 = vmul.f32 %v1087, %v1128
      %v1143 = vmul.f32 %v579, %v1128
      %v1144 = vmul.f32 %v1124, %v1128
      %v1145 = vadd.f32 %v1108, %v1129
      %v1146 = vadd.f32 %v1109, %v1130
      %v1147 = vadd.f32 %v1110, %v1131
      %v1148 = vadd.f32 %v1111, %v1132
      %v1149 = vadd.f32 %v1112, %v1133
      %v1150 = vadd.f32 %v1113, %v1134
      %v1151 = vadd.f32 %v1114, %v1135
      %v1152 = vadd.f32 %v1115, %v1136
      %v1153 = vadd.f32 %v1116, %v1137
      %v1154 = vadd.f32 %v1117, %v1138
      %v1155 = vadd.f32 %v1118, %v1139
      %v1156 = vadd.f32 %v1119, %v1140
      %v1157 = vadd.f32 %v1120, %v1141
      %v1158 = vadd.f32 %v1121, %v1142
      %v1159 = vadd.f32 %v1122, %v1143
      %v1160 = vadd.f32 %v1123, %v1144
      %vm1177 = vcmask 1044480
      %v1178 = vrot.slane %v1145, 3
      %v1179 = vrot.slane %v1146, 3
      %v1180 = vsel %vm1177, %v1178, %v1179
      %v1181 = vrot.slane %v1147, 3
      %v1182 = vrot.slane %v1148, 3
      %v1183 = vsel %vm1177, %v1181, %v1182
      %v1184 = vrot.slane %v1149, 3
      %v1185 = vrot.slane %v1150, 3
      %v1186 = vsel %vm1177, %v1184, %v1185
      %v1187 = vrot.slane %v1151, 3
      %v1188 = vrot.slane %v1152, 3
      %v1189 = vsel %vm1177, %v1187, %v1188
      %v1190 = vrot.slane %v1153, 3
      %v1191 = vrot.slane %v1154, 3
      %v1192 = vsel %vm1177, %v1190, %v1191
      %v1193 = vrot.slane %v1155, 3
      %v1194 = vrot.slane %v1156, 3
      %v1195 = vsel %vm1177, %v1193, %v1194
      %v1196 = vrot.slane %v1157, 3
      %v1197 = vrot.slane %v1158, 3
      %v1198 = vsel %vm1177, %v1196, %v1197
      %v1199 = vrot.slane %v1159, 3
      %v1200 = vrot.slane %v1160, 3
      %v1201 = vsel %vm1177, %v1199, %v1200
      %v1218 = vadd.f32 %v969, %v1178
      %v1219 = vadd.f32 %v970, %v1180
      %v1220 = vadd.f32 %v971, %v1181
      %v1221 = vadd.f32 %v972, %v1183
      %v1222 = vadd.f32 %v973, %v1184
      %v1223 = vadd.f32 %v974, %v1186
      %v1224 = vadd.f32 %v975, %v1187
      %v1225 = vadd.f32 %v976, %v1189
      %v1226 = vadd.f32 %v977, %v1190
      %v1227 = vadd.f32 %v978, %v1192
      %v1228 = vadd.f32 %v979, %v1193
      %v1229 = vadd.f32 %v980, %v1195
      %v1230 = vadd.f32 %v981, %v1196
      %v1231 = vadd.f32 %v982, %v1198
      %v1232 = vadd.f32 %v983, %v1199
      %v1233 = vadd.f32 %v984, %v1201
      %v1234 = vlaneseq
      %v1235 = vshrl.u32 %v1234, 7
      %v1236 = vsub.s32 4, %v1235
      %v1237 = vrot.slane %v424, %v1236
      %v1238 = vmul.f32 %v429, %v1237
      %v1239 = vmul.f32 %v985, %v1237
      %v1240 = vmul.f32 %v431, %v1237
      %v1241 = vmul.f32 %v986, %v1237
      %v1242 = vmul.f32 %v433, %v1237
      %v1243 = vmul.f32 %v987, %v1237
      %v1244 = vmul.f32 %v435, %v1237
      %v1245 = vmul.f32 %v988, %v1237
      %v1246 = vmul.f32 %v437, %v1237
      %v1247 = vmul.f32 %v989, %v1237
      %v1248 = vmul.f32 %v439, %v1237
      %v1249 = vmul.f32 %v990, %v1237
      %v1250 = vmul.f32 %v441, %v1237
      %v1251 = vmul.f32 %v991, %v1237
      %v1252 = vmul.f32 %v443, %v1237
      %v1253 = vmul.f32 %v992, %v1237
      %v1254 = vlaneseq
      %v1255 = vshrl.u32 %v1254, 7
      %v1256 = vsub.s32 1, %v1255
      %v1257 = vrot.slane %v425, %v1256
      %v1258 = vmul.f32 %v431, %v1257
      %v1259 = vmul.f32 %v986, %v1257
      %v1260 = vmul.f32 %v433, %v1257
      %v1261 = vmul.f32 %v987, %v1257
      %v1262 = vmul.f32 %v435, %v1257
      %v1263 = vmul.f32 %v988, %v1257
      %v1264 = vmul.f32 %v437, %v1257
      %v1265 = vmul.f32 %v989, %v1257
      %v1266 = vmul.f32 %v439, %v1257
      %v1267 = vmul.f32 %v990, %v1257
      %v1268 = vmul.f32 %v441, %v1257
      %v1269 = vmul.f32 %v991, %v1257
      %v1270 = vmul.f32 %v443, %v1257
      %v1271 = vmul.f32 %v992, %v1257
      %v1272 = vmul.f32 %v465, %v1257
      %v1273 = vmul.f32 %v1013, %v1257
      %v1274 = vadd.f32 %v1238, %v1258
      %v1275 = vadd.f32 %v1239, %v1259
      %v1276 = vadd.f32 %v1240, %v1260
      %v1277 = vadd.f32 %v1241, %v1261
      %v1278 = vadd.f32 %v1242, %v1262
      %v1279 = vadd.f32 %v1243, %v1263
      %v1280 = vadd.f32 %v1244, %v1264
      %v1281 = vadd.f32 %v1245, %v1265
      %v1282 = vadd.f32 %v1246, %v1266
      %v1283 = vadd.f32 %v1247, %v1267
      %v1284 = vadd.f32 %v1248, %v1268
      %v1285 = vadd.f32 %v1249, %v1269
      %v1286 = vadd.f32 %v1250, %v1270
      %v1287 = vadd.f32 %v1251, %v1271
      %v1288 = vadd.f32 %v1252, %v1272
      %v1289 = vadd.f32 %v1253, %v1273
      %v1290 = vlaneseq
      %v1291 = vshrl.u32 %v1290, 7
      %v1292 = vsub.s32 6, %v1291
      %v1293 = vrot.slane %v425, %v1292
      %v1294 = vmul.f32 %v433, %v1293
      %v1295 = vmul.f32 %v987, %v1293
      %v1296 = vmul.f32 %v435, %v1293
      %v1297 = vmul.f32 %v988, %v1293
      %v1298 = vmul.f32 %v437, %v1293
      %v1299 = vmul.f32 %v989, %v1293
      %v1300 = vmul.f32 %v439, %v1293
      %v1301 = vmul.f32 %v990, %v1293
      %v1302 = vmul.f32 %v441, %v1293
      %v1303 = vmul.f32 %v991, %v1293
      %v1304 = vmul.f32 %v443, %v1293
      %v1305 = vmul.f32 %v992, %v1293
      %v1306 = vmul.f32 %v465, %v1293
      %v1307 = vmul.f32 %v1013, %v1293
      %v1308 = vmul.f32 %v503, %v1293
      %v1309 = vmul.f32 %v1050, %v1293
      %v1310 = vadd.f32 %v1274, %v1294
      %v1311 = vadd.f32 %v1275, %v1295
      %v1312 = vadd.f32 %v1276, %v1296
      %v1313 = vadd.f32 %v1277, %v1297
      %v1314 = vadd.f32 %v1278, %v1298
      %v1315 = vadd.f32 %v1279, %v1299
      %v1316 = vadd.f32 %v1280, %v1300
      %v1317 = vadd.f32 %v1281, %v1301
      %v1318 = vadd.f32 %v1282, %v1302
      %v1319 = vadd.f32 %v1283, %v1303
      %v1320 = vadd.f32 %v1284, %v1304
      %v1321 = vadd.f32 %v1285, %v1305
      %v1322 = vadd.f32 %v1286, %v1306
      %v1323 = vadd.f32 %v1287, %v1307
      %v1324 = vadd.f32 %v1288, %v1308
      %v1325 = vadd.f32 %v1289, %v1309
      %v1326 = vlaneseq
      %v1327 = vshrl.u32 %v1326, 7
      %v1328 = vsub.s32 3, %v1327
      %v1329 = vrot.slane %v426, %v1328
      %v1330 = vmul.f32 %v435, %v1329
      %v1331 = vmul.f32 %v988, %v1329
      %v1332 = vmul.f32 %v437, %v1329
      %v1333 = vmul.f32 %v989, %v1329
      %v1334 = vmul.f32 %v439, %v1329
      %v1335 = vmul.f32 %v990, %v1329
      %v1336 = vmul.f32 %v441, %v1329
      %v1337 = vmul.f32 %v991, %v1329
      %v1338 = vmul.f32 %v443, %v1329
      %v1339 = vmul.f32 %v992, %v1329
      %v1340 = vmul.f32 %v465, %v1329
      %v1341 = vmul.f32 %v1013, %v1329
      %v1342 = vmul.f32 %v503, %v1329
      %v1343 = vmul.f32 %v1050, %v1329
      %v1344 = vmul.f32 %v541, %v1329
      %v1345 = vmul.f32 %v1087, %v1329
      %v1346 = vadd.f32 %v1310, %v1330
      %v1347 = vadd.f32 %v1311, %v1331
      %v1348 = vadd.f32 %v1312, %v1332
      %v1349 = vadd.f32 %v1313, %v1333
      %v1350 = vadd.f32 %v1314, %v1334
      %v1351 = vadd.f32 %v1315, %v1335
      %v1352 = vadd.f32 %v1316, %v1336
      %v1353 = vadd.f32 %v1317, %v1337
      %v1354 = vadd.f32 %v1318, %v1338
      %v1355 = vadd.f32 %v1319, %v1339
      %v1356 = vadd.f32 %v1320, %v1340
      %v1357 = vadd.f32 %v1321, %v1341
      %v1358 = vadd.f32 %v1322, %v1342
      %v1359 = vadd.f32 %v1323, %v1343
      %v1360 = vadd.f32 %v1324, %v1344
      %v1361 = vadd.f32 %v1325, %v1345
      %v1362 = vlaneseq
      %v1363 = vshrl.u32 %v1362, 7
      %v1364 = vsub.s32 0, %v1363
      %v1365 = vrot.slane %v427, %v1364
      %v1366 = vmul.f32 %v437, %v1365
      %v1367 = vmul.f32 %v989, %v1365
      %v1368 = vmul.f32 %v439, %v1365
      %v1369 = vmul.f32 %v990, %v1365
      %v1370 = vmul.f32 %v441, %v1365
      %v1371 = vmul.f32 %v991, %v1365
      %v1372 = vmul.f32 %v443, %v1365
      %v1373 = vmul.f32 %v992, %v1365
      %v1374 = vmul.f32 %v465, %v1365
      %v1375 = vmul.f32 %v1013, %v1365
      %v1376 = vmul.f32 %v503, %v1365
      %v1377 = vmul.f32 %v1050, %v1365
      %v1378 = vmul.f32 %v541, %v1365
      %v1379 = vmul.f32 %v1087, %v1365
      %v1380 = vmul.f32 %v579, %v1365
      %v1381 = vmul.f32 %v1124, %v1365
      %v1382 = vadd.f32 %v1346, %v1366
      %v1383 = vadd.f32 %v1347, %v1367
      %v1384 = vadd.f32 %v1348, %v1368
      %v1385 = vadd.f32 %v1349, %v1369
      %v1386 = vadd.f32 %v1350, %v1370
      %v1387 = vadd.f32 %v1351, %v1371
      %v1388 = vadd.f32 %v1352, %v1372
      %v1389 = vadd.f32 %v1353, %v1373
      %v1390 = vadd.f32 %v1354, %v1374
      %v1391 = vadd.f32 %v1355, %v1375
      %v1392 = vadd.f32 %v1356, %v1376
      %v1393 = vadd.f32 %v1357, %v1377
      %v1394 = vadd.f32 %v1358, %v1378
      %v1395 = vadd.f32 %v1359, %v1379
      %v1396 = vadd.f32 %v1360, %v1380
      %v1397 = vadd.f32 %v1361, %v1381
      %vm1414 = vcmask 1043456
      %v1415 = vrot.slane %v1382, 4
      %v1416 = vrot.slane %v1383, 4
      %v1417 = vsel %vm1414, %v1415, %v1416
      %v1418 = vrot.slane %v1384, 4
      %v1419 = vrot.slane %v1385, 4
      %v1420 = vsel %vm1414, %v1418, %v1419
      %v1421 = vrot.slane %v1386, 4
      %v1422 = vrot.slane %v1387, 4
      %v1423 = vsel %vm1414, %v1421, %v1422
      %v1424 = vrot.slane %v1388, 4
      %v1425 = vrot.slane %v1389, 4
      %v1426 = vsel %vm1414, %v1424, %v1425
      %v1427 = vrot.slane %v1390, 4
      %v1428 = vrot.slane %v1391, 4
      %v1429 = vsel %vm1414, %v1427, %v1428
      %v1430 = vrot.slane %v1392, 4
      %v1431 = vrot.slane %v1393, 4
      %v1432 = vsel %vm1414, %v1430, %v1431
      %v1433 = vrot.slane %v1394, 4
      %v1434 = vrot.slane %v1395, 4
      %v1435 = vsel %vm1414, %v1433, %v1434
      %v1436 = vrot.slane %v1396, 4
      %v1437 = vrot.slane %v1397, 4
      %v1438 = vsel %vm1414, %v1436, %v1437
      %v1455 = vadd.f32 %v1218, %v1415
      %v1456 = vadd.f32 %v1219, %v1417
      %v1457 = vadd.f32 %v1220, %v1418
      %v1458 = vadd.f32 %v1221, %v1420
      %v1459 = vadd.f32 %v1222, %v1421
      %v1460 = vadd.f32 %v1223, %v1423
      %v1461 = vadd.f32 %v1224, %v1424
      %v1462 = vadd.f32 %v1225, %v1426
      %v1463 = vadd.f32 %v1226, %v1427
      %v1464 = vadd.f32 %v1227, %v1429
      %v1465 = vadd.f32 %v1228, %v1430
      %v1466 = vadd.f32 %v1229, %v1432
      %v1467 = vadd.f32 %v1230, %v1433
      %v1468 = vadd.f32 %v1231, %v1435
      %v1469 = vadd.f32 %v1232, %v1436
      %v1470 = vadd.f32 %v1233, %v1438
      %v1471 = vld [vmem:[%s2] sm:$0x1]
      %v1473 = vlaneseq
      %v1474 = vshrl.u32 %v1473, 7
      %v1475 = vsub.s32 0, %v1474
      %v1476 = vrot.slane %v1471, %v1475
      %v1478 = vadd.f32 %v1455, %v1476
      %v1479 = vadd.f32 %v1456, %v1476
      %v1480 = vadd.f32 %v1457, %v1476
      %v1481 = vadd.f32 %v1458, %v1476
      %v1482 = vadd.f32 %v1459, %v1476
      %v1483 = vadd.f32 %v1460, %v1476
      %v1484 = vadd.f32 %v1461, %v1476
      %v1485 = vadd.f32 %v1462, %v1476
      %v1486 = vadd.f32 %v1463, %v1476
      %v1487 = vadd.f32 %v1464, %v1476
      %v1488 = vadd.f32 %v1465, %v1476
      %v1489 = vadd.f32 %v1466, %v1476
      %v1490 = vadd.f32 %v1467, %v1476
      %v1491 = vadd.f32 %v1468, %v1476
      %v1492 = vadd.f32 %v1469, %v1476
      %v1493 = vadd.f32 %v1470, %v1476
      %v1494 = vmul.f32 %v1478, 0.5
      %v1495 = vmul.f32 %v1479, 0.5
      %v1496 = vmul.f32 %v1480, 0.5
      %v1497 = vmul.f32 %v1481, 0.5
      %v1498 = vmul.f32 %v1482, 0.5
      %v1499 = vmul.f32 %v1483, 0.5
      %v1500 = vmul.f32 %v1484, 0.5
      %v1501 = vmul.f32 %v1485, 0.5
      %v1502 = vmul.f32 %v1486, 0.5
      %v1503 = vmul.f32 %v1487, 0.5
      %v1504 = vmul.f32 %v1488, 0.5
      %v1505 = vmul.f32 %v1489, 0.5
      %v1506 = vmul.f32 %v1490, 0.5
      %v1507 = vmul.f32 %v1491, 0.5
      %v1508 = vmul.f32 %v1492, 0.5
      %v1509 = vmul.f32 %v1493, 0.5
      %v1510 = vmul.f32 %v1478, 0.044715
      %v1511 = vmul.f32 %v1479, 0.044715
      %v1512 = vmul.f32 %v1480, 0.044715
      %v1513 = vmul.f32 %v1481, 0.044715
      %v1514 = vmul.f32 %v1482, 0.044715
      %v1515 = vmul.f32 %v1483, 0.044715
      %v1516 = vmul.f32 %v1484, 0.044715
      %v1517 = vmul.f32 %v1485, 0.044715
      %v1518 = vmul.f32 %v1486, 0.044715
      %v1519 = vmul.f32 %v1487, 0.044715
      %v1520 = vmul.f32 %v1488, 0.044715
      %v1521 = vmul.f32 %v1489, 0.044715
      %v1522 = vmul.f32 %v1490, 0.044715
      %v1523 = vmul.f32 %v1491, 0.044715
      %v1524 = vmul.f32 %v1492, 0.044715
      %v1525 = vmul.f32 %v1493, 0.044715
      %v1526 = vmul.f32 %v1510, %v1478
      %v1527 = vmul.f32 %v1511, %v1479
      %v1528 = vmul.f32 %v1512, %v1480
      %v1529 = vmul.f32 %v1513, %v1481
      %v1530 = vmul.f32 %v1514, %v1482
      %v1531 = vmul.f32 %v1515, %v1483
      %v1532 = vmul.f32 %v1516, %v1484
      %v1533 = vmul.f32 %v1517, %v1485
      %v1534 = vmul.f32 %v1518, %v1486
      %v1535 = vmul.f32 %v1519, %v1487
      %v1536 = vmul.f32 %v1520, %v1488
      %v1537 = vmul.f32 %v1521, %v1489
      %v1538 = vmul.f32 %v1522, %v1490
      %v1539 = vmul.f32 %v1523, %v1491
      %v1540 = vmul.f32 %v1524, %v1492
      %v1541 = vmul.f32 %v1525, %v1493
      %v1542 = vmul.f32 %v1526, %v1478
      %v1543 = vmul.f32 %v1527, %v1479
      %v1544 = vmul.f32 %v1528, %v1480
      %v1545 = vmul.f32 %v1529, %v1481
      %v1546 = vmul.f32 %v1530, %v1482
      %v1547 = vmul.f32 %v1531, %v1483
      %v1548 = vmul.f32 %v1532, %v1484
      %v1549 = vmul.f32 %v1533, %v1485
      %v1550 = vmul.f32 %v1534, %v1486
      %v1551 = vmul.f32 %v1535, %v1487
      %v1552 = vmul.f32 %v1536, %v1488
      %v1553 = vmul.f32 %v1537, %v1489
      %v1554 = vmul.f32 %v1538, %v1490
      %v1555 = vmul.f32 %v1539, %v1491
      %v1556 = vmul.f32 %v1540, %v1492
      %v1557 = vmul.f32 %v1541, %v1493
      %v1558 = vadd.f32 %v1478, %v1542
      %v1559 = vadd.f32 %v1479, %v1543
      %v1560 = vadd.f32 %v1480, %v1544
      %v1561 = vadd.f32 %v1481, %v1545
      %v1562 = vadd.f32 %v1482, %v1546
      %v1563 = vadd.f32 %v1483, %v1547
      %v1564 = vadd.f32 %v1484, %v1548
      %v1565 = vadd.f32 %v1485, %v1549
      %v1566 = vadd.f32 %v1486, %v1550
      %v1567 = vadd.f32 %v1487, %v1551
      %v1568 = vadd.f32 %v1488, %v1552
      %v1569 = vadd.f32 %v1489, %v1553
      %v1570 = vadd.f32 %v1490, %v1554
      %v1571 = vadd.f32 %v1491, %v1555
      %v1572 = vadd.f32 %v1492, %v1556
      %v1573 = vadd.f32 %v1493, %v1557
      %v1574 = vmul.f32 %v1558, 0.7978846
      %v1575 = vmul.f32 %v1559, 0.7978846
      %v1576 = vmul.f32 %v1560, 0.7978846
      %v1577 = vmul.f32 %v1561, 0.7978846
      %v1578 = vmul.f32 %v1562, 0.7978846
      %v1579 = vmul.f32 %v1563, 0.7978846
      %v1580 = vmul.f32 %v1564, 0.7978846
      %v1581 = vmul.f32 %v1565, 0.7978846
      %v1582 = vmul.f32 %v1566, 0.7978846
      %v1583 = vmul.f32 %v1567, 0.7978846
      %v1584 = vmul.f32 %v1568, 0.7978846
      %v1585 = vmul.f32 %v1569, 0.7978846
      %v1586 = vmul.f32 %v1570, 0.7978846
      %v1587 = vmul.f32 %v1571, 0.7978846
      %v1588 = vmul.f32 %v1572, 0.7978846
      %v1589 = vmul.f32 %v1573, 0.7978846
      %v1590 = vtanh.pop %v1574
      %v1591 = vtanh.pop %v1575
      %v1592 = vtanh.pop %v1576
      %v1593 = vtanh.pop %v1577
      %v1594 = vtanh.pop %v1578
      %v1595 = vtanh.pop %v1579
      %v1596 = vtanh.pop %v1580
      %v1597 = vtanh.pop %v1581
      %v1598 = vtanh.pop %v1582
      %v1599 = vtanh.pop %v1583
      %v1600 = vtanh.pop %v1584
      %v1601 = vtanh.pop %v1585
      %v1602 = vtanh.pop %v1586
      %v1603 = vtanh.pop %v1587
      %v1604 = vtanh.pop %v1588
      %v1605 = vtanh.pop %v1589
      %v1606 = vadd.f32 %v1590, 1.0
      %v1607 = vadd.f32 %v1591, 1.0
      %v1608 = vadd.f32 %v1592, 1.0
      %v1609 = vadd.f32 %v1593, 1.0
      %v1610 = vadd.f32 %v1594, 1.0
      %v1611 = vadd.f32 %v1595, 1.0
      %v1612 = vadd.f32 %v1596, 1.0
      %v1613 = vadd.f32 %v1597, 1.0
      %v1614 = vadd.f32 %v1598, 1.0
      %v1615 = vadd.f32 %v1599, 1.0
      %v1616 = vadd.f32 %v1600, 1.0
      %v1617 = vadd.f32 %v1601, 1.0
      %v1618 = vadd.f32 %v1602, 1.0
      %v1619 = vadd.f32 %v1603, 1.0
      %v1620 = vadd.f32 %v1604, 1.0
      %v1621 = vadd.f32 %v1605, 1.0
      %v1622 = vmul.f32 %v1494, %v1606
      %v1623 = vmul.f32 %v1495, %v1607
      %v1624 = vmul.f32 %v1496, %v1608
      %v1625 = vmul.f32 %v1497, %v1609
      %v1626 = vmul.f32 %v1498, %v1610
      %v1627 = vmul.f32 %v1499, %v1611
      %v1628 = vmul.f32 %v1500, %v1612
      %v1629 = vmul.f32 %v1501, %v1613
      %v1630 = vmul.f32 %v1502, %v1614
      %v1631 = vmul.f32 %v1503, %v1615
      %v1632 = vmul.f32 %v1504, %v1616
      %v1633 = vmul.f32 %v1505, %v1617
      %v1634 = vmul.f32 %v1506, %v1618
      %v1635 = vmul.f32 %v1507, %v1619
      %v1636 = vmul.f32 %v1508, %v1620
      %v1637 = vmul.f32 %v1509, %v1621
      %v1638 = vld [vmem:[%s3] sm:$0x1]
      %v1640 = vlaneseq
      %v1641 = vshrl.u32 %v1640, 7
      %v1642 = vsub.s32 0, %v1641
      %v1643 = vrot.slane %v1638, %v1642
      %v1645 = vmul.f32 %v1622, %v1643
      %v1646 = vmul.f32 %v1623, %v1643
      %v1647 = vmul.f32 %v1624, %v1643
      %v1648 = vmul.f32 %v1625, %v1643
      %v1649 = vmul.f32 %v1626, %v1643
      %v1650 = vmul.f32 %v1627, %v1643
      %v1651 = vmul.f32 %v1628, %v1643
      %v1652 = vmul.f32 %v1629, %v1643
      %v1653 = vmul.f32 %v1630, %v1643
      %v1654 = vmul.f32 %v1631, %v1643
      %v1655 = vmul.f32 %v1632, %v1643
      %v1656 = vmul.f32 %v1633, %v1643
      %v1657 = vmul.f32 %v1634, %v1643
      %v1658 = vmul.f32 %v1635, %v1643
      %v1659 = vmul.f32 %v1636, %v1643
      %v1660 = vmul.f32 %v1637, %v1643
      %v1661 = vld [vmem:[%s4] sm:$0x1]
      %v1663 = vlaneseq
      %v1664 = vshrl.u32 %v1663, 7
      %v1665 = vsub.s32 0, %v1664
      %v1666 = vrot.slane %v1661, %v1665
      %v1668 = vadd.f32 %v1645, %v1666
      %v1669 = vadd.f32 %v1646, %v1666
      %v1670 = vadd.f32 %v1647, %v1666
      %v1671 = vadd.f32 %v1648, %v1666
      %v1672 = vadd.f32 %v1649, %v1666
      %v1673 = vadd.f32 %v1650, %v1666
      %v1674 = vadd.f32 %v1651, %v1666
      %v1675 = vadd.f32 %v1652, %v1666
      %v1676 = vadd.f32 %v1653, %v1666
      %v1677 = vadd.f32 %v1654, %v1666
      %v1678 = vadd.f32 %v1655, %v1666
      %v1679 = vadd.f32 %v1656, %v1666
      %v1680 = vadd.f32 %v1657, %v1666
      %v1681 = vadd.f32 %v1658, %v1666
      %v1682 = vadd.f32 %v1659, %v1666
      %v1683 = vadd.f32 %v1660, %v1666
      %v1684 = vunpack.c.l.bf16 %v371
      %v1685 = vunpack.c.l.bf16 %v372
      %v1686 = vunpack.c.l.bf16 %v373
      %v1687 = vunpack.c.l.bf16 %v374
      %v1688 = vunpack.c.l.bf16 %v375
      %v1689 = vunpack.c.l.bf16 %v376
      %v1690 = vunpack.c.l.bf16 %v377
      %v1691 = vunpack.c.l.bf16 %v378
      %v1700 = vrot.slane %v1684, 2
      %v1701 = vrot.slane %v1685, 2
      %v1702 = vrot.slane %v1686, 2
      %v1703 = vrot.slane %v1687, 2
      %v1704 = vrot.slane %v1688, 2
      %v1705 = vrot.slane %v1689, 2
      %v1706 = vrot.slane %v1690, 2
      %v1707 = vrot.slane %v1691, 2
      %v1716 = vadd.f32 %v1668, %v1700
      %v1717 = vadd.f32 %v1669, %v1700
      %v1718 = vadd.f32 %v1670, %v1701
      %v1719 = vadd.f32 %v1671, %v1701
      %v1720 = vadd.f32 %v1672, %v1702
      %v1721 = vadd.f32 %v1673, %v1702
      %v1722 = vadd.f32 %v1674, %v1703
      %v1723 = vadd.f32 %v1675, %v1703
      %v1724 = vadd.f32 %v1676, %v1704
      %v1725 = vadd.f32 %v1677, %v1704
      %v1726 = vadd.f32 %v1678, %v1705
      %v1727 = vadd.f32 %v1679, %v1705
      %v1728 = vadd.f32 %v1680, %v1706
      %v1729 = vadd.f32 %v1681, %v1706
      %v1730 = vadd.f32 %v1682, %v1707
      %v1731 = vadd.f32 %v1683, %v1707
      %vm1748 = vcmask 1041408
      %v1749 = vrot.slane %v1716, 6
      %v1750 = vrot.slane %v1717, 6
      %v1751 = vsel %vm1748, %v1749, %v1750
      %v1752 = vrot.slane %v1718, 6
      %v1753 = vrot.slane %v1719, 6
      %v1754 = vsel %vm1748, %v1752, %v1753
      %v1755 = vrot.slane %v1720, 6
      %v1756 = vrot.slane %v1721, 6
      %v1757 = vsel %vm1748, %v1755, %v1756
      %v1758 = vrot.slane %v1722, 6
      %v1759 = vrot.slane %v1723, 6
      %v1760 = vsel %vm1748, %v1758, %v1759
      %v1761 = vrot.slane %v1724, 6
      %v1762 = vrot.slane %v1725, 6
      %v1763 = vsel %vm1748, %v1761, %v1762
      %v1764 = vrot.slane %v1726, 6
      %v1765 = vrot.slane %v1727, 6
      %v1766 = vsel %vm1748, %v1764, %v1765
      %v1767 = vrot.slane %v1728, 6
      %v1768 = vrot.slane %v1729, 6
      %v1769 = vsel %vm1748, %v1767, %v1768
      %v1770 = vrot.slane %v1730, 6
      %v1771 = vrot.slane %v1731, 6
      %v1772 = vsel %vm1748, %v1770, %v1771
      %v1781 = vpack.c.bf16 %v1754, %v1751
      %v1782 = vpack.c.bf16 %v1760, %v1757
      %v1783 = vpack.c.bf16 %v1766, %v1763
      %v1784 = vpack.c.bf16 %v1772, %v1769
      %v1785 = vld [vmem:[%s5] sm:$0xf]
      %v1786 = vld [vmem:[%s5 + $0x4] sm:$0xf]
      %v1787 = vld [vmem:[%s5 + $0x8] sm:$0xf]
      %v1788 = vld [vmem:[%s5 + $0xc] sm:$0xf]
      %v1789 = vld [vmem:[%s5 + $0x10] sm:$0xf]
      %v1790 = vld [vmem:[%s5 + $0x14] sm:$0xf]
      %v1791 = vld [vmem:[%s5 + $0x18] sm:$0xf]
      %v1792 = vld [vmem:[%s5 + $0x1c] sm:$0xf]
      %v1793 = vld [vmem:[%s5 + $0x20] sm:$0xf]
      %v1794 = vld [vmem:[%s5 + $0x24] sm:$0xf]
      %v1795 = vld [vmem:[%s5 + $0x28] sm:$0xf]
      %v1796 = vld [vmem:[%s5 + $0x2c] sm:$0xf]
      %v1797 = vld [vmem:[%s5 + $0x30] sm:$0xf]
      %v1798 = vld [vmem:[%s5 + $0x34] sm:$0xf]
      %v1799 = vld [vmem:[%s5 + $0x38] sm:$0xf]
      %v1800 = vld [vmem:[%s5 + $0x3c] sm:$0xf]
      %v1801 = vld [vmem:[%s6] sm:$0x1]
      %v1803 = vlaneseq
      %v1804 = vshrl.u32 %v1803, 7
      %v1805 = vsub.s32 0, %v1804
      %v1806 = vrot.slane %v1801, %v1805
      %v1824 = vunpack.c.l.b16 %v1785
      %v1825 = vunpack.c.l.b16 %v1786
      %v1826 = vunpack.c.l.b16 %v1787
      %v1827 = vunpack.c.l.b16 %v1788
      %v1828 = vunpack.c.l.b16 %v1789
      %v1829 = vunpack.c.l.b16 %v1790
      %v1830 = vunpack.c.l.b16 %v1791
      %v1831 = vunpack.c.l.b16 %v1792
      %v1832 = vunpack.c.l.b16 %v1793
      %v1833 = vunpack.c.l.b16 %v1794
      %v1834 = vunpack.c.l.b16 %v1795
      %v1835 = vunpack.c.l.b16 %v1796
      %v1836 = vunpack.c.l.b16 %v1797
      %v1837 = vunpack.c.l.b16 %v1798
      %v1838 = vunpack.c.l.b16 %v1799
      %v1839 = vunpack.c.l.b16 %v1800
      %v1840 = vpack.c.b16 %v1825, %v1824
      %v1841 = vpack.c.b16 %v1827, %v1826
      %v1842 = vpack.c.b16 %v1829, %v1828
      %v1843 = vpack.c.b16 %v1831, %v1830
      %v1844 = vpack.c.b16 %v1833, %v1832
      %v1845 = vpack.c.b16 %v1835, %v1834
      %v1846 = vpack.c.b16 %v1837, %v1836
      %v1847 = vpack.c.b16 %v1839, %v1838
      %1856 = vmatprep.subr.bf16.mxu0 0
      %1857 = vmatpush1.bf16.msra.mxu0 %v1840
      %1858 = vmatprep.subr.bf16.mxu0 0
      %1859 = vmatpush1.bf16.msra.mxu0 %v1841
      %1860 = vmatprep.subr.bf16.mxu0 0
      %1861 = vmatpush1.bf16.msra.mxu0 %v1842
      %1862 = vmatprep.subr.bf16.mxu0 0
      %1863 = vmatpush1.bf16.msra.mxu0 %v1843
      %1864 = vmatprep.subr.bf16.mxu0 0
      %1865 = vmatpush1.bf16.msra.mxu0 %v1844
      %1866 = vmatprep.subr.bf16.mxu0 0
      %1867 = vmatpush1.bf16.msra.mxu0 %v1845
      %1868 = vmatprep.subr.bf16.mxu0 0
      %1869 = vmatpush1.bf16.msra.mxu0 %v1846
      %1870 = vmatprep.subr.bf16.mxu0 0
      %1871 = vmatpush1.bf16.msra.mxu0 %v1847
      %1872 = vmatprep.subr.bf16.mxu0 0
      %1873 = vmatpush1.bf16.msra.mxu0 0
      %1874 = vmatprep.subr.bf16.mxu0 0
      %1875 = vmatpush1.bf16.msra.mxu0 0
      %1876 = vmatprep.subr.bf16.mxu0 0
      %1877 = vmatpush1.bf16.msra.mxu0 0
      %1878 = vmatprep.subr.bf16.mxu0 0
      %1879 = vmatpush1.bf16.msra.mxu0 0
      %1880 = vmatprep.subr.bf16.mxu0 0
      %1881 = vmatpush1.bf16.msra.mxu0 0
      %1882 = vmatprep.subr.bf16.mxu0 0
      %1883 = vmatpush1.bf16.msra.mxu0 0
      %1884 = vmatprep.subr.bf16.mxu0 0
      %1885 = vmatpush1.bf16.msra.mxu0 0
      %1886 = vmatprep.subr.bf16.mxu0 0
      %1887 = vmatpush1.bf16.msra.mxu0 0
      %1888 = vmatprep.mubr.bf16.mxu0 0
      %1889 = vmatmul.mubr.bf16.gmra.mrb[0].mxu0 %v1781
      %v1890 = vpop.f32.mrb[0].mxu0
      %v1891 = vadd.f32 %v1806, %v1890
      %v1892 = vpop.f32.mrb[0].mxu0
      %v1893 = vpop.f32.mrb[0].mxu0
      %v1894 = vadd.f32 %v1806, %v1893
      %v1895 = vpop.f32.mrb[0].mxu0
      %1896 = vmatprep.mubr.bf16.mxu0 0
      %1897 = vmatmul.mubr.bf16.gmra.mrb[0].mxu0 %v1782
      %v1898 = vpop.f32.mrb[0].mxu0
      %v1899 = vadd.f32 %v1806, %v1898
      %v1900 = vpop.f32.mrb[0].mxu0
      %v1901 = vpop.f32.mrb[0].mxu0
      %v1902 = vadd.f32 %v1806, %v1901
      %v1903 = vpop.f32.mrb[0].mxu0
      %1904 = vmatprep.mubr.bf16.mxu0 0
      %1905 = vmatmul.mubr.bf16.gmra.mrb[0].mxu0 %v1783
      %v1906 = vpop.f32.mrb[0].mxu0
      %v1907 = vadd.f32 %v1806, %v1906
      %v1908 = vpop.f32.mrb[0].mxu0
      %v1909 = vpop.f32.mrb[0].mxu0
      %v1910 = vadd.f32 %v1806, %v1909
      %v1911 = vpop.f32.mrb[0].mxu0
      %1912 = vmatprep.mubr.bf16.mxu0 0
      %1913 = vmatmul.mubr.bf16.gmra.mrb[0].mxu0 %v1784
      %v1914 = vpop.f32.mrb[0].mxu0
      %v1915 = vadd.f32 %v1806, %v1914
      %v1916 = vpop.f32.mrb[0].mxu0
      %v1917 = vpop.f32.mrb[0].mxu0
      %v1918 = vadd.f32 %v1806, %v1917
      %v1919 = vpop.f32.mrb[0].mxu0
      %1920 = vdwg.mxu0
      %v1921 = vmul.f32 %v1891, 0.5
      %v1922 = vmul.f32 %v1894, 0.5
      %v1923 = vmul.f32 %v1899, 0.5
      %v1924 = vmul.f32 %v1902, 0.5
      %v1925 = vmul.f32 %v1907, 0.5
      %v1926 = vmul.f32 %v1910, 0.5
      %v1927 = vmul.f32 %v1915, 0.5
      %v1928 = vmul.f32 %v1918, 0.5
      %v1929 = vmul.f32 %v1891, 0.044715
      %v1930 = vmul.f32 %v1894, 0.044715
      %v1931 = vmul.f32 %v1899, 0.044715
      %v1932 = vmul.f32 %v1902, 0.044715
      %v1933 = vmul.f32 %v1907, 0.044715
      %v1934 = vmul.f32 %v1910, 0.044715
      %v1935 = vmul.f32 %v1915, 0.044715
      %v1936 = vmul.f32 %v1918, 0.044715
      %v1937 = vmul.f32 %v1929, %v1891
      %v1938 = vmul.f32 %v1930, %v1894
      %v1939 = vmul.f32 %v1931, %v1899
      %v1940 = vmul.f32 %v1932, %v1902
      %v1941 = vmul.f32 %v1933, %v1907
      %v1942 = vmul.f32 %v1934, %v1910
      %v1943 = vmul.f32 %v1935, %v1915
      %v1944 = vmul.f32 %v1936, %v1918
      %v1945 = vmul.f32 %v1937, %v1891
      %v1946 = vmul.f32 %v1938, %v1894
      %v1947 = vmul.f32 %v1939, %v1899
      %v1948 = vmul.f32 %v1940, %v1902
      %v1949 = vmul.f32 %v1941, %v1907
      %v1950 = vmul.f32 %v1942, %v1910
      %v1951 = vmul.f32 %v1943, %v1915
      %v1952 = vmul.f32 %v1944, %v1918
      %v1953 = vadd.f32 %v1891, %v1945
      %v1954 = vadd.f32 %v1894, %v1946
      %v1955 = vadd.f32 %v1899, %v1947
      %v1956 = vadd.f32 %v1902, %v1948
      %v1957 = vadd.f32 %v1907, %v1949
      %v1958 = vadd.f32 %v1910, %v1950
      %v1959 = vadd.f32 %v1915, %v1951
      %v1960 = vadd.f32 %v1918, %v1952
      %v1961 = vmul.f32 %v1953, 0.7978846
      %v1962 = vmul.f32 %v1954, 0.7978846
      %v1963 = vmul.f32 %v1955, 0.7978846
      %v1964 = vmul.f32 %v1956, 0.7978846
      %v1965 = vmul.f32 %v1957, 0.7978846
      %v1966 = vmul.f32 %v1958, 0.7978846
      %v1967 = vmul.f32 %v1959, 0.7978846
      %v1968 = vmul.f32 %v1960, 0.7978846
      %v1969 = vtanh.pop %v1961
      %v1970 = vtanh.pop %v1962
      %v1971 = vtanh.pop %v1963
      %v1972 = vtanh.pop %v1964
      %v1973 = vtanh.pop %v1965
      %v1974 = vtanh.pop %v1966
      %v1975 = vtanh.pop %v1967
      %v1976 = vtanh.pop %v1968
      %v1977 = vadd.f32 %v1969, 1.0
      %v1978 = vadd.f32 %v1970, 1.0
      %v1979 = vadd.f32 %v1971, 1.0
      %v1980 = vadd.f32 %v1972, 1.0
      %v1981 = vadd.f32 %v1973, 1.0
      %v1982 = vadd.f32 %v1974, 1.0
      %v1983 = vadd.f32 %v1975, 1.0
      %v1984 = vadd.f32 %v1976, 1.0
      %v1985 = vmul.f32 %v1921, %v1977
      %v1986 = vmul.f32 %v1922, %v1978
      %v1987 = vmul.f32 %v1923, %v1979
      %v1988 = vmul.f32 %v1924, %v1980
      %v1989 = vmul.f32 %v1925, %v1981
      %v1990 = vmul.f32 %v1926, %v1982
      %v1991 = vmul.f32 %v1927, %v1983
      %v1992 = vmul.f32 %v1928, %v1984
      %v1993 = vld [vmem:[%s7] sm:$0x1]
      %v1995 = vlaneseq
      %v1996 = vshrl.u32 %v1995, 7
      %v1997 = vsub.s32 0, %v1996
      %v1998 = vrot.slane %v1993, %v1997
      %v2000 = vmul.f32 %v1985, %v1998
      %v2001 = vmul.f32 %v1986, %v1998
      %v2002 = vmul.f32 %v1987, %v1998
      %v2003 = vmul.f32 %v1988, %v1998
      %v2004 = vmul.f32 %v1989, %v1998
      %v2005 = vmul.f32 %v1990, %v1998
      %v2006 = vmul.f32 %v1991, %v1998
      %v2007 = vmul.f32 %v1992, %v1998
      %v2008 = vld [vmem:[%s8] sm:$0x1]
      %v2010 = vlaneseq
      %v2011 = vshrl.u32 %v2010, 7
      %v2012 = vsub.s32 0, %v2011
      %v2013 = vrot.slane %v2008, %v2012
      %v2015 = vadd.f32 %v2000, %v2013
      %v2016 = vadd.f32 %v2001, %v2013
      %v2017 = vadd.f32 %v2002, %v2013
      %v2018 = vadd.f32 %v2003, %v2013
      %v2019 = vadd.f32 %v2004, %v2013
      %v2020 = vadd.f32 %v2005, %v2013
      %v2021 = vadd.f32 %v2006, %v2013
      %v2022 = vadd.f32 %v2007, %v2013
      %v2023 = vpack.c.bf16 %v2016, %v2015
      %v2024 = vpack.c.bf16 %v2018, %v2017
      %v2025 = vpack.c.bf16 %v2020, %v2019
      %v2026 = vpack.c.bf16 %v2022, %v2021
      %v2031 = vunpack.c.l.b16 %v2023
      %v2032 = vunpack.c.h.b16 %v2023
      %v2033 = vunpack.c.l.b16 %v2024
      %v2034 = vunpack.c.h.b16 %v2024
      %v2035 = vunpack.c.l.b16 %v2025
      %v2036 = vunpack.c.h.b16 %v2025
      %v2037 = vunpack.c.l.b16 %v2026
      %v2038 = vunpack.c.h.b16 %v2026
      %v2039 = vpack.c.b16 %v2031, %v2031
      %v2040 = vpack.c.b16 %v2032, %v2032
      %v2041 = vpack.c.b16 %v2033, %v2033
      %v2042 = vpack.c.b16 %v2034, %v2034
      %v2043 = vpack.c.b16 %v2035, %v2035
      %v2044 = vpack.c.b16 %v2036, %v2036
      %v2045 = vpack.c.b16 %v2037, %v2037
      %v2046 = vpack.c.b16 %v2038, %v2038
      %2055 = vst [vmem:[%s332] sm:$0xf] %v2039
      %2056 = vst [vmem:[%s332 + $0x4] sm:$0xf] %v2040
      %2057 = vst [vmem:[%s332 + $0x8] sm:$0xf] %v2041
      %2058 = vst [vmem:[%s332 + $0xc] sm:$0xf] %v2042
      %2059 = vst [vmem:[%s332 + $0x10] sm:$0xf] %v2043
      %2060 = vst [vmem:[%s332 + $0x14] sm:$0xf] %v2044
      %2061 = vst [vmem:[%s332 + $0x18] sm:$0xf] %v2045
      %2062 = vst [vmem:[%s332 + $0x1c] sm:$0xf] %v2046
      %p2063 = scmp.lt.s32.totalorder %s20, 1
      %s2064 = scalar_select %p2063, %s20, 1
      %s2065 = smul.addr %s2064, 8
      %s2066 = smul.addr %s2065, 4
      %s2067 = scalar_lea.vmem %s9, %s2066
      // Predicated region
      $region57: #{conv_mixer_forward.5} parent=55 // pred_check
        %p2068 = pneg %p232
      $region58: #{conv_mixer_forward.5} parent=55 // pred_check_branch
        %2070 = sbr.rel (%p2068) target = $region60
      $region59: #{conv_mixer_forward.5} parent=55 // pred_region
        _
      $region60: #{conv_mixer_forward.5} parent=55 // pred_fallthru
        _
    $region56: #{conv_mixer_forward.5} parent=5 // pred_fallthru
      _
    %p2071 = scmp.le.s32.totalorder 2, %s15
    // Predicated region
    $region61: #{conv_mixer_forward.5} parent=5 // pred_check
      %p2072 = pneg %p2071
    $region62: #{conv_mixer_forward.5} parent=5 // pred_check_branch
      %2074 = sbr.rel (%p2072) target = $region64
    $region63: #{conv_mixer_forward.5} parent=5 // pred_region
      %s2075 = ssub.s32 %s15, 2
      // Predicated region
      $region65: #{conv_mixer_forward.5} parent=63 // pred_check
        %p2076 = pneg %p238
      $region66: #{conv_mixer_forward.5} parent=63 // pred_check_branch
        %2078 = sbr.rel (%p2076) target = $region68
      $region67: #{conv_mixer_forward.5} parent=63 // pred_region
        %p2079 = scmp.lt.s32.totalorder %s21, 1
        %s2080 = scalar_select %p2079, %s21, 1
        %s2081 = smul.addr %s2080, 8
        %s2082 = smul.addr %s2081, 4
        %s2083 = scalar_lea.vmem %s9, %s2082
      $region68: #{conv_mixer_forward.5} parent=63 // pred_fallthru
        _
    $region64: #{conv_mixer_forward.5} parent=5 // pred_fallthru
      _
  $region6: #{conv_mixer_forward.5} parent=0 // loop_footer
    %s19 = sadd.s32 1, %s15
  $region7: #{conv_mixer_forward.5} parent=0 // loop_footer_branch
    %14 = sbr.rel target = $region3
  $region8: #{conv_mixer_forward.5} parent=0 // loop_exit
    _

</llo_original>
